<compile_context>
chip_gen: v7x
topology: tpu7x:2x2x1
jax: 0.10.0
libtpu: 0.0.40
codegen_flags: <defaults>
</compile_context>

<pallas_src>
import functools
import math

import jax
import jax.numpy as jnp
from jax import lax
from jax.experimental import pallas as pl
from jax.experimental.pallas import tpu as pltpu


# ----------------------------------------------------------------------------
# Kernel 1: fused BERT (embeddings + all encoder layers), grid = (L, FF chunks)
# ----------------------------------------------------------------------------
def _bert_kernel(we_ref, pe_ref, te_ref, eg_ref, eb_ref, bias_ref,
                 wq_ref, bq_ref, wk_ref, bk_ref, wv_ref, bv_ref,
                 wo_ref, bo_ref, ln1g_ref, ln1b_ref,
                 wi_ref, bi_ref, wo2_ref, bo2_ref, ln2g_ref, ln2b_ref,
                 o_ref, h1_scr, acc_scr, *, num_heads, head_dim):
    layer = pl.program_id(0)
    chunk = pl.program_id(1)
    n_chunks = pl.num_programs(1)
    B, S, H = o_ref.shape
    M = B * S
    nh, hd = num_heads, head_dim

    def layer_norm(t, g_ref, b_ref):                     # stats in f32
        mu = jnp.mean(t, axis=-1, keepdims=True)
        var = jnp.mean(jnp.square(t - mu), axis=-1, keepdims=True)
        return (t - mu) * lax.rsqrt(var + 1e-12) * g_ref[0] + b_ref[0]

    # ---- layer-0 prologue: embedding sum + LayerNorm seeds the resident out.
    @pl.when(jnp.logical_and(layer == 0, chunk == 0))
    def _():
        x = (we_ref[...].astype(jnp.float32) + pe_ref[...].astype(jnp.float32)
             + te_ref[...].astype(jnp.float32))          # (B, S, H)
        mu = jnp.mean(x, axis=-1, keepdims=True)
        var = jnp.mean(jnp.square(x - mu), axis=-1, keepdims=True)
        o_ref[...] = ((x - mu) * lax.rsqrt(var + 1e-12) * eg_ref[...]
                      + eb_ref[...])

    # ---- self-attention + first LayerNorm: once per layer (chunk == 0) -----
    @pl.when(chunk == 0)
    def _():
        x = o_ref[...].reshape(M, H)                     # f32 residual carry
        xb = x.astype(jnp.bfloat16)                      # one cast for Q/K/V

        def linear(tb, w_ref, b_ref):                    # bf16 MXU, f32 acc
            return jnp.dot(tb, w_ref[0],
                           preferred_element_type=jnp.float32) + b_ref[0]

        q = linear(xb, wq_ref, bq_ref)
        k = linear(xb, wk_ref, bk_ref)
        v = linear(xb, wv_ref, bv_ref)

        def to_heads(t):                                 # (M,H)->(nh*B,S,hd) bf16
            t3 = t.astype(jnp.bfloat16).reshape(B, S, H)
            # TODO(synk): lane slices are tile-aligned only for head_dim=128;
            # use pltpu.einshape for head_dim=64 (real BERT-base).
            return jnp.concatenate(
                [t3[:, :, h * hd:(h + 1) * hd] for h in range(nh)], axis=0)

        qh, kh, vh = to_heads(q), to_heads(k), to_heads(v)
        # One batched contraction over all (head, batch) pairs; f32 softmax.
        s = jnp.einsum("hqd,hkd->hqk", qh, kh,
                       preferred_element_type=jnp.float32)
        s = s * (1.0 / math.sqrt(hd)) + bias_ref[...]    # (nh*B, S, S)
        s = s - jnp.max(s, axis=-1, keepdims=True)
        p = jnp.exp(s)
        p = p * pl.reciprocal(jnp.sum(p, axis=-1, keepdims=True), approx=True)
        ctx = jnp.einsum("hqk,hkd->hqd", p.astype(jnp.bfloat16), vh,
                         preferred_element_type=jnp.float32)   # (nh*B, S, hd)
        ctx = jnp.concatenate(
            [ctx[h * B:(h + 1) * B] for h in range(nh)], axis=-1)  # (B, S, H)

        attn = jnp.dot(ctx.reshape(M, H).astype(jnp.bfloat16), wo_ref[0],
                       preferred_element_type=jnp.float32) + bo_ref[0]
        h1_scr[...] = layer_norm(attn + x, ln1g_ref, ln1b_ref)
        acc_scr[...] = jnp.zeros_like(acc_scr)

    # ---- FFN: one streamed FF chunk per grid step, accumulated in VMEM -----
    h1b = h1_scr[...].astype(jnp.bfloat16)
    inter = jnp.dot(h1b, wi_ref[0],
                    preferred_element_type=jnp.float32) + bi_ref[0]
    # TODO(synk): BERT uses erf-based GELU; tanh approximation used here.
    inter = 0.5 * inter * (1.0 + jnp.tanh(
        0.7978845608028654 * (inter + 0.044715 * inter * inter * inter)))
    acc_scr[...] += jnp.dot(inter.astype(jnp.bfloat16), wo2_ref[0],
                            preferred_element_type=jnp.float32)

    # ---- layer epilogue: FFN bias + residual + second LayerNorm ------------
    @pl.when(chunk == n_chunks - 1)
    def _():
        out = layer_norm(acc_scr[...] + bo2_ref[0] + h1_scr[...],
                         ln2g_ref, ln2b_ref)
        o_ref[...] = out.reshape(B, S, H)                # carry to next layer


def _vmem_limit(B, S, H, FF, ff_chunk, num_heads):
    bf2, f4 = 2, 4
    # per-step weight blocks, double-buffered along the grid
    attn_w = (4 * H * H + 8 * H) * bf2
    ffn_w = (H * ff_chunk + ff_chunk + ff_chunk * H + 3 * H) * bf2
    weights = 2 * (attn_w + ffn_w)
    # grid-invariant operands + resident output + scratch
    resident = ((2 * B * S * H + S * H) * bf2 + num_heads * B * S * f4
                + 3 * B * S * H * f4)
    # transient activations (q/k/v/ctx, scores, FF chunk)
    transient = (5 * B * S * H + num_heads * B * S * S
                 + 2 * B * S * ff_chunk) * f4
    need = weights + resident + transient + (4 << 20)
    cap = 64 << 20                                      # conservative fallback
    try:
        cap = int(pltpu.get_tpu_info().vmem_capacity_bytes * 0.85)
    except Exception:
        pass
    return int(max(16 << 20, min(cap, need)))


def bert_forward(params, x, segs, mask, num_heads, ff_chunk):
    B, S = x.shape
    H = params["word_emb"].shape[-1]
    enc = params["enc"]
    L = enc["wq"].shape[0]
    FF = enc["wi"].shape[-1]
    ff_chunk = min(ff_chunk, FF)
    assert FF % ff_chunk == 0 and ff_chunk % 128 == 0
    assert H % num_heads == 0
    n_chunks = FF // ff_chunk
    nh, hd = num_heads, H // num_heads

    # Glue: embedding-table gathers (bf16 tables) and the additive attention
    # bias, hoisted out of the kernel (computed once, not once per layer).
    word_e = jnp.take(params["word_emb"], x, axis=0)          # (B, S, H) bf16
    pos_e = params["pos_emb"][:S][None]                       # (1, S, H) bf16
    type_e = jnp.take(params["type_emb"], segs, axis=0)       # (B, S, H) bf16
    bias = (1.0 - mask.astype(jnp.float32)) * -10000.0        # (B, S)
    bias = jnp.broadcast_to(bias[None, :, None, :], (nh, B, 1, S))
    bias = bias.reshape(nh * B, 1, S)                         # head-major order

    def lmap(l, f): return (l, 0, 0)      # per-layer weights: one DMA per layer
    def wimap(l, f): return (l, 0, f)     # FF-chunked wi / bi
    def womap(l, f): return (l, f, 0)     # FF-chunked wo2
    def cmap(l, f): return (0, 0, 0)      # grid-invariant rank-3 operands
    def cmap2(l, f): return (0, 0)

    in_specs = [
        pl.BlockSpec((B, S, H), cmap),               # word embeddings
        pl.BlockSpec((1, S, H), cmap),               # position embeddings
        pl.BlockSpec((B, S, H), cmap),               # token-type embeddings
        pl.BlockSpec((1, H), cmap2),                 # embedding LN gamma
        pl.BlockSpec((1, H), cmap2),                 # embedding LN beta
        pl.BlockSpec((nh * B, 1, S), cmap),          # attention bias
        pl.BlockSpec((1, H, H), lmap),               # wq
        pl.BlockSpec((1, 1, H), lmap),               # bq
        pl.BlockSpec((1, H, H), lmap),               # wk
        pl.BlockSpec((1, 1, H), lmap),               # bk
        pl.BlockSpec((1, H, H), lmap),               # wv
        pl.BlockSpec((1, 1, H), lmap),               # bv
        pl.BlockSpec((1, H, H), lmap),               # wo
        pl.BlockSpec((1, 1, H), lmap),               # bo
        pl.BlockSpec((1, 1, H), lmap),               # ln1 gamma
        pl.BlockSpec((1, 1, H), lmap),               # ln1 beta
        pl.BlockSpec((1, H, ff_chunk), wimap),       # wi chunk
        pl.BlockSpec((1, 1, ff_chunk), wimap),       # bi chunk
        pl.BlockSpec((1, ff_chunk, H), womap),       # wo2 chunk
        pl.BlockSpec((1, 1, H), lmap),               # bo2
        pl.BlockSpec((1, 1, H), lmap),               # ln2 gamma
        pl.BlockSpec((1, 1, H), lmap),               # ln2 beta
    ]
    operands = [
        word_e, pos_e, type_e, params["emb_ln_g"], params["emb_ln_b"], bias,
        enc["wq"], enc["bq"], enc["wk"], enc["bk"], enc["wv"], enc["bv"],
        enc["wo"], enc["bo"], enc["ln1_g"], enc["ln1_b"],
        enc["wi"], enc["bi"], enc["wo2"], enc["bo2"], enc["ln2_g"], enc["ln2_b"],
    ]

    kernel = functools.partial(_bert_kernel, num_heads=nh, head_dim=hd)
    return pl.pallas_call(
        kernel,
        out_shape=jax.ShapeDtypeStruct((B, S, H), jnp.float32),
        grid=(L, n_chunks),
        in_specs=in_specs,
        out_specs=pl.BlockSpec((B, S, H), cmap),     # resident carry, 1 writeback
        scratch_shapes=[pltpu.VMEM((B * S, H), jnp.float32),   # post-attn LN
                        pltpu.VMEM((B * S, H), jnp.float32)],  # FFN accumulator
        compiler_params=pltpu.CompilerParams(
            dimension_semantics=("arbitrary", "arbitrary"),
            vmem_limit_bytes=_vmem_limit(B, S, H, FF, ff_chunk, nh)),
    )(*operands)


# ----------------------------------------------------------------------------
# Kernel 2: Classifier — mask, Linear(H, 1), sigmoid, mask over the flattened
#           (B*n, H) CLS rows; single grid step (CLS rows gathered in glue).
# ----------------------------------------------------------------------------
def _classifier_kernel(sv_ref, m_ref, w_ref, b_ref, o_ref):
    masked = sv_ref[...] * m_ref[...]                         # (B*n, H)
    logit = jnp.dot(masked, w_ref[...],
                    preferred_element_type=jnp.float32) + b_ref[...]
    o_ref[...] = jax.nn.sigmoid(logit) * m_ref[...]           # (B*n, 1)


def classifier(top_vec, clss, mask_cls, cls_w, cls_b):
    B, S, H = top_vec.shape
    n = clss.shape[1]
    # Glue gather: only the n CLS rows per batch reach the kernel.
    sents_vec = jnp.take_along_axis(
        top_vec, clss[:, :, None].astype(jnp.int32), axis=1)  # (B, n, H)
    sv = sents_vec.reshape(B * n, H)
    m = mask_cls.astype(jnp.float32).reshape(B * n, 1)

    scores = pl.pallas_call(
        _classifier_kernel,
        out_shape=jax.ShapeDtypeStruct((B * n, 1), jnp.float32),
        grid=(1,),
        in_specs=[
            pl.BlockSpec((B * n, H), lambda i: (0, 0)),
            pl.BlockSpec((B * n, 1), lambda i: (0, 0)),
            pl.BlockSpec((H, 1), lambda i: (0, 0)),
            pl.BlockSpec((1, 1), lambda i: (0, 0)),
        ],
        out_specs=pl.BlockSpec((B * n, 1), lambda i: (0, 0)),
    )(sv, m, cls_w, cls_b)
    return scores.reshape(B, n)                               # squeeze(-1) equiv.


# ----------------------------------------------------------------------------
# Model glue
# ----------------------------------------------------------------------------
def summarizer_forward(params, x, segs, clss, mask, mask_cls,
                       num_heads, ff_chunk=256):
    top_vec = bert_forward(params, x, segs, mask, num_heads, ff_chunk)
    sent_scores = classifier(top_vec, clss, mask_cls,
                             params["cls_w"], params["cls_b"])
    return sent_scores, mask_cls


# ----------------------------------------------------------------------------
# Deterministic parameter init (synthetic; no checkpoint loading)
# ----------------------------------------------------------------------------
def init_params(key, vocab, hidden, n_layers, ff, max_pos, type_vocab):
    def rnd(k, shape, scale=0.02, dtype=jnp.bfloat16):
        return (jax.random.normal(k, shape, jnp.float32) * scale).astype(dtype)

    k = jax.random.split(key, 10)
    L, H = n_layers, hidden
    params = {
        "word_emb": rnd(k[0], (vocab, H)),
        "pos_emb": rnd(k[1], (max_pos, H)),
        "type_emb": rnd(k[2], (type_vocab, H)),
        "emb_ln_g": jnp.ones((1, H), jnp.float32),
        "emb_ln_b": jnp.zeros((1, H), jnp.float32),
        "enc": {
            "wq": rnd(k[3], (L, H, H)), "bq": jnp.zeros((L, 1, H), jnp.float32),
            "wk": rnd(k[4], (L, H, H)), "bk": jnp.zeros((L, 1, H), jnp.float32),
            "wv": rnd(k[5], (L, H, H)), "bv": jnp.zeros((L, 1, H), jnp.float32),
            "wo": rnd(k[6], (L, H, H)), "bo": jnp.zeros((L, 1, H), jnp.float32),
            "ln1_g": jnp.ones((L, 1, H), jnp.float32),
            "ln1_b": jnp.zeros((L, 1, H), jnp.float32),
            "wi": rnd(k[7], (L, H, ff)), "bi": jnp.zeros((L, 1, ff), jnp.float32),
            "wo2": rnd(k[8], (L, ff, H)), "bo2": jnp.zeros((L, 1, H), jnp.float32),
            "ln2_g": jnp.ones((L, 1, H), jnp.float32),
            "ln2_b": jnp.zeros((L, 1, H), jnp.float32),
        },
        # Classifier (args.param_init uniform init, emulated; kept f32).
        "cls_w": jax.random.uniform(k[9], (H, 1), jnp.float32, -0.1, 0.1),
        "cls_b": jnp.zeros((1, 1), jnp.float32),
    }
    return params


# ----------------------------------------------------------------------------
if __name__ == "__main__":
    B, S, H = 2, 16, 256
    N_LAYERS, HEADS, FF = 2, 2, 512       # head_dim = 128 (lane-aligned)
    FF_CHUNK = 256                        # 2 streamed FF chunks per layer
    VOCAB, MAX_POS, TYPE_VOCAB = 99, 64, 2
    N_SENTS = 4

    key = jax.random.PRNGKey(0)
    kp, kx = jax.random.split(key)
    params = init_params(kp, VOCAB, H, N_LAYERS, FF, MAX_POS, TYPE_VOCAB)

    x = jax.random.randint(kx, (B, S), 0, VOCAB, dtype=jnp.int32)
    segs = jnp.concatenate([jnp.zeros((B, S // 2), jnp.int32),
                            jnp.ones((B, S // 2), jnp.int32)], axis=1)
    clss = jnp.array([[0, 3, 7, 12], [0, 4, 9, 13]], jnp.int32)
    mask = jnp.array([[1.0] * S, [1.0] * (S - 2) + [0.0] * 2], jnp.float32)
    mask_cls = jnp.array([[1.0, 1.0, 1.0, 1.0], [1.0, 1.0, 1.0, 0.0]], jnp.float32)

    sent_scores, mask_cls_out = summarizer_forward(
        params, x, segs, clss, mask, mask_cls,
        num_heads=HEADS, ff_chunk=FF_CHUNK)
    jax.block_until_ready(sent_scores)
    assert sent_scores.shape == (B, N_SENTS)
    assert mask_cls_out.shape == (B, N_SENTS)
    assert bool(jnp.all(jnp.isfinite(sent_scores)))
    print("KERNEL_OK")
</pallas_src>

<mosaic_0001>
module attributes {stable_mosaic.version = 11 : i64} {
  func.func @_bert_kernel(%arg0: i32, %arg1: i32, %arg2: memref<2x16x256xbf16, #tpu.memory_space<vmem>>, %arg3: memref<1x16x256xbf16, #tpu.memory_space<vmem>>, %arg4: memref<2x16x256xbf16, #tpu.memory_space<vmem>>, %arg5: memref<1x256xf32, #tpu.memory_space<vmem>>, %arg6: memref<1x256xf32, #tpu.memory_space<vmem>>, %arg7: memref<4x1x16xf32, #tpu.memory_space<vmem>>, %arg8: memref<1x256x256xbf16, #tpu.memory_space<vmem>>, %arg9: memref<1x1x256xf32, #tpu.memory_space<vmem>>, %arg10: memref<1x256x256xbf16, #tpu.memory_space<vmem>>, %arg11: memref<1x1x256xf32, #tpu.memory_space<vmem>>, %arg12: memref<1x256x256xbf16, #tpu.memory_space<vmem>>, %arg13: memref<1x1x256xf32, #tpu.memory_space<vmem>>, %arg14: memref<1x256x256xbf16, #tpu.memory_space<vmem>>, %arg15: memref<1x1x256xf32, #tpu.memory_space<vmem>>, %arg16: memref<1x1x256xf32, #tpu.memory_space<vmem>>, %arg17: memref<1x1x256xf32, #tpu.memory_space<vmem>>, %arg18: memref<1x256x256xbf16, #tpu.memory_space<vmem>>, %arg19: memref<1x1x256xf32, #tpu.memory_space<vmem>>, %arg20: memref<1x256x256xbf16, #tpu.memory_space<vmem>>, %arg21: memref<1x1x256xf32, #tpu.memory_space<vmem>>, %arg22: memref<1x1x256xf32, #tpu.memory_space<vmem>>, %arg23: memref<1x1x256xf32, #tpu.memory_space<vmem>>, %arg24: memref<2x16x256xf32, #tpu.memory_space<vmem>>, %arg25: memref<32x256xf32, #tpu.memory_space<vmem>>, %arg26: memref<32x256xf32, #tpu.memory_space<vmem>>) attributes {dimension_semantics = [#tpu.dimension_semantics<arbitrary>, #tpu.dimension_semantics<arbitrary>], iteration_bounds = array<i64: 2, 2>, scalar_prefetch = 0 : i64, scratch_operands = 2 : i64, tpu.core_type = #tpu.core_type<tc>, window_params = [{pipeline_mode = #tpu.pipeline_mode<synchronous>, transform_indices = @transform_0, window_bounds = array<i64: 2, 16, 256>}, {pipeline_mode = #tpu.pipeline_mode<synchronous>, transform_indices = @transform_1, window_bounds = array<i64: 1, 16, 256>}, {pipeline_mode = #tpu.pipeline_mode<synchronous>, transform_indices = @transform_2, window_bounds = array<i64: 2, 16, 256>}, {pipeline_mode = #tpu.pipeline_mode<synchronous>, transform_indices = @transform_3, window_bounds = array<i64: 1, 256>}, {pipeline_mode = #tpu.pipeline_mode<synchronous>, transform_indices = @transform_4, window_bounds = array<i64: 1, 256>}, {pipeline_mode = #tpu.pipeline_mode<synchronous>, transform_indices = @transform_5, window_bounds = array<i64: 4, 1, 16>}, {transform_indices = @transform_6, window_bounds = array<i64: 1, 256, 256>}, {transform_indices = @transform_7, window_bounds = array<i64: 1, 1, 256>}, {transform_indices = @transform_8, window_bounds = array<i64: 1, 256, 256>}, {transform_indices = @transform_9, window_bounds = array<i64: 1, 1, 256>}, {transform_indices = @transform_10, window_bounds = array<i64: 1, 256, 256>}, {transform_indices = @transform_11, window_bounds = array<i64: 1, 1, 256>}, {transform_indices = @transform_12, window_bounds = array<i64: 1, 256, 256>}, {transform_indices = @transform_13, window_bounds = array<i64: 1, 1, 256>}, {transform_indices = @transform_14, window_bounds = array<i64: 1, 1, 256>}, {transform_indices = @transform_15, window_bounds = array<i64: 1, 1, 256>}, {transform_indices = @transform_16, window_bounds = array<i64: 1, 256, 256>}, {transform_indices = @transform_17, window_bounds = array<i64: 1, 1, 256>}, {transform_indices = @transform_18, window_bounds = array<i64: 1, 256, 256>}, {transform_indices = @transform_19, window_bounds = array<i64: 1, 1, 256>}, {transform_indices = @transform_20, window_bounds = array<i64: 1, 1, 256>}, {transform_indices = @transform_21, window_bounds = array<i64: 1, 1, 256>}, {pipeline_mode = #tpu.pipeline_mode<synchronous>, transform_indices = @transform_22, window_bounds = array<i64: 2, 16, 256>}]} {
    %c0_i32 = arith.constant 0 : i32
    %0 = arith.cmpi eq, %arg0, %c0_i32 : i32
    %c0_i32_0 = arith.constant 0 : i32
    %1 = arith.cmpi eq, %arg1, %c0_i32_0 : i32
    %2 = arith.andi %0, %1 : i1
    %3 = arith.extui %2 : i1 to i32
    %c0_i32_1 = arith.constant 0 : i32
    %4 = arith.cmpi ne, %3, %c0_i32_1 : i32
    scf.if %4 {
      %c0_24 = arith.constant 0 : index
      %c0_25 = arith.constant 0 : index
      %c0_26 = arith.constant 0 : index
      %40 = vector.load %arg2[%c0_24, %c0_25, %c0_26] : memref<2x16x256xbf16, #tpu.memory_space<vmem>>, vector<2x16x256xbf16>
      %41 = arith.extf %40 : vector<2x16x256xbf16> to vector<2x16x256xf32>
      %c0_27 = arith.constant 0 : index
      %c0_28 = arith.constant 0 : index
      %c0_29 = arith.constant 0 : index
      %42 = vector.load %arg3[%c0_27, %c0_28, %c0_29] : memref<1x16x256xbf16, #tpu.memory_space<vmem>>, vector<1x16x256xbf16>
      %43 = arith.extf %42 : vector<1x16x256xbf16> to vector<1x16x256xf32>
      %44 = vector.broadcast %43 : vector<1x16x256xf32> to vector<2x16x256xf32>
      %45 = arith.addf %41, %44 : vector<2x16x256xf32>
      %c0_30 = arith.constant 0 : index
      %c0_31 = arith.constant 0 : index
      %c0_32 = arith.constant 0 : index
      %46 = vector.load %arg4[%c0_30, %c0_31, %c0_32] : memref<2x16x256xbf16, #tpu.memory_space<vmem>>, vector<2x16x256xbf16>
      %47 = arith.extf %46 : vector<2x16x256xbf16> to vector<2x16x256xf32>
      %48 = arith.addf %45, %47 : vector<2x16x256xf32>
      %cst_33 = arith.constant dense<0.000000e+00> : vector<2x16xf32>
      %49 = vector.multi_reduction <add>, %48, %cst_33 [2] : vector<2x16x256xf32> to vector<2x16xf32>
      %50 = vector.shape_cast %49 : vector<2x16xf32> to vector<2x16x1xf32>
      %cst_34 = arith.constant 2.560000e+02 : f32
      %51 = vector.broadcast %cst_34 : f32 to vector<2x16x1xf32>
      %52 = arith.divf %50, %51 : vector<2x16x1xf32>
      %53 = vector.broadcast %52 : vector<2x16x1xf32> to vector<2x16x256xf32>
      %54 = arith.subf %48, %53 : vector<2x16x256xf32>
      %55 = arith.mulf %54, %54 : vector<2x16x256xf32>
      %cst_35 = arith.constant dense<0.000000e+00> : vector<2x16xf32>
      %56 = vector.multi_reduction <add>, %55, %cst_35 [2] : vector<2x16x256xf32> to vector<2x16xf32>
      %57 = vector.shape_cast %56 : vector<2x16xf32> to vector<2x16x1xf32>
      %cst_36 = arith.constant 2.560000e+02 : f32
      %58 = vector.broadcast %cst_36 : f32 to vector<2x16x1xf32>
      %59 = arith.divf %57, %58 : vector<2x16x1xf32>
      %60 = vector.broadcast %52 : vector<2x16x1xf32> to vector<2x16x256xf32>
      %61 = arith.subf %48, %60 : vector<2x16x256xf32>
      %cst_37 = arith.constant 9.99999996E-13 : f32
      %62 = vector.broadcast %cst_37 : f32 to vector<2x16x1xf32>
      %63 = arith.addf %59, %62 : vector<2x16x1xf32>
      %64 = math.rsqrt %63 : vector<2x16x1xf32>
      %65 = vector.broadcast %64 : vector<2x16x1xf32> to vector<2x16x256xf32>
      %66 = arith.mulf %61, %65 : vector<2x16x256xf32>
      %c0_38 = arith.constant 0 : index
      %c0_39 = arith.constant 0 : index
      %67 = vector.load %arg5[%c0_38, %c0_39] : memref<1x256xf32, #tpu.memory_space<vmem>>, vector<1x256xf32>
      %68 = vector.shape_cast %67 : vector<1x256xf32> to vector<1x1x256xf32>
      %69 = vector.broadcast %68 : vector<1x1x256xf32> to vector<2x16x256xf32>
      %70 = arith.mulf %66, %69 : vector<2x16x256xf32>
      %c0_40 = arith.constant 0 : index
      %c0_41 = arith.constant 0 : index
      %71 = vector.load %arg6[%c0_40, %c0_41] : memref<1x256xf32, #tpu.memory_space<vmem>>, vector<1x256xf32>
      %72 = vector.shape_cast %71 : vector<1x256xf32> to vector<1x1x256xf32>
      %73 = vector.broadcast %72 : vector<1x1x256xf32> to vector<2x16x256xf32>
      %74 = arith.addf %70, %73 : vector<2x16x256xf32>
      %c0_42 = arith.constant 0 : index
      %c0_43 = arith.constant 0 : index
      %c0_44 = arith.constant 0 : index
      %75 = vector.load %arg24[%c0_42, %c0_43, %c0_44] : memref<2x16x256xf32, #tpu.memory_space<vmem>>, vector<2x16x256xf32>
      tpu.vector_store %arg24[%c0_42, %c0_43, %c0_44], %74 {strides = array<i32>} : memref<2x16x256xf32, #tpu.memory_space<vmem>>, vector<2x16x256xf32>,
    } else {
    }
    %c0_i32_2 = arith.constant 0 : i32
    %5 = arith.cmpi eq, %arg1, %c0_i32_2 : i32
    %6 = arith.extui %5 : i1 to i32
    %c0_i32_3 = arith.constant 0 : i32
    %7 = arith.cmpi ne, %6, %c0_i32_3 : i32
    scf.if %7 {
      %c0_24 = arith.constant 0 : index
      %c0_25 = arith.constant 0 : index
      %c0_26 = arith.constant 0 : index
      %40 = vector.load %arg24[%c0_24, %c0_25, %c0_26] : memref<2x16x256xf32, #tpu.memory_space<vmem>>, vector<2x16x256xf32>
      %41 = vector.shape_cast %40 : vector<2x16x256xf32> to vector<32x256xf32>
      %42 = arith.truncf %41 : vector<32x256xf32> to vector<32x256xbf16>
      %c0_27 = arith.constant 0 : index
      %c0_28 = arith.constant 0 : index
      %c0_29 = arith.constant 0 : index
      %43 = vector.load %arg8[%c0_27, %c0_28, %c0_29] : memref<1x256x256xbf16, #tpu.memory_space<vmem>>, vector<1x256x256xbf16>
      %44 = vector.shape_cast %43 : vector<1x256x256xbf16> to vector<256x256xbf16>
      %cst_30 = arith.constant dense<0.000000e+00> : vector<32x256xf32>
      %45 = tpu.matmul %42, %44, %cst_30 {dimension_numbers = #tpu.dot_dimension_numbers<[1], [0], [0], [1], [0, 0, 1, 1], [], []>} : vector<32x256xbf16>, vector<256x256xbf16>, vector<32x256xf32> -> vector<32x256xf32>
      %c0_31 = arith.constant 0 : index
      %c0_32 = arith.constant 0 : index
      %c0_33 = arith.constant 0 : index
      %46 = vector.load %arg9[%c0_31, %c0_32, %c0_33] : memref<1x1x256xf32, #tpu.memory_space<vmem>>, vector<1x1x256xf32>
      %47 = vector.shape_cast %46 : vector<1x1x256xf32> to vector<1x256xf32>
      %48 = vector.broadcast %47 : vector<1x256xf32> to vector<32x256xf32>
      %49 = arith.addf %45, %48 : vector<32x256xf32>
      %c0_34 = arith.constant 0 : index
      %c0_35 = arith.constant 0 : index
      %c0_36 = arith.constant 0 : index
      %50 = vector.load %arg10[%c0_34, %c0_35, %c0_36] : memref<1x256x256xbf16, #tpu.memory_space<vmem>>, vector<1x256x256xbf16>
      %51 = vector.shape_cast %50 : vector<1x256x256xbf16> to vector<256x256xbf16>
      %cst_37 = arith.constant dense<0.000000e+00> : vector<32x256xf32>
      %52 = tpu.matmul %42, %51, %cst_37 {dimension_numbers = #tpu.dot_dimension_numbers<[1], [0], [0], [1], [0, 0, 1, 1], [], []>} : vector<32x256xbf16>, vector<256x256xbf16>, vector<32x256xf32> -> vector<32x256xf32>
      %c0_38 = arith.constant 0 : index
      %c0_39 = arith.constant 0 : index
      %c0_40 = arith.constant 0 : index
      %53 = vector.load %arg11[%c0_38, %c0_39, %c0_40] : memref<1x1x256xf32, #tpu.memory_space<vmem>>, vector<1x1x256xf32>
      %54 = vector.shape_cast %53 : vector<1x1x256xf32> to vector<1x256xf32>
      %55 = vector.broadcast %54 : vector<1x256xf32> to vector<32x256xf32>
      %56 = arith.addf %52, %55 : vector<32x256xf32>
      %c0_41 = arith.constant 0 : index
      %c0_42 = arith.constant 0 : index
      %c0_43 = arith.constant 0 : index
      %57 = vector.load %arg12[%c0_41, %c0_42, %c0_43] : memref<1x256x256xbf16, #tpu.memory_space<vmem>>, vector<1x256x256xbf16>
      %58 = vector.shape_cast %57 : vector<1x256x256xbf16> to vector<256x256xbf16>
      %cst_44 = arith.constant dense<0.000000e+00> : vector<32x256xf32>
      %59 = tpu.matmul %42, %58, %cst_44 {dimension_numbers = #tpu.dot_dimension_numbers<[1], [0], [0], [1], [0, 0, 1, 1], [], []>} : vector<32x256xbf16>, vector<256x256xbf16>, vector<32x256xf32> -> vector<32x256xf32>
      %c0_45 = arith.constant 0 : index
      %c0_46 = arith.constant 0 : index
      %c0_47 = arith.constant 0 : index
      %60 = vector.load %arg13[%c0_45, %c0_46, %c0_47] : memref<1x1x256xf32, #tpu.memory_space<vmem>>, vector<1x1x256xf32>
      %61 = vector.shape_cast %60 : vector<1x1x256xf32> to vector<1x256xf32>
      %62 = vector.broadcast %61 : vector<1x256xf32> to vector<32x256xf32>
      %63 = arith.addf %59, %62 : vector<32x256xf32>
      %64 = arith.truncf %49 : vector<32x256xf32> to vector<32x256xbf16>
      %65 = vector.shape_cast %64 : vector<32x256xbf16> to vector<2x16x256xbf16>
      %66 = vector.extract_strided_slice %65 {offsets = [0, 0, 0], sizes = [2, 16, 128], strides = [1, 1, 1]} : vector<2x16x256xbf16> to vector<2x16x128xbf16>
      %67 = vector.extract_strided_slice %65 {offsets = [0, 0, 128], sizes = [2, 16, 128], strides = [1, 1, 1]} : vector<2x16x256xbf16> to vector<2x16x128xbf16>
      %68 = tpu.concatenate %66, %67 in 0 : vector<2x16x128xbf16>, vector<2x16x128xbf16> -> vector<4x16x128xbf16>
      %69 = arith.truncf %56 : vector<32x256xf32> to vector<32x256xbf16>
      %70 = vector.shape_cast %69 : vector<32x256xbf16> to vector<2x16x256xbf16>
      %71 = vector.extract_strided_slice %70 {offsets = [0, 0, 0], sizes = [2, 16, 128], strides = [1, 1, 1]} : vector<2x16x256xbf16> to vector<2x16x128xbf16>
      %72 = vector.extract_strided_slice %70 {offsets = [0, 0, 128], sizes = [2, 16, 128], strides = [1, 1, 1]} : vector<2x16x256xbf16> to vector<2x16x128xbf16>
      %73 = tpu.concatenate %71, %72 in 0 : vector<2x16x128xbf16>, vector<2x16x128xbf16> -> vector<4x16x128xbf16>
      %74 = arith.truncf %63 : vector<32x256xf32> to vector<32x256xbf16>
      %75 = vector.shape_cast %74 : vector<32x256xbf16> to vector<2x16x256xbf16>
      %76 = vector.extract_strided_slice %75 {offsets = [0, 0, 0], sizes = [2, 16, 128], strides = [1, 1, 1]} : vector<2x16x256xbf16> to vector<2x16x128xbf16>
      %77 = vector.extract_strided_slice %75 {offsets = [0, 0, 128], sizes = [2, 16, 128], strides = [1, 1, 1]} : vector<2x16x256xbf16> to vector<2x16x128xbf16>
      %78 = tpu.concatenate %76, %77 in 0 : vector<2x16x128xbf16>, vector<2x16x128xbf16> -> vector<4x16x128xbf16>
      "tpu.trace_start"() <{level = 10 : i32, message = "hqd,hkd->hqk"}> : () -> ()
      %cst_48 = arith.constant dense<0.000000e+00> : vector<4x16x16xf32>
      %79 = tpu.matmul %68, %73, %cst_48 {dimension_numbers = #tpu.dot_dimension_numbers<[2], [2], [1], [1], [0, 0, 0, 1, 1, 1], [0], [0]>} : vector<4x16x128xbf16>, vector<4x16x128xbf16>, vector<4x16x16xf32> -> vector<4x16x16xf32>
      "tpu.trace_stop"() : () -> ()
      %cst_49 = arith.constant 0.0883883461 : f32
      %80 = vector.broadcast %cst_49 : f32 to vector<4x16x16xf32>
      %81 = arith.mulf %79, %80 : vector<4x16x16xf32>
      %c0_50 = arith.constant 0 : index
      %c0_51 = arith.constant 0 : index
      %c0_52 = arith.constant 0 : index
      %82 = vector.load %arg7[%c0_50, %c0_51, %c0_52] : memref<4x1x16xf32, #tpu.memory_space<vmem>>, vector<4x1x16xf32>
      %83 = vector.broadcast %82 : vector<4x1x16xf32> to vector<4x16x16xf32>
      %84 = arith.addf %81, %83 : vector<4x16x16xf32>
      %cst_53 = arith.constant dense<0xFF800000> : vector<4x16xf32>
      %85 = vector.multi_reduction <maximumf>, %84, %cst_53 [2] : vector<4x16x16xf32> to vector<4x16xf32>
      %86 = vector.shape_cast %85 : vector<4x16xf32> to vector<4x16x1xf32>
      %87 = vector.broadcast %86 : vector<4x16x1xf32> to vector<4x16x16xf32>
      %88 = arith.subf %84, %87 : vector<4x16x16xf32>
      %89 = math.exp %88 : vector<4x16x16xf32>
      %cst_54 = arith.constant dense<0.000000e+00> : vector<4x16xf32>
      %90 = vector.multi_reduction <add>, %89, %cst_54 [2] : vector<4x16x16xf32> to vector<4x16xf32>
      %91 = vector.shape_cast %90 : vector<4x16xf32> to vector<4x16x1xf32>
      %92 = tpu.reciprocal %91 {approx = true} : vector<4x16x1xf32> -> vector<4x16x1xf32>
      %93 = vector.broadcast %92 : vector<4x16x1xf32> to vector<4x16x16xf32>
      %94 = arith.mulf %89, %93 : vector<4x16x16xf32>
      %95 = arith.truncf %94 : vector<4x16x16xf32> to vector<4x16x16xbf16>
      "tpu.trace_start"() <{level = 10 : i32, message = "hqk,hkd->hqd"}> : () -> ()
      %cst_55 = arith.constant dense<0.000000e+00> : vector<4x16x128xf32>
      %96 = tpu.matmul %95, %78, %cst_55 {dimension_numbers = #tpu.dot_dimension_numbers<[2], [1], [1], [2], [0, 0, 0, 1, 1, 2], [0], [0]>} : vector<4x16x16xbf16>, vector<4x16x128xbf16>, vector<4x16x128xf32> -> vector<4x16x128xf32>
      "tpu.trace_stop"() : () -> ()
      %97 = vector.extract_strided_slice %96 {offsets = [0, 0, 0], sizes = [2, 16, 128], strides = [1, 1, 1]} : vector<4x16x128xf32> to vector<2x16x128xf32>
      %98 = vector.extract_strided_slice %96 {offsets = [2, 0, 0], sizes = [2, 16, 128], strides = [1, 1, 1]} : vector<4x16x128xf32> to vector<2x16x128xf32>
      %99 = tpu.concatenate %97, %98 in 2 : vector<2x16x128xf32>, vector<2x16x128xf32> -> vector<2x16x256xf32>
      %100 = vector.shape_cast %99 : vector<2x16x256xf32> to vector<32x256xf32>
      %101 = arith.truncf %100 : vector<32x256xf32> to vector<32x256xbf16>
      %c0_56 = arith.constant 0 : index
      %c0_57 = arith.constant 0 : index
      %c0_58 = arith.constant 0 : index
      %102 = vector.load %arg14[%c0_56, %c0_57, %c0_58] : memref<1x256x256xbf16, #tpu.memory_space<vmem>>, vector<1x256x256xbf16>
      %103 = vector.shape_cast %102 : vector<1x256x256xbf16> to vector<256x256xbf16>
      %cst_59 = arith.constant dense<0.000000e+00> : vector<32x256xf32>
      %104 = tpu.matmul %101, %103, %cst_59 {dimension_numbers = #tpu.dot_dimension_numbers<[1], [0], [0], [1], [0, 0, 1, 1], [], []>} : vector<32x256xbf16>, vector<256x256xbf16>, vector<32x256xf32> -> vector<32x256xf32>
      %c0_60 = arith.constant 0 : index
      %c0_61 = arith.constant 0 : index
      %c0_62 = arith.constant 0 : index
      %105 = vector.load %arg15[%c0_60, %c0_61, %c0_62] : memref<1x1x256xf32, #tpu.memory_space<vmem>>, vector<1x1x256xf32>
      %106 = vector.shape_cast %105 : vector<1x1x256xf32> to vector<1x256xf32>
      %107 = vector.broadcast %106 : vector<1x256xf32> to vector<32x256xf32>
      %108 = arith.addf %104, %107 : vector<32x256xf32>
      %109 = arith.addf %108, %41 : vector<32x256xf32>
      %cst_63 = arith.constant dense<0.000000e+00> : vector<32xf32>
      %110 = vector.multi_reduction <add>, %109, %cst_63 [1] : vector<32x256xf32> to vector<32xf32>
      %111 = vector.shape_cast %110 : vector<32xf32> to vector<32x1xf32>
      %cst_64 = arith.constant 2.560000e+02 : f32
      %112 = vector.broadcast %cst_64 : f32 to vector<32x1xf32>
      %113 = arith.divf %111, %112 : vector<32x1xf32>
      %114 = vector.broadcast %113 : vector<32x1xf32> to vector<32x256xf32>
      %115 = arith.subf %109, %114 : vector<32x256xf32>
      %116 = arith.mulf %115, %115 : vector<32x256xf32>
      %cst_65 = arith.constant dense<0.000000e+00> : vector<32xf32>
      %117 = vector.multi_reduction <add>, %116, %cst_65 [1] : vector<32x256xf32> to vector<32xf32>
      %118 = vector.shape_cast %117 : vector<32xf32> to vector<32x1xf32>
      %cst_66 = arith.constant 2.560000e+02 : f32
      %119 = vector.broadcast %cst_66 : f32 to vector<32x1xf32>
      %120 = arith.divf %118, %119 : vector<32x1xf32>
      %121 = vector.broadcast %113 : vector<32x1xf32> to vector<32x256xf32>
      %122 = arith.subf %109, %121 : vector<32x256xf32>
      %cst_67 = arith.constant 9.99999996E-13 : f32
      %123 = vector.broadcast %cst_67 : f32 to vector<32x1xf32>
      %124 = arith.addf %120, %123 : vector<32x1xf32>
      %125 = math.rsqrt %124 : vector<32x1xf32>
      %126 = vector.broadcast %125 : vector<32x1xf32> to vector<32x256xf32>
      %127 = arith.mulf %122, %126 : vector<32x256xf32>
      %c0_68 = arith.constant 0 : index
      %c0_69 = arith.constant 0 : index
      %c0_70 = arith.constant 0 : index
      %128 = vector.load %arg16[%c0_68, %c0_69, %c0_70] : memref<1x1x256xf32, #tpu.memory_space<vmem>>, vector<1x1x256xf32>
      %129 = vector.shape_cast %128 : vector<1x1x256xf32> to vector<1x256xf32>
      %130 = vector.broadcast %129 : vector<1x256xf32> to vector<32x256xf32>
      %131 = arith.mulf %127, %130 : vector<32x256xf32>
      %c0_71 = arith.constant 0 : index
      %c0_72 = arith.constant 0 : index
      %c0_73 = arith.constant 0 : index
      %132 = vector.load %arg17[%c0_71, %c0_72, %c0_73] : memref<1x1x256xf32, #tpu.memory_space<vmem>>, vector<1x1x256xf32>
      %133 = vector.shape_cast %132 : vector<1x1x256xf32> to vector<1x256xf32>
      %134 = vector.broadcast %133 : vector<1x256xf32> to vector<32x256xf32>
      %135 = arith.addf %131, %134 : vector<32x256xf32>
      %c0_74 = arith.constant 0 : index
      %c0_75 = arith.constant 0 : index
      %136 = vector.load %arg25[%c0_74, %c0_75] : memref<32x256xf32, #tpu.memory_space<vmem>>, vector<32x256xf32>
      tpu.vector_store %arg25[%c0_74, %c0_75], %135 {strides = array<i32>} : memref<32x256xf32, #tpu.memory_space<vmem>>, vector<32x256xf32>,
      %cst_76 = arith.constant 0.000000e+00 : f32
      %137 = vector.broadcast %cst_76 : f32 to vector<32x256xf32>
      %c0_77 = arith.constant 0 : index
      %c0_78 = arith.constant 0 : index
      %138 = vector.load %arg26[%c0_77, %c0_78] : memref<32x256xf32, #tpu.memory_space<vmem>>, vector<32x256xf32>
      tpu.vector_store %arg26[%c0_77, %c0_78], %137 {strides = array<i32>} : memref<32x256xf32, #tpu.memory_space<vmem>>, vector<32x256xf32>,
    } else {
    }
    %c0 = arith.constant 0 : index
    %c0_4 = arith.constant 0 : index
    %8 = vector.load %arg25[%c0, %c0_4] : memref<32x256xf32, #tpu.memory_space<vmem>>, vector<32x256xf32>
    %9 = arith.truncf %8 : vector<32x256xf32> to vector<32x256xbf16>
    %c0_5 = arith.constant 0 : index
    %c0_6 = arith.constant 0 : index
    %c0_7 = arith.constant 0 : index
    %10 = vector.load %arg18[%c0_5, %c0_6, %c0_7] : memref<1x256x256xbf16, #tpu.memory_space<vmem>>, vector<1x256x256xbf16>
    %11 = vector.shape_cast %10 : vector<1x256x256xbf16> to vector<256x256xbf16>
    %cst = arith.constant dense<0.000000e+00> : vector<32x256xf32>
    %12 = tpu.matmul %9, %11, %cst {dimension_numbers = #tpu.dot_dimension_numbers<[1], [0], [0], [1], [0, 0, 1, 1], [], []>} : vector<32x256xbf16>, vector<256x256xbf16>, vector<32x256xf32> -> vector<32x256xf32>
    %c0_8 = arith.constant 0 : index
    %c0_9 = arith.constant 0 : index
    %c0_10 = arith.constant 0 : index
    %13 = vector.load %arg19[%c0_8, %c0_9, %c0_10] : memref<1x1x256xf32, #tpu.memory_space<vmem>>, vector<1x1x256xf32>
    %14 = vector.shape_cast %13 : vector<1x1x256xf32> to vector<1x256xf32>
    %15 = vector.broadcast %14 : vector<1x256xf32> to vector<32x256xf32>
    %16 = arith.addf %12, %15 : vector<32x256xf32>
    %cst_11 = arith.constant 5.000000e-01 : f32
    %17 = vector.broadcast %cst_11 : f32 to vector<32x256xf32>
    %18 = arith.mulf %17, %16 : vector<32x256xf32>
    %cst_12 = arith.constant 4.471500e-02 : f32
    %19 = vector.broadcast %cst_12 : f32 to vector<32x256xf32>
    %20 = arith.mulf %19, %16 : vector<32x256xf32>
    %21 = arith.mulf %20, %16 : vector<32x256xf32>
    %22 = arith.mulf %21, %16 : vector<32x256xf32>
    %23 = arith.addf %16, %22 : vector<32x256xf32>
    %cst_13 = arith.constant 0.797884583 : f32
    %24 = vector.broadcast %cst_13 : f32 to vector<32x256xf32>
    %25 = arith.mulf %24, %23 : vector<32x256xf32>
    %26 = math.tanh %25 : vector<32x256xf32>
    %cst_14 = arith.constant 1.000000e+00 : f32
    %27 = vector.broadcast %cst_14 : f32 to vector<32x256xf32>
    %28 = arith.addf %27, %26 : vector<32x256xf32>
    %29 = arith.mulf %18, %28 : vector<32x256xf32>
    %c0_15 = arith.constant 0 : index
    %c0_16 = arith.constant 0 : index
    %30 = vector.load %arg26[%c0_15, %c0_16] : memref<32x256xf32, #tpu.memory_space<vmem>>, vector<32x256xf32>
    %31 = arith.truncf %29 : vector<32x256xf32> to vector<32x256xbf16>
    %c0_17 = arith.constant 0 : index
    %c0_18 = arith.constant 0 : index
    %c0_19 = arith.constant 0 : index
    %32 = vector.load %arg20[%c0_17, %c0_18, %c0_19] : memref<1x256x256xbf16, #tpu.memory_space<vmem>>, vector<1x256x256xbf16>
    %33 = vector.shape_cast %32 : vector<1x256x256xbf16> to vector<256x256xbf16>
    %cst_20 = arith.constant dense<0.000000e+00> : vector<32x256xf32>
    %34 = tpu.matmul %31, %33, %cst_20 {dimension_numbers = #tpu.dot_dimension_numbers<[1], [0], [0], [1], [0, 0, 1, 1], [], []>} : vector<32x256xbf16>, vector<256x256xbf16>, vector<32x256xf32> -> vector<32x256xf32>
    %35 = arith.addf %30, %34 : vector<32x256xf32>
    %c0_21 = arith.constant 0 : index
    %c0_22 = arith.constant 0 : index
    %36 = vector.load %arg26[%c0_21, %c0_22] : memref<32x256xf32, #tpu.memory_space<vmem>>, vector<32x256xf32>
    tpu.vector_store %arg26[%c0_21, %c0_22], %35 {strides = array<i32>} : memref<32x256xf32, #tpu.memory_space<vmem>>, vector<32x256xf32>,
    %c1_i32 = arith.constant 1 : i32
    %37 = arith.cmpi eq, %arg1, %c1_i32 : i32
    %38 = arith.extui %37 : i1 to i32
    %c0_i32_23 = arith.constant 0 : i32
    %39 = arith.cmpi ne, %38, %c0_i32_23 : i32
    scf.if %39 {
      %c0_24 = arith.constant 0 : index
      %c0_25 = arith.constant 0 : index
      %40 = vector.load %arg26[%c0_24, %c0_25] : memref<32x256xf32, #tpu.memory_space<vmem>>, vector<32x256xf32>
      %c0_26 = arith.constant 0 : index
      %c0_27 = arith.constant 0 : index
      %c0_28 = arith.constant 0 : index
      %41 = vector.load %arg21[%c0_26, %c0_27, %c0_28] : memref<1x1x256xf32, #tpu.memory_space<vmem>>, vector<1x1x256xf32>
      %42 = vector.shape_cast %41 : vector<1x1x256xf32> to vector<1x256xf32>
      %43 = vector.broadcast %42 : vector<1x256xf32> to vector<32x256xf32>
      %44 = arith.addf %40, %43 : vector<32x256xf32>
      %c0_29 = arith.constant 0 : index
      %c0_30 = arith.constant 0 : index
      %45 = vector.load %arg25[%c0_29, %c0_30] : memref<32x256xf32, #tpu.memory_space<vmem>>, vector<32x256xf32>
      %46 = arith.addf %44, %45 : vector<32x256xf32>
      %cst_31 = arith.constant dense<0.000000e+00> : vector<32xf32>
      %47 = vector.multi_reduction <add>, %46, %cst_31 [1] : vector<32x256xf32> to vector<32xf32>
      %48 = vector.shape_cast %47 : vector<32xf32> to vector<32x1xf32>
      %cst_32 = arith.constant 2.560000e+02 : f32
      %49 = vector.broadcast %cst_32 : f32 to vector<32x1xf32>
      %50 = arith.divf %48, %49 : vector<32x1xf32>
      %51 = vector.broadcast %50 : vector<32x1xf32> to vector<32x256xf32>
      %52 = arith.subf %46, %51 : vector<32x256xf32>
      %53 = arith.mulf %52, %52 : vector<32x256xf32>
      %cst_33 = arith.constant dense<0.000000e+00> : vector<32xf32>
      %54 = vector.multi_reduction <add>, %53, %cst_33 [1] : vector<32x256xf32> to vector<32xf32>
      %55 = vector.shape_cast %54 : vector<32xf32> to vector<32x1xf32>
      %cst_34 = arith.constant 2.560000e+02 : f32
      %56 = vector.broadcast %cst_34 : f32 to vector<32x1xf32>
      %57 = arith.divf %55, %56 : vector<32x1xf32>
      %58 = vector.broadcast %50 : vector<32x1xf32> to vector<32x256xf32>
      %59 = arith.subf %46, %58 : vector<32x256xf32>
      %cst_35 = arith.constant 9.99999996E-13 : f32
      %60 = vector.broadcast %cst_35 : f32 to vector<32x1xf32>
      %61 = arith.addf %57, %60 : vector<32x1xf32>
      %62 = math.rsqrt %61 : vector<32x1xf32>
      %63 = vector.broadcast %62 : vector<32x1xf32> to vector<32x256xf32>
      %64 = arith.mulf %59, %63 : vector<32x256xf32>
      %c0_36 = arith.constant 0 : index
      %c0_37 = arith.constant 0 : index
      %c0_38 = arith.constant 0 : index
      %65 = vector.load %arg22[%c0_36, %c0_37, %c0_38] : memref<1x1x256xf32, #tpu.memory_space<vmem>>, vector<1x1x256xf32>
      %66 = vector.shape_cast %65 : vector<1x1x256xf32> to vector<1x256xf32>
      %67 = vector.broadcast %66 : vector<1x256xf32> to vector<32x256xf32>
      %68 = arith.mulf %64, %67 : vector<32x256xf32>
      %c0_39 = arith.constant 0 : index
      %c0_40 = arith.constant 0 : index
      %c0_41 = arith.constant 0 : index
      %69 = vector.load %arg23[%c0_39, %c0_40, %c0_41] : memref<1x1x256xf32, #tpu.memory_space<vmem>>, vector<1x1x256xf32>
      %70 = vector.shape_cast %69 : vector<1x1x256xf32> to vector<1x256xf32>
      %71 = vector.broadcast %70 : vector<1x256xf32> to vector<32x256xf32>
      %72 = arith.addf %68, %71 : vector<32x256xf32>
      %73 = vector.shape_cast %72 : vector<32x256xf32> to vector<2x16x256xf32>
      %c0_42 = arith.constant 0 : index
      %c0_43 = arith.constant 0 : index
      %c0_44 = arith.constant 0 : index
      %74 = vector.load %arg24[%c0_42, %c0_43, %c0_44] : memref<2x16x256xf32, #tpu.memory_space<vmem>>, vector<2x16x256xf32>
      tpu.vector_store %arg24[%c0_42, %c0_43, %c0_44], %73 {strides = array<i32>} : memref<2x16x256xf32, #tpu.memory_space<vmem>>, vector<2x16x256xf32>,
    } else {
    }
    return
  }
  func.func @transform_0(%arg0: i32, %arg1: i32) -> (i32, i32, i32) {
    %c0_i32 = arith.constant 0 : i32
    %c0_i32_0 = arith.constant 0 : i32
    %c0_i32_1 = arith.constant 0 : i32
    %c0_i32_2 = arith.constant 0 : i32
    return %c0_i32, %c0_i32_0, %c0_i32_1 : i32, i32, i32
  }
  func.func @transform_1(%arg0: i32, %arg1: i32) -> (i32, i32, i32) {
    %c0_i32 = arith.constant 0 : i32
    %c0_i32_0 = arith.constant 0 : i32
    %c0_i32_1 = arith.constant 0 : i32
    %c0_i32_2 = arith.constant 0 : i32
    return %c0_i32, %c0_i32_0, %c0_i32_1 : i32, i32, i32
  }
  func.func @transform_2(%arg0: i32, %arg1: i32) -> (i32, i32, i32) {
    %c0_i32 = arith.constant 0 : i32
    %c0_i32_0 = arith.constant 0 : i32
    %c0_i32_1 = arith.constant 0 : i32
    %c0_i32_2 = arith.constant 0 : i32
    return %c0_i32, %c0_i32_0, %c0_i32_1 : i32, i32, i32
  }
  func.func @transform_3(%arg0: i32, %arg1: i32) -> (i32, i32) {
    %c0_i32 = arith.constant 0 : i32
    %c0_i32_0 = arith.constant 0 : i32
    %c0_i32_1 = arith.constant 0 : i32
    return %c0_i32, %c0_i32_0 : i32, i32
  }
  func.func @transform_4(%arg0: i32, %arg1: i32) -> (i32, i32) {
    %c0_i32 = arith.constant 0 : i32
    %c0_i32_0 = arith.constant 0 : i32
    %c0_i32_1 = arith.constant 0 : i32
    return %c0_i32, %c0_i32_0 : i32, i32
  }
  func.func @transform_5(%arg0: i32, %arg1: i32) -> (i32, i32, i32) {
    %c0_i32 = arith.constant 0 : i32
    %c0_i32_0 = arith.constant 0 : i32
    %c0_i32_1 = arith.constant 0 : i32
    %c0_i32_2 = arith.constant 0 : i32
    return %c0_i32, %c0_i32_0, %c0_i32_1 : i32, i32, i32
  }
  func.func @transform_6(%arg0: i32, %arg1: i32) -> (i32, i32, i32) {
    %c0_i32 = arith.constant 0 : i32
    %c0_i32_0 = arith.constant 0 : i32
    %c0_i32_1 = arith.constant 0 : i32
    return %arg0, %c0_i32, %c0_i32_0 : i32, i32, i32
  }
  func.func @transform_7(%arg0: i32, %arg1: i32) -> (i32, i32, i32) {
    %c0_i32 = arith.constant 0 : i32
    %c0_i32_0 = arith.constant 0 : i32
    %c0_i32_1 = arith.constant 0 : i32
    return %arg0, %c0_i32, %c0_i32_0 : i32, i32, i32
  }
  func.func @transform_8(%arg0: i32, %arg1: i32) -> (i32, i32, i32) {
    %c0_i32 = arith.constant 0 : i32
    %c0_i32_0 = arith.constant 0 : i32
    %c0_i32_1 = arith.constant 0 : i32
    return %arg0, %c0_i32, %c0_i32_0 : i32, i32, i32
  }
  func.func @transform_9(%arg0: i32, %arg1: i32) -> (i32, i32, i32) {
    %c0_i32 = arith.constant 0 : i32
    %c0_i32_0 = arith.constant 0 : i32
    %c0_i32_1 = arith.constant 0 : i32
    return %arg0, %c0_i32, %c0_i32_0 : i32, i32, i32
  }
  func.func @transform_10(%arg0: i32, %arg1: i32) -> (i32, i32, i32) {
    %c0_i32 = arith.constant 0 : i32
    %c0_i32_0 = arith.constant 0 : i32
    %c0_i32_1 = arith.constant 0 : i32
    return %arg0, %c0_i32, %c0_i32_0 : i32, i32, i32
  }
  func.func @transform_11(%arg0: i32, %arg1: i32) -> (i32, i32, i32) {
    %c0_i32 = arith.constant 0 : i32
    %c0_i32_0 = arith.constant 0 : i32
    %c0_i32_1 = arith.constant 0 : i32
    return %arg0, %c0_i32, %c0_i32_0 : i32, i32, i32
  }
  func.func @transform_12(%arg0: i32, %arg1: i32) -> (i32, i32, i32) {
    %c0_i32 = arith.constant 0 : i32
    %c0_i32_0 = arith.constant 0 : i32
    %c0_i32_1 = arith.constant 0 : i32
    return %arg0, %c0_i32, %c0_i32_0 : i32, i32, i32
  }
  func.func @transform_13(%arg0: i32, %arg1: i32) -> (i32, i32, i32) {
    %c0_i32 = arith.constant 0 : i32
    %c0_i32_0 = arith.constant 0 : i32
    %c0_i32_1 = arith.constant 0 : i32
    return %arg0, %c0_i32, %c0_i32_0 : i32, i32, i32
  }
  func.func @transform_14(%arg0: i32, %arg1: i32) -> (i32, i32, i32) {
    %c0_i32 = arith.constant 0 : i32
    %c0_i32_0 = arith.constant 0 : i32
    %c0_i32_1 = arith.constant 0 : i32
    return %arg0, %c0_i32, %c0_i32_0 : i32, i32, i32
  }
  func.func @transform_15(%arg0: i32, %arg1: i32) -> (i32, i32, i32) {
    %c0_i32 = arith.constant 0 : i32
    %c0_i32_0 = arith.constant 0 : i32
    %c0_i32_1 = arith.constant 0 : i32
    return %arg0, %c0_i32, %c0_i32_0 : i32, i32, i32
  }
  func.func @transform_16(%arg0: i32, %arg1: i32) -> (i32, i32, i32) {
    %c0_i32 = arith.constant 0 : i32
    %c0_i32_0 = arith.constant 0 : i32
    return %arg0, %c0_i32, %arg1 : i32, i32, i32
  }
  func.func @transform_17(%arg0: i32, %arg1: i32) -> (i32, i32, i32) {
    %c0_i32 = arith.constant 0 : i32
    %c0_i32_0 = arith.constant 0 : i32
    return %arg0, %c0_i32, %arg1 : i32, i32, i32
  }
  func.func @transform_18(%arg0: i32, %arg1: i32) -> (i32, i32, i32) {
    %c0_i32 = arith.constant 0 : i32
    %c0_i32_0 = arith.constant 0 : i32
    return %arg0, %arg1, %c0_i32 : i32, i32, i32
  }
  func.func @transform_19(%arg0: i32, %arg1: i32) -> (i32, i32, i32) {
    %c0_i32 = arith.constant 0 : i32
    %c0_i32_0 = arith.constant 0 : i32
    %c0_i32_1 = arith.constant 0 : i32
    return %arg0, %c0_i32, %c0_i32_0 : i32, i32, i32
  }
  func.func @transform_20(%arg0: i32, %arg1: i32) -> (i32, i32, i32) {
    %c0_i32 = arith.constant 0 : i32
    %c0_i32_0 = arith.constant 0 : i32
    %c0_i32_1 = arith.constant 0 : i32
    return %arg0, %c0_i32, %c0_i32_0 : i32, i32, i32
  }
  func.func @transform_21(%arg0: i32, %arg1: i32) -> (i32, i32, i32) {
    %c0_i32 = arith.constant 0 : i32
    %c0_i32_0 = arith.constant 0 : i32
    %c0_i32_1 = arith.constant 0 : i32
    return %arg0, %c0_i32, %c0_i32_0 : i32, i32, i32
  }
  func.func @transform_22(%arg0: i32, %arg1: i32) -> (i32, i32, i32) {
    %c0_i32 = arith.constant 0 : i32
    %c0_i32_0 = arith.constant 0 : i32
    %c0_i32_1 = arith.constant 0 : i32
    %c0_i32_2 = arith.constant 0 : i32
    return %c0_i32, %c0_i32_0, %c0_i32_1 : i32, i32, i32
  }
}

</mosaic_0001>

<llo_original>
// kernel: tpu_custom_call.1
$region0: #{tpu_custom_call.1}
  #allocation0 [shape = 'u32[]', space=smem, size = 0x4, offset = 0x4, fixed_abs, tag = 'smem constant byte address 0x4 - core index']
  #allocation1 [shape = 'u32[144,128]{1,0:T(1,128)}', space=vmem, size = 0x12000, scoped, tag = 'internal scratch']
  #allocation2 [shape = 'f32[32,256]{1,0:T(8,128)}', space=vmem, size = 0x8000, scoped, tag = 'scratch operand']
  #allocation3 [shape = 'f32[32,256]{1,0:T(8,128)}', space=vmem, size = 0x8000, scoped, tag = 'scratch operand']
  %s0 = inlined_call_operand.hbm [shape: bf16[2,16,256], index: 0, kind: input, shape index: {}]
  %s1 = inlined_call_operand.hbm [shape: bf16[1,16,256], index: 1, kind: input, shape index: {}]
  %s2 = inlined_call_operand.hbm [shape: bf16[2,16,256], index: 2, kind: input, shape index: {}]
  %s3 = inlined_call_operand.hbm [shape: f32[1,256], index: 3, kind: input, shape index: {}]
  %s4 = inlined_call_operand.hbm [shape: f32[1,256], index: 4, kind: input, shape index: {}]
  %s5 = inlined_call_operand.vmem [shape: f32[4,1,16], index: 5, kind: input, shape index: {}]
  %s6 = inlined_call_operand.hbm [shape: bf16[2,256,256], index: 6, kind: input, shape index: {}]
  %s7 = inlined_call_operand.vmem [shape: f32[2,1,256], index: 7, kind: input, shape index: {}]
  %s8 = inlined_call_operand.hbm [shape: bf16[2,256,256], index: 8, kind: input, shape index: {}]
  %s9 = inlined_call_operand.vmem [shape: f32[2,1,256], index: 9, kind: input, shape index: {}]
  %s10 = inlined_call_operand.hbm [shape: bf16[2,256,256], index: 10, kind: input, shape index: {}]
  %s11 = inlined_call_operand.vmem [shape: f32[2,1,256], index: 11, kind: input, shape index: {}]
  %s12 = inlined_call_operand.hbm [shape: bf16[2,256,256], index: 12, kind: input, shape index: {}]
  %s13 = inlined_call_operand.vmem [shape: f32[2,1,256], index: 13, kind: input, shape index: {}]
  %s14 = inlined_call_operand.vmem [shape: f32[2,1,256], index: 14, kind: input, shape index: {}]
  %s15 = inlined_call_operand.vmem [shape: f32[2,1,256], index: 15, kind: input, shape index: {}]
  %s16 = inlined_call_operand.hbm [shape: bf16[2,256,512], index: 16, kind: input, shape index: {}]
  %s17 = inlined_call_operand.vmem [shape: f32[2,1,512], index: 17, kind: input, shape index: {}]
  %s18 = inlined_call_operand.hbm [shape: bf16[2,512,256], index: 18, kind: input, shape index: {}]
  %s19 = inlined_call_operand.vmem [shape: f32[2,1,256], index: 19, kind: input, shape index: {}]
  %s20 = inlined_call_operand.vmem [shape: f32[2,1,256], index: 20, kind: input, shape index: {}]
  %s21 = inlined_call_operand.vmem [shape: f32[2,1,256], index: 21, kind: input, shape index: {}]
  %s22 = inlined_call_operand.hbm [shape: f32[2,16,256], index: 22, kind: output, shape index: {}]
  %s23 = sld [smem:[#allocation0]]
  $region177: #{tpu_custom_call.1} parent=0
    _
  %s25 = ssub.s32 1, %s23
  %s26 = scalar_select 0, %s25, %s23
  $region1: #{tpu_custom_call.1} parent=0
    #allocation4 [shape = 'u8[16384]{0}', space=vmem, size = 0x4000, scoped, tag = 'input window, operand 0, single buffered']
    #allocation5 [shape = 's32[2]{0}', space=sflag, size = 0x8, scoped, tag = 'scoped memory for tpu_custom_call.1']
    #allocation6 [shape = 's32[2]{0}', space=sflag, size = 0x8, scoped, tag = 'scoped memory for tpu_custom_call.1']
    #allocation7 [shape = 'u8[8192]{0}', space=vmem, size = 0x2000, scoped, tag = 'input window, operand 1, single buffered']
    #allocation8 [shape = 's32[1]{0}', space=sflag, size = 0x4, scoped, tag = 'scoped memory for tpu_custom_call.1']
    #allocation9 [shape = 'u8[16384]{0}', space=vmem, size = 0x4000, scoped, tag = 'input window, operand 2, single buffered']
    #allocation10 [shape = 'u8[1024]{0}', space=vmem, size = 0x400, scoped, tag = 'input window, operand 3, single buffered']
    #allocation11 [shape = 's32[1]{0}', space=sflag, size = 0x4, scoped, tag = 'scoped memory for tpu_custom_call.1']
    #allocation12 [shape = 'u8[1024]{0}', space=vmem, size = 0x400, scoped, tag = 'input window, operand 4, single buffered']
    #allocation13 [shape = 'u8[262144]{0}', space=vmem, size = 0x40000, scoped, tag = 'input window, operand 6']
    #allocation14 [shape = 's32[2]{0}', space=sflag, size = 0x8, scoped, tag = 'scoped memory for tpu_custom_call.1']
    #allocation15 [shape = 'u8[262144]{0}', space=vmem, size = 0x40000, scoped, tag = 'input window, operand 8']
    #allocation16 [shape = 'u8[262144]{0}', space=vmem, size = 0x40000, scoped, tag = 'input window, operand 10']
    #allocation17 [shape = 's32[2]{0}', space=sflag, size = 0x8, scoped, tag = 'scoped memory for tpu_custom_call.1']
    #allocation18 [shape = 'u8[262144]{0}', space=vmem, size = 0x40000, scoped, tag = 'input window, operand 12']
    #allocation19 [shape = 'u8[262144]{0}', space=vmem, size = 0x40000, scoped, tag = 'input window, operand 16']
    #allocation20 [shape = 's32[2]{0}', space=sflag, size = 0x8, scoped, tag = 'scoped memory for tpu_custom_call.1']
    #allocation21 [shape = 'u8[262144]{0}', space=vmem, size = 0x40000, scoped, tag = 'input window, operand 18']
    #allocation22 [shape = 'u8[32768]{0}', space=vmem, size = 0x8000, scoped, tag = 'output window, operand 0, single buffered']
    %27 = vsyncpa [#allocation5], 0
    %28 = vsyncpa [#allocation8], 0
    %29 = vsyncpa [#allocation11], 0
    %30 = vsyncpa [#allocation14], 0
    %s31 = scalar_lea.sflag [#allocation14], 1
    %32 = vsyncpa %s31, 0
    %33 = vsyncpa [#allocation17], 0
    %s34 = scalar_lea.sflag [#allocation17], 1
    %35 = vsyncpa %s34, 0
    %36 = vsyncpa [#allocation20], 0
    %s37 = scalar_lea.sflag [#allocation20], 1
    %38 = vsyncpa %s37, 0
    %39 = vsyncpa [#allocation6], 0
    loop: start=0, step=1, limit=6
    $region2: #{tpu_custom_call.1} parent=1 // loop_pre_header
      _
    $region3: #{tpu_custom_call.1} parent=1 // loop_header
      %s41 = sphi 0, %s45
      %p42 = scmp.ge.s32.totalorder %s41, 6
      %s48 = sphi 0, %s60
      %s49 = sphi 0, %s56
      %s50 = sphi 0, %s48
      %s51 = sphi 0, %s49
      %s52 = sphi 0, %s50
      %s53 = sphi 0, %s51
      %s61 = sphi 0, %s61
      %s63 = sphi 0, %s61
      %s64 = sphi 0, %s63
      %s78 = sphi 0, %s64
      %s82 = sphi 0, %s82
      %s84 = sphi 0, %s82
      %s85 = sphi 0, %s84
      %s99 = sphi 0, %s85
      %s103 = sphi 0, %s103
      %s105 = sphi 0, %s103
      %s106 = sphi 0, %s105
      %s120 = sphi 0, %s106
      %s124 = sphi 0, %s124
      %s126 = sphi 0, %s124
      %s127 = sphi 0, %s126
      %s141 = sphi 0, %s127
      %s145 = sphi 0, %s145
      %s147 = sphi 0, %s145
      %s148 = sphi 0, %s147
      %s162 = sphi 0, %s148
      %s166 = sphi 0, %s166
      %s168 = sphi 0, %s166
      %s169 = sphi 0, %s168
      %s183 = sphi 0, %s169
      %s189 = sphi 0, %s191
      %s192 = sphi 0, %s189
      %s193 = sphi 0, %s192
      %s209 = sphi 0, %s193
      %s215 = sphi 0, %s217
      %s218 = sphi 0, %s215
      %s219 = sphi 0, %s218
      %s235 = sphi 0, %s219
      %s241 = sphi 0, %s243
      %s244 = sphi 0, %s241
      %s245 = sphi 0, %s244
      %s261 = sphi 0, %s245
      %s267 = sphi 0, %s269
      %s270 = sphi 0, %s267
      %s271 = sphi 0, %s270
      %s287 = sphi 0, %s271
      %s293 = sphi 0, %s295
      %s296 = sphi 0, %s293
      %s297 = sphi 0, %s296
      %s313 = sphi 0, %s297
      %s319 = sphi 0, %s321
      %s322 = sphi 0, %s319
      %s323 = sphi 0, %s322
      %s339 = sphi 0, %s323
      %s345 = sphi 0, %s347
      %s348 = sphi 0, %s345
      %s349 = sphi 0, %s348
      %s365 = sphi 0, %s349
      %s371 = sphi 0, %s373
      %s374 = sphi 0, %s371
      %s375 = sphi 0, %s374
      %s391 = sphi 0, %s375
      %s397 = sphi 0, %s399
      %s400 = sphi 0, %s397
      %s401 = sphi 0, %s400
      %s417 = sphi 0, %s401
      %s423 = sphi 0, %s425
      %s426 = sphi 0, %s423
      %s427 = sphi 0, %s426
      %s443 = sphi 0, %s427
      %s451 = sphi 0, %s453
      %s454 = sphi 0, %s451
      %s455 = sphi 0, %s454
      %s471 = sphi 0, %s455
      %s479 = sphi 0, %s481
      %s482 = sphi 0, %s479
      %s483 = sphi 0, %s482
      %s499 = sphi 0, %s483
      %s507 = sphi 0, %s509
      %s510 = sphi 0, %s507
      %s511 = sphi 0, %s510
      %s527 = sphi 0, %s511
      %s533 = sphi 0, %s535
      %s536 = sphi 0, %s533
      %s537 = sphi 0, %s536
      %s553 = sphi 0, %s537
      %s559 = sphi 0, %s561
      %s562 = sphi 0, %s559
      %s563 = sphi 0, %s562
      %s579 = sphi 0, %s563
      %s585 = sphi 0, %s587
      %s588 = sphi 0, %s585
      %s589 = sphi 0, %s588
      %s605 = sphi 0, %s589
      %s609 = sphi 0, %s609
      %s611 = sphi 0, %s609
      %s612 = sphi 0, %s611
      %s626 = sphi 0, %s612
    $region4: #{tpu_custom_call.1} parent=1 // loop_header_branch
      %44 = sbr.rel (%p42) target = $region8
    $region5: #{tpu_custom_call.1} parent=1 // loop_body
      %s46 = ssub.s32 %s41, 1
      %s47 = ssub.s32 %s41, 2
      %s54 = sadd.s32 1, %s49
      %p55 = scmp.ge.s32.totalorder %s54, 2
      %s56 = scalar_select %p55, 0, %s54
      %s57 = sadd.s32 1, %s48
      %s58 = scalar_select %p55, %s57, %s48
      %p59 = scmp.ge.s32.totalorder %s58, 2
      %s60 = scalar_select %p59, 0, %s58
      %s62 = sadd.s32 %s61, 1
      %p65 = scmp.eq.s32.totalorder %s41, 3
      %p66 = scmp.ne.s32.totalorder %s61, %s63
      %p67 = scmp.eq.s32.totalorder %s41, 0
      %p68 = por %p66, %p67
      %p69 = scmp.ne.s32.totalorder %s61, %s63
      %p70 = scmp.eq.s32.totalorder %s46, 3
      %p71 = por %p69, %p70
      %p72 = scmp.ne.s32.totalorder %s63, %s64
      %p73 = scmp.eq.s32.totalorder %s46, 0
      %p74 = por %p72, %p73
      %p75 = scmp.ne.s32.totalorder %s63, %s64
      %p76 = scmp.eq.s32.totalorder %s47, 3
      %p77 = por %p75, %p76
      %p79 = scmp.ne.s32.totalorder %s64, %s78
      %p80 = scmp.eq.s32.totalorder %s47, 0
      %p81 = por %p79, %p80
      %s83 = sadd.s32 %s82, 1
      %p86 = scmp.eq.s32.totalorder %s41, 3
      %p87 = scmp.ne.s32.totalorder %s82, %s84
      %p88 = scmp.eq.s32.totalorder %s41, 0
      %p89 = por %p87, %p88
      %p90 = scmp.ne.s32.totalorder %s82, %s84
      %p91 = scmp.eq.s32.totalorder %s46, 3
      %p92 = por %p90, %p91
      %p93 = scmp.ne.s32.totalorder %s84, %s85
      %p94 = scmp.eq.s32.totalorder %s46, 0
      %p95 = por %p93, %p94
      %p96 = scmp.ne.s32.totalorder %s84, %s85
      %p97 = scmp.eq.s32.totalorder %s47, 3
      %p98 = por %p96, %p97
      %p100 = scmp.ne.s32.totalorder %s85, %s99
      %p101 = scmp.eq.s32.totalorder %s47, 0
      %p102 = por %p100, %p101
      %s104 = sadd.s32 %s103, 1
      %p107 = scmp.eq.s32.totalorder %s41, 3
      %p108 = scmp.ne.s32.totalorder %s103, %s105
      %p109 = scmp.eq.s32.totalorder %s41, 0
      %p110 = por %p108, %p109
      %p111 = scmp.ne.s32.totalorder %s103, %s105
      %p112 = scmp.eq.s32.totalorder %s46, 3
      %p113 = por %p111, %p112
      %p114 = scmp.ne.s32.totalorder %s105, %s106
      %p115 = scmp.eq.s32.totalorder %s46, 0
      %p116 = por %p114, %p115
      %p117 = scmp.ne.s32.totalorder %s105, %s106
      %p118 = scmp.eq.s32.totalorder %s47, 3
      %p119 = por %p117, %p118
      %p121 = scmp.ne.s32.totalorder %s106, %s120
      %p122 = scmp.eq.s32.totalorder %s47, 0
      %p123 = por %p121, %p122
      %s125 = sadd.s32 %s124, 1
      %p128 = scmp.eq.s32.totalorder %s41, 3
      %p129 = scmp.ne.s32.totalorder %s124, %s126
      %p130 = scmp.eq.s32.totalorder %s41, 0
      %p131 = por %p129, %p130
      %p132 = scmp.ne.s32.totalorder %s124, %s126
      %p133 = scmp.eq.s32.totalorder %s46, 3
      %p134 = por %p132, %p133
      %p135 = scmp.ne.s32.totalorder %s126, %s127
      %p136 = scmp.eq.s32.totalorder %s46, 0
      %p137 = por %p135, %p136
      %p138 = scmp.ne.s32.totalorder %s126, %s127
      %p139 = scmp.eq.s32.totalorder %s47, 3
      %p140 = por %p138, %p139
      %p142 = scmp.ne.s32.totalorder %s127, %s141
      %p143 = scmp.eq.s32.totalorder %s47, 0
      %p144 = por %p142, %p143
      %s146 = sadd.s32 %s145, 1
      %p149 = scmp.eq.s32.totalorder %s41, 3
      %p150 = scmp.ne.s32.totalorder %s145, %s147
      %p151 = scmp.eq.s32.totalorder %s41, 0
      %p152 = por %p150, %p151
      %p153 = scmp.ne.s32.totalorder %s145, %s147
      %p154 = scmp.eq.s32.totalorder %s46, 3
      %p155 = por %p153, %p154
      %p156 = scmp.ne.s32.totalorder %s147, %s148
      %p157 = scmp.eq.s32.totalorder %s46, 0
      %p158 = por %p156, %p157
      %p159 = scmp.ne.s32.totalorder %s147, %s148
      %p160 = scmp.eq.s32.totalorder %s47, 3
      %p161 = por %p159, %p160
      %p163 = scmp.ne.s32.totalorder %s148, %s162
      %p164 = scmp.eq.s32.totalorder %s47, 0
      %p165 = por %p163, %p164
      %s167 = sadd.s32 %s166, 1
      %p170 = scmp.eq.s32.totalorder %s41, 3
      %p171 = scmp.ne.s32.totalorder %s166, %s168
      %p172 = scmp.eq.s32.totalorder %s41, 0
      %p173 = por %p171, %p172
      %p174 = scmp.ne.s32.totalorder %s166, %s168
      %p175 = scmp.eq.s32.totalorder %s46, 3
      %p176 = por %p174, %p175
      %p177 = scmp.ne.s32.totalorder %s168, %s169
      %p178 = scmp.eq.s32.totalorder %s46, 0
      %p179 = por %p177, %p178
      %p180 = scmp.ne.s32.totalorder %s168, %s169
      %p181 = scmp.eq.s32.totalorder %s47, 3
      %p182 = por %p180, %p181
      %p184 = scmp.ne.s32.totalorder %s169, %s183
      %p185 = scmp.eq.s32.totalorder %s47, 0
      %p186 = por %p184, %p185
      %s187 = ssub.s32 %s48, %s60
      %p188 = scmp.eq.s32.totalorder %s187, 0
      %s190 = sadd.s32 %s189, 1
      %s191 = scalar_select %p188, %s189, %s190
      %p194 = pneg %p188
      %p195 = scmp.eq.s32.totalorder %s41, 3
      %p196 = por %p194, %p195
      %p197 = scmp.ne.s32.totalorder %s189, %s192
      %p198 = scmp.eq.s32.totalorder %s41, 0
      %p199 = por %p197, %p198
      %p200 = scmp.ne.s32.totalorder %s189, %s192
      %p201 = scmp.eq.s32.totalorder %s46, 3
      %p202 = por %p200, %p201
      %p203 = scmp.ne.s32.totalorder %s192, %s193
      %p204 = scmp.eq.s32.totalorder %s46, 0
      %p205 = por %p203, %p204
      %p206 = scmp.ne.s32.totalorder %s192, %s193
      %p207 = scmp.eq.s32.totalorder %s47, 3
      %p208 = por %p206, %p207
      %p210 = scmp.ne.s32.totalorder %s193, %s209
      %p211 = scmp.eq.s32.totalorder %s47, 0
      %p212 = por %p210, %p211
      %s213 = ssub.s32 %s48, %s60
      %p214 = scmp.eq.s32.totalorder %s213, 0
      %s216 = sadd.s32 %s215, 1
      %s217 = scalar_select %p214, %s215, %s216
      %p220 = pneg %p214
      %p221 = scmp.eq.s32.totalorder %s41, 3
      %p222 = por %p220, %p221
      %p223 = scmp.ne.s32.totalorder %s215, %s218
      %p224 = scmp.eq.s32.totalorder %s41, 0
      %p225 = por %p223, %p224
      %p226 = scmp.ne.s32.totalorder %s215, %s218
      %p227 = scmp.eq.s32.totalorder %s46, 3
      %p228 = por %p226, %p227
      %p229 = scmp.ne.s32.totalorder %s218, %s219
      %p230 = scmp.eq.s32.totalorder %s46, 0
      %p231 = por %p229, %p230
      %p232 = scmp.ne.s32.totalorder %s218, %s219
      %p233 = scmp.eq.s32.totalorder %s47, 3
      %p234 = por %p232, %p233
      %p236 = scmp.ne.s32.totalorder %s219, %s235
      %p237 = scmp.eq.s32.totalorder %s47, 0
      %p238 = por %p236, %p237
      %s239 = ssub.s32 %s48, %s60
      %p240 = scmp.eq.s32.totalorder %s239, 0
      %s242 = sadd.s32 %s241, 1
      %s243 = scalar_select %p240, %s241, %s242
      %p246 = pneg %p240
      %p247 = scmp.eq.s32.totalorder %s41, 3
      %p248 = por %p246, %p247
      %p249 = scmp.ne.s32.totalorder %s241, %s244
      %p250 = scmp.eq.s32.totalorder %s41, 0
      %p251 = por %p249, %p250
      %p252 = scmp.ne.s32.totalorder %s241, %s244
      %p253 = scmp.eq.s32.totalorder %s46, 3
      %p254 = por %p252, %p253
      %p255 = scmp.ne.s32.totalorder %s244, %s245
      %p256 = scmp.eq.s32.totalorder %s46, 0
      %p257 = por %p255, %p256
      %p258 = scmp.ne.s32.totalorder %s244, %s245
      %p259 = scmp.eq.s32.totalorder %s47, 3
      %p260 = por %p258, %p259
      %p262 = scmp.ne.s32.totalorder %s245, %s261
      %p263 = scmp.eq.s32.totalorder %s47, 0
      %p264 = por %p262, %p263
      %s265 = ssub.s32 %s48, %s60
      %p266 = scmp.eq.s32.totalorder %s265, 0
      %s268 = sadd.s32 %s267, 1
      %s269 = scalar_select %p266, %s267, %s268
      %p272 = pneg %p266
      %p273 = scmp.eq.s32.totalorder %s41, 3
      %p274 = por %p272, %p273
      %p275 = scmp.ne.s32.totalorder %s267, %s270
      %p276 = scmp.eq.s32.totalorder %s41, 0
      %p277 = por %p275, %p276
      %p278 = scmp.ne.s32.totalorder %s267, %s270
      %p279 = scmp.eq.s32.totalorder %s46, 3
      %p280 = por %p278, %p279
      %p281 = scmp.ne.s32.totalorder %s270, %s271
      %p282 = scmp.eq.s32.totalorder %s46, 0
      %p283 = por %p281, %p282
      %p284 = scmp.ne.s32.totalorder %s270, %s271
      %p285 = scmp.eq.s32.totalorder %s47, 3
      %p286 = por %p284, %p285
      %p288 = scmp.ne.s32.totalorder %s271, %s287
      %p289 = scmp.eq.s32.totalorder %s47, 0
      %p290 = por %p288, %p289
      %s291 = ssub.s32 %s48, %s60
      %p292 = scmp.eq.s32.totalorder %s291, 0
      %s294 = sadd.s32 %s293, 1
      %s295 = scalar_select %p292, %s293, %s294
      %p298 = pneg %p292
      %p299 = scmp.eq.s32.totalorder %s41, 3
      %p300 = por %p298, %p299
      %p301 = scmp.ne.s32.totalorder %s293, %s296
      %p302 = scmp.eq.s32.totalorder %s41, 0
      %p303 = por %p301, %p302
      %p304 = scmp.ne.s32.totalorder %s293, %s296
      %p305 = scmp.eq.s32.totalorder %s46, 3
      %p306 = por %p304, %p305
      %p307 = scmp.ne.s32.totalorder %s296, %s297
      %p308 = scmp.eq.s32.totalorder %s46, 0
      %p309 = por %p307, %p308
      %p310 = scmp.ne.s32.totalorder %s296, %s297
      %p311 = scmp.eq.s32.totalorder %s47, 3
      %p312 = por %p310, %p311
      %p314 = scmp.ne.s32.totalorder %s297, %s313
      %p315 = scmp.eq.s32.totalorder %s47, 0
      %p316 = por %p314, %p315
      %s317 = ssub.s32 %s48, %s60
      %p318 = scmp.eq.s32.totalorder %s317, 0
      %s320 = sadd.s32 %s319, 1
      %s321 = scalar_select %p318, %s319, %s320
      %p324 = pneg %p318
      %p325 = scmp.eq.s32.totalorder %s41, 3
      %p326 = por %p324, %p325
      %p327 = scmp.ne.s32.totalorder %s319, %s322
      %p328 = scmp.eq.s32.totalorder %s41, 0
      %p329 = por %p327, %p328
      %p330 = scmp.ne.s32.totalorder %s319, %s322
      %p331 = scmp.eq.s32.totalorder %s46, 3
      %p332 = por %p330, %p331
      %p333 = scmp.ne.s32.totalorder %s322, %s323
      %p334 = scmp.eq.s32.totalorder %s46, 0
      %p335 = por %p333, %p334
      %p336 = scmp.ne.s32.totalorder %s322, %s323
      %p337 = scmp.eq.s32.totalorder %s47, 3
      %p338 = por %p336, %p337
      %p340 = scmp.ne.s32.totalorder %s323, %s339
      %p341 = scmp.eq.s32.totalorder %s47, 0
      %p342 = por %p340, %p341
      %s343 = ssub.s32 %s48, %s60
      %p344 = scmp.eq.s32.totalorder %s343, 0
      %s346 = sadd.s32 %s345, 1
      %s347 = scalar_select %p344, %s345, %s346
      %p350 = pneg %p344
      %p351 = scmp.eq.s32.totalorder %s41, 3
      %p352 = por %p350, %p351
      %p353 = scmp.ne.s32.totalorder %s345, %s348
      %p354 = scmp.eq.s32.totalorder %s41, 0
      %p355 = por %p353, %p354
      %p356 = scmp.ne.s32.totalorder %s345, %s348
      %p357 = scmp.eq.s32.totalorder %s46, 3
      %p358 = por %p356, %p357
      %p359 = scmp.ne.s32.totalorder %s348, %s349
      %p360 = scmp.eq.s32.totalorder %s46, 0
      %p361 = por %p359, %p360
      %p362 = scmp.ne.s32.totalorder %s348, %s349
      %p363 = scmp.eq.s32.totalorder %s47, 3
      %p364 = por %p362, %p363
      %p366 = scmp.ne.s32.totalorder %s349, %s365
      %p367 = scmp.eq.s32.totalorder %s47, 0
      %p368 = por %p366, %p367
      %s369 = ssub.s32 %s48, %s60
      %p370 = scmp.eq.s32.totalorder %s369, 0
      %s372 = sadd.s32 %s371, 1
      %s373 = scalar_select %p370, %s371, %s372
      %p376 = pneg %p370
      %p377 = scmp.eq.s32.totalorder %s41, 3
      %p378 = por %p376, %p377
      %p379 = scmp.ne.s32.totalorder %s371, %s374
      %p380 = scmp.eq.s32.totalorder %s41, 0
      %p381 = por %p379, %p380
      %p382 = scmp.ne.s32.totalorder %s371, %s374
      %p383 = scmp.eq.s32.totalorder %s46, 3
      %p384 = por %p382, %p383
      %p385 = scmp.ne.s32.totalorder %s374, %s375
      %p386 = scmp.eq.s32.totalorder %s46, 0
      %p387 = por %p385, %p386
      %p388 = scmp.ne.s32.totalorder %s374, %s375
      %p389 = scmp.eq.s32.totalorder %s47, 3
      %p390 = por %p388, %p389
      %p392 = scmp.ne.s32.totalorder %s375, %s391
      %p393 = scmp.eq.s32.totalorder %s47, 0
      %p394 = por %p392, %p393
      %s395 = ssub.s32 %s48, %s60
      %p396 = scmp.eq.s32.totalorder %s395, 0
      %s398 = sadd.s32 %s397, 1
      %s399 = scalar_select %p396, %s397, %s398
      %p402 = pneg %p396
      %p403 = scmp.eq.s32.totalorder %s41, 3
      %p404 = por %p402, %p403
      %p405 = scmp.ne.s32.totalorder %s397, %s400
      %p406 = scmp.eq.s32.totalorder %s41, 0
      %p407 = por %p405, %p406
      %p408 = scmp.ne.s32.totalorder %s397, %s400
      %p409 = scmp.eq.s32.totalorder %s46, 3
      %p410 = por %p408, %p409
      %p411 = scmp.ne.s32.totalorder %s400, %s401
      %p412 = scmp.eq.s32.totalorder %s46, 0
      %p413 = por %p411, %p412
      %p414 = scmp.ne.s32.totalorder %s400, %s401
      %p415 = scmp.eq.s32.totalorder %s47, 3
      %p416 = por %p414, %p415
      %p418 = scmp.ne.s32.totalorder %s401, %s417
      %p419 = scmp.eq.s32.totalorder %s47, 0
      %p420 = por %p418, %p419
      %s421 = ssub.s32 %s48, %s60
      %p422 = scmp.eq.s32.totalorder %s421, 0
      %s424 = sadd.s32 %s423, 1
      %s425 = scalar_select %p422, %s423, %s424
      %p428 = pneg %p422
      %p429 = scmp.eq.s32.totalorder %s41, 3
      %p430 = por %p428, %p429
      %p431 = scmp.ne.s32.totalorder %s423, %s426
      %p432 = scmp.eq.s32.totalorder %s41, 0
      %p433 = por %p431, %p432
      %p434 = scmp.ne.s32.totalorder %s423, %s426
      %p435 = scmp.eq.s32.totalorder %s46, 3
      %p436 = por %p434, %p435
      %p437 = scmp.ne.s32.totalorder %s426, %s427
      %p438 = scmp.eq.s32.totalorder %s46, 0
      %p439 = por %p437, %p438
      %p440 = scmp.ne.s32.totalorder %s426, %s427
      %p441 = scmp.eq.s32.totalorder %s47, 3
      %p442 = por %p440, %p441
      %p444 = scmp.ne.s32.totalorder %s427, %s443
      %p445 = scmp.eq.s32.totalorder %s47, 0
      %p446 = por %p444, %p445
      %s447 = ssub.s32 %s48, %s60
      %s448 = ssub.s32 %s49, %s56
      %s449 = sor.u32 %s447, %s448
      %p450 = scmp.eq.s32.totalorder %s449, 0
      %s452 = sadd.s32 %s451, 1
      %s453 = scalar_select %p450, %s451, %s452
      %p456 = pneg %p450
      %p457 = scmp.eq.s32.totalorder %s41, 3
      %p458 = por %p456, %p457
      %p459 = scmp.ne.s32.totalorder %s451, %s454
      %p460 = scmp.eq.s32.totalorder %s41, 0
      %p461 = por %p459, %p460
      %p462 = scmp.ne.s32.totalorder %s451, %s454
      %p463 = scmp.eq.s32.totalorder %s46, 3
      %p464 = por %p462, %p463
      %p465 = scmp.ne.s32.totalorder %s454, %s455
      %p466 = scmp.eq.s32.totalorder %s46, 0
      %p467 = por %p465, %p466
      %p468 = scmp.ne.s32.totalorder %s454, %s455
      %p469 = scmp.eq.s32.totalorder %s47, 3
      %p470 = por %p468, %p469
      %p472 = scmp.ne.s32.totalorder %s455, %s471
      %p473 = scmp.eq.s32.totalorder %s47, 0
      %p474 = por %p472, %p473
      %s475 = ssub.s32 %s48, %s60
      %s476 = ssub.s32 %s49, %s56
      %s477 = sor.u32 %s475, %s476
      %p478 = scmp.eq.s32.totalorder %s477, 0
      %s480 = sadd.s32 %s479, 1
      %s481 = scalar_select %p478, %s479, %s480
      %p484 = pneg %p478
      %p485 = scmp.eq.s32.totalorder %s41, 3
      %p486 = por %p484, %p485
      %p487 = scmp.ne.s32.totalorder %s479, %s482
      %p488 = scmp.eq.s32.totalorder %s41, 0
      %p489 = por %p487, %p488
      %p490 = scmp.ne.s32.totalorder %s479, %s482
      %p491 = scmp.eq.s32.totalorder %s46, 3
      %p492 = por %p490, %p491
      %p493 = scmp.ne.s32.totalorder %s482, %s483
      %p494 = scmp.eq.s32.totalorder %s46, 0
      %p495 = por %p493, %p494
      %p496 = scmp.ne.s32.totalorder %s482, %s483
      %p497 = scmp.eq.s32.totalorder %s47, 3
      %p498 = por %p496, %p497
      %p500 = scmp.ne.s32.totalorder %s483, %s499
      %p501 = scmp.eq.s32.totalorder %s47, 0
      %p502 = por %p500, %p501
      %s503 = ssub.s32 %s48, %s60
      %s504 = ssub.s32 %s49, %s56
      %s505 = sor.u32 %s503, %s504
      %p506 = scmp.eq.s32.totalorder %s505, 0
      %s508 = sadd.s32 %s507, 1
      %s509 = scalar_select %p506, %s507, %s508
      %p512 = pneg %p506
      %p513 = scmp.eq.s32.totalorder %s41, 3
      %p514 = por %p512, %p513
      %p515 = scmp.ne.s32.totalorder %s507, %s510
      %p516 = scmp.eq.s32.totalorder %s41, 0
      %p517 = por %p515, %p516
      %p518 = scmp.ne.s32.totalorder %s507, %s510
      %p519 = scmp.eq.s32.totalorder %s46, 3
      %p520 = por %p518, %p519
      %p521 = scmp.ne.s32.totalorder %s510, %s511
      %p522 = scmp.eq.s32.totalorder %s46, 0
      %p523 = por %p521, %p522
      %p524 = scmp.ne.s32.totalorder %s510, %s511
      %p525 = scmp.eq.s32.totalorder %s47, 3
      %p526 = por %p524, %p525
      %p528 = scmp.ne.s32.totalorder %s511, %s527
      %p529 = scmp.eq.s32.totalorder %s47, 0
      %p530 = por %p528, %p529
      %s531 = ssub.s32 %s48, %s60
      %p532 = scmp.eq.s32.totalorder %s531, 0
      %s534 = sadd.s32 %s533, 1
      %s535 = scalar_select %p532, %s533, %s534
      %p538 = pneg %p532
      %p539 = scmp.eq.s32.totalorder %s41, 3
      %p540 = por %p538, %p539
      %p541 = scmp.ne.s32.totalorder %s533, %s536
      %p542 = scmp.eq.s32.totalorder %s41, 0
      %p543 = por %p541, %p542
      %p544 = scmp.ne.s32.totalorder %s533, %s536
      %p545 = scmp.eq.s32.totalorder %s46, 3
      %p546 = por %p544, %p545
      %p547 = scmp.ne.s32.totalorder %s536, %s537
      %p548 = scmp.eq.s32.totalorder %s46, 0
      %p549 = por %p547, %p548
      %p550 = scmp.ne.s32.totalorder %s536, %s537
      %p551 = scmp.eq.s32.totalorder %s47, 3
      %p552 = por %p550, %p551
      %p554 = scmp.ne.s32.totalorder %s537, %s553
      %p555 = scmp.eq.s32.totalorder %s47, 0
      %p556 = por %p554, %p555
      %s557 = ssub.s32 %s48, %s60
      %p558 = scmp.eq.s32.totalorder %s557, 0
      %s560 = sadd.s32 %s559, 1
      %s561 = scalar_select %p558, %s559, %s560
      %p564 = pneg %p558
      %p565 = scmp.eq.s32.totalorder %s41, 3
      %p566 = por %p564, %p565
      %p567 = scmp.ne.s32.totalorder %s559, %s562
      %p568 = scmp.eq.s32.totalorder %s41, 0
      %p569 = por %p567, %p568
      %p570 = scmp.ne.s32.totalorder %s559, %s562
      %p571 = scmp.eq.s32.totalorder %s46, 3
      %p572 = por %p570, %p571
      %p573 = scmp.ne.s32.totalorder %s562, %s563
      %p574 = scmp.eq.s32.totalorder %s46, 0
      %p575 = por %p573, %p574
      %p576 = scmp.ne.s32.totalorder %s562, %s563
      %p577 = scmp.eq.s32.totalorder %s47, 3
      %p578 = por %p576, %p577
      %p580 = scmp.ne.s32.totalorder %s563, %s579
      %p581 = scmp.eq.s32.totalorder %s47, 0
      %p582 = por %p580, %p581
      %s583 = ssub.s32 %s48, %s60
      %p584 = scmp.eq.s32.totalorder %s583, 0
      %s586 = sadd.s32 %s585, 1
      %s587 = scalar_select %p584, %s585, %s586
      %p590 = pneg %p584
      %p591 = scmp.eq.s32.totalorder %s41, 3
      %p592 = por %p590, %p591
      %p593 = scmp.ne.s32.totalorder %s585, %s588
      %p594 = scmp.eq.s32.totalorder %s41, 0
      %p595 = por %p593, %p594
      %p596 = scmp.ne.s32.totalorder %s585, %s588
      %p597 = scmp.eq.s32.totalorder %s46, 3
      %p598 = por %p596, %p597
      %p599 = scmp.ne.s32.totalorder %s588, %s589
      %p600 = scmp.eq.s32.totalorder %s46, 0
      %p601 = por %p599, %p600
      %p602 = scmp.ne.s32.totalorder %s588, %s589
      %p603 = scmp.eq.s32.totalorder %s47, 3
      %p604 = por %p602, %p603
      %p606 = scmp.ne.s32.totalorder %s589, %s605
      %p607 = scmp.eq.s32.totalorder %s47, 0
      %p608 = por %p606, %p607
      %s610 = sadd.s32 %s609, 1
      %p613 = scmp.eq.s32.totalorder %s41, 3
      %p614 = scmp.ne.s32.totalorder %s609, %s611
      %p615 = scmp.eq.s32.totalorder %s41, 0
      %p616 = por %p614, %p615
      %p617 = scmp.ne.s32.totalorder %s609, %s611
      %p618 = scmp.eq.s32.totalorder %s46, 3
      %p619 = por %p617, %p618
      %p620 = scmp.ne.s32.totalorder %s611, %s612
      %p621 = scmp.eq.s32.totalorder %s46, 0
      %p622 = por %p620, %p621
      %p623 = scmp.ne.s32.totalorder %s611, %s612
      %p624 = scmp.eq.s32.totalorder %s47, 3
      %p625 = por %p623, %p624
      %p627 = scmp.ne.s32.totalorder %s612, %s626
      %p628 = scmp.eq.s32.totalorder %s47, 0
      %p629 = por %p627, %p628
      %p630 = scmp.le.s32.totalorder 1, %s41
      %p631 = scmp.lt.s32.totalorder %s41, 5
      %p632 = pnand %p630, %p631
      %p633 = pneg %p632
      // Predicated region
      $region9: #{tpu_custom_call.1} parent=5 // pred_check
        _
      $region10: #{tpu_custom_call.1} parent=5 // pred_check_branch
        %635 = sbr.rel (%p632) target = $region12
      $region11: #{tpu_custom_call.1} parent=5 // pred_region
        %s636 = ssub.s32 %s41, 1
        // Predicated region
        $region13: #{tpu_custom_call.1} parent=11 // pred_check
          %p637 = pneg %p74
        $region14: #{tpu_custom_call.1} parent=11 // pred_check_branch
          %639 = sbr.rel (%p637) target = $region16
        $region15: #{tpu_custom_call.1} parent=11 // pred_region
          %s641 = ssub.s32 512, 512
          %642 = vsyncadd [#allocation5], %s641
          %s643 = sshll.u32 [#allocation4], 4
          %s644 = int_to_ptr.vmem [resolvable:$true] %s643
          %649 = dma.hbm_to_vmem [thread:$0]  %s0, 512, %s644, [#allocation5], 128, 128, 8
        $region16: #{tpu_custom_call.1} parent=11 // pred_fallthru
          _
        // Predicated region
        $region17: #{tpu_custom_call.1} parent=11 // pred_check
          %p650 = pneg %p95
        $region18: #{tpu_custom_call.1} parent=11 // pred_check_branch
          %652 = sbr.rel (%p650) target = $region20
        $region19: #{tpu_custom_call.1} parent=11 // pred_region
          %s654 = ssub.s32 256, 256
          %655 = vsyncadd [#allocation8], %s654
          %s656 = sshll.u32 [#allocation7], 4
          %s657 = int_to_ptr.vmem [resolvable:$true] %s656
          %662 = dma.hbm_to_vmem [thread:$0]  %s1, 256, %s657, [#allocation8], 128, 128, 8
        $region20: #{tpu_custom_call.1} parent=11 // pred_fallthru
          _
        // Predicated region
        $region21: #{tpu_custom_call.1} parent=11 // pred_check
          %p663 = pneg %p116
        $region22: #{tpu_custom_call.1} parent=11 // pred_check_branch
          %665 = sbr.rel (%p663) target = $region24
        $region23: #{tpu_custom_call.1} parent=11 // pred_region
          %s667 = ssub.s32 512, 512
          %668 = vsyncadd [#allocation8], %s667
          %s669 = sshll.u32 [#allocation9], 4
          %s670 = int_to_ptr.vmem [resolvable:$true] %s669
          %675 = dma.hbm_to_vmem [thread:$0]  %s2, 512, %s670, [#allocation8], 128, 128, 8
        $region24: #{tpu_custom_call.1} parent=11 // pred_fallthru
          _
        // Predicated region
        $region25: #{tpu_custom_call.1} parent=11 // pred_check
          %p676 = pneg %p137
        $region26: #{tpu_custom_call.1} parent=11 // pred_check_branch
          %678 = sbr.rel (%p676) target = $region28
        $region27: #{tpu_custom_call.1} parent=11 // pred_region
          %s680 = ssub.s32 32, 32
          %681 = vsyncadd [#allocation11], %s680
          %s683 = sshll.u32 [#allocation10], 4
          %s684 = int_to_ptr.vmem [resolvable:$true] %s683
          %686 = dma.hbm_to_vmem [thread:$0]  %s3, 32, %s684, [#allocation11]
        $region28: #{tpu_custom_call.1} parent=11 // pred_fallthru
          _
        // Predicated region
        $region29: #{tpu_custom_call.1} parent=11 // pred_check
          %p687 = pneg %p158
        $region30: #{tpu_custom_call.1} parent=11 // pred_check_branch
          %689 = sbr.rel (%p687) target = $region32
        $region31: #{tpu_custom_call.1} parent=11 // pred_region
          %s691 = ssub.s32 32, 32
          %692 = vsyncadd [#allocation11], %s691
          %s694 = sshll.u32 [#allocation12], 4
          %s695 = int_to_ptr.vmem [resolvable:$true] %s694
          %697 = dma.hbm_to_vmem [thread:$0]  %s4, 32, %s695, [#allocation11]
        $region32: #{tpu_custom_call.1} parent=11 // pred_fallthru
          _
        // Predicated region
        $region33: #{tpu_custom_call.1} parent=11 // pred_check
          %p698 = pneg %p179
        $region34: #{tpu_custom_call.1} parent=11 // pred_check_branch
          %700 = sbr.rel (%p698) target = $region36
        $region35: #{tpu_custom_call.1} parent=11 // pred_region
          _
        $region36: #{tpu_custom_call.1} parent=11 // pred_fallthru
          _
      $region12: #{tpu_custom_call.1} parent=5 // pred_fallthru
        _
      %p701 = scmp.lt.s32.totalorder %s41, 4
      // Predicated region
      $region37: #{tpu_custom_call.1} parent=5 // pred_check
        %p702 = pneg %p701
      $region38: #{tpu_custom_call.1} parent=5 // pred_check_branch
        %704 = sbr.rel (%p702) target = $region40
      $region39: #{tpu_custom_call.1} parent=5 // pred_region
        // Predicated region
        $region41: #{tpu_custom_call.1} parent=39 // pred_check
          %p705 = pneg %p199
        $region42: #{tpu_custom_call.1} parent=39 // pred_check_branch
          %707 = sbr.rel (%p705) target = $region44
        $region43: #{tpu_custom_call.1} parent=39 // pred_region
          %s708 = sand.u32 %s41, 1
          %s709 = scalar_lea.sflag [#allocation14], %s708
          %s710 = sand.u32 %s189, 1
          %s711 = smul.addr %s710, 256
          %s712 = scalar_lea.vmem [#allocation13], %s711
          %s714 = ssub.s32 4096, 4096
          %715 = vsyncadd %s709, %s714
          %s716 = smul.addr %s48, 64
          %s717 = smul.addr %s716, 64
          %s718 = scalar_lea.hbm %s6, %s717
          %s719 = sshll.u32 %s712, 4
          %s720 = int_to_ptr.vmem [resolvable:$true] %s719
          %725 = dma.hbm_to_vmem [thread:$0]  %s718, 4096, %s720, %s709, 128, 128, 8
        $region44: #{tpu_custom_call.1} parent=39 // pred_fallthru
          _
        // Predicated region
        $region45: #{tpu_custom_call.1} parent=39 // pred_check
          %p726 = pneg %p225
        $region46: #{tpu_custom_call.1} parent=39 // pred_check_branch
          %728 = sbr.rel (%p726) target = $region48
        $region47: #{tpu_custom_call.1} parent=39 // pred_region
          %p729 = scmp.lt.s32.totalorder %s48, 1
          %s730 = scalar_select %p729, %s48, 1
          %s731 = smul.addr %s730, 2
          %s732 = scalar_lea.vmem %s7, %s731
        $region48: #{tpu_custom_call.1} parent=39 // pred_fallthru
          _
        // Predicated region
        $region49: #{tpu_custom_call.1} parent=39 // pred_check
          %p733 = pneg %p251
        $region50: #{tpu_custom_call.1} parent=39 // pred_check_branch
          %735 = sbr.rel (%p733) target = $region52
        $region51: #{tpu_custom_call.1} parent=39 // pred_region
          %s736 = sand.u32 %s41, 1
          %s737 = scalar_lea.sflag [#allocation14], %s736
          %s738 = sand.u32 %s241, 1
          %s739 = smul.addr %s738, 256
          %s740 = scalar_lea.vmem [#allocation15], %s739
          %s742 = ssub.s32 4096, 4096
          %743 = vsyncadd %s737, %s742
          %s744 = smul.addr %s48, 64
          %s745 = smul.addr %s744, 64
          %s746 = scalar_lea.hbm %s8, %s745
          %s747 = sshll.u32 %s740, 4
          %s748 = int_to_ptr.vmem [resolvable:$true] %s747
          %753 = dma.hbm_to_vmem [thread:$0]  %s746, 4096, %s748, %s737, 128, 128, 8
        $region52: #{tpu_custom_call.1} parent=39 // pred_fallthru
          _
        // Predicated region
        $region53: #{tpu_custom_call.1} parent=39 // pred_check
          %p754 = pneg %p277
        $region54: #{tpu_custom_call.1} parent=39 // pred_check_branch
          %756 = sbr.rel (%p754) target = $region56
        $region55: #{tpu_custom_call.1} parent=39 // pred_region
          %p757 = scmp.lt.s32.totalorder %s48, 1
          %s758 = scalar_select %p757, %s48, 1
          %s759 = smul.addr %s758, 2
          %s760 = scalar_lea.vmem %s9, %s759
        $region56: #{tpu_custom_call.1} parent=39 // pred_fallthru
          _
        // Predicated region
        $region57: #{tpu_custom_call.1} parent=39 // pred_check
          %p761 = pneg %p303
        $region58: #{tpu_custom_call.1} parent=39 // pred_check_branch
          %763 = sbr.rel (%p761) target = $region60
        $region59: #{tpu_custom_call.1} parent=39 // pred_region
          %s764 = sand.u32 %s41, 1
          %s765 = scalar_lea.sflag [#allocation17], %s764
          %s766 = sand.u32 %s293, 1
          %s767 = smul.addr %s766, 256
          %s768 = scalar_lea.vmem [#allocation16], %s767
          %s770 = ssub.s32 4096, 4096
          %771 = vsyncadd %s765, %s770
          %s772 = smul.addr %s48, 64
          %s773 = smul.addr %s772, 64
          %s774 = scalar_lea.hbm %s10, %s773
          %s775 = sshll.u32 %s768, 4
          %s776 = int_to_ptr.vmem [resolvable:$true] %s775
          %781 = dma.hbm_to_vmem [thread:$0]  %s774, 4096, %s776, %s765, 128, 128, 8
        $region60: #{tpu_custom_call.1} parent=39 // pred_fallthru
          _
        // Predicated region
        $region61: #{tpu_custom_call.1} parent=39 // pred_check
          %p782 = pneg %p329
        $region62: #{tpu_custom_call.1} parent=39 // pred_check_branch
          %784 = sbr.rel (%p782) target = $region64
        $region63: #{tpu_custom_call.1} parent=39 // pred_region
          %p785 = scmp.lt.s32.totalorder %s48, 1
          %s786 = scalar_select %p785, %s48, 1
          %s787 = smul.addr %s786, 2
          %s788 = scalar_lea.vmem %s11, %s787
        $region64: #{tpu_custom_call.1} parent=39 // pred_fallthru
          _
        // Predicated region
        $region65: #{tpu_custom_call.1} parent=39 // pred_check
          %p789 = pneg %p355
        $region66: #{tpu_custom_call.1} parent=39 // pred_check_branch
          %791 = sbr.rel (%p789) target = $region68
        $region67: #{tpu_custom_call.1} parent=39 // pred_region
          %s792 = sand.u32 %s41, 1
          %s793 = scalar_lea.sflag [#allocation17], %s792
          %s794 = sand.u32 %s345, 1
          %s795 = smul.addr %s794, 256
          %s796 = scalar_lea.vmem [#allocation18], %s795
          %s798 = ssub.s32 4096, 4096
          %799 = vsyncadd %s793, %s798
          %s800 = smul.addr %s48, 64
          %s801 = smul.addr %s800, 64
          %s802 = scalar_lea.hbm %s12, %s801
          %s803 = sshll.u32 %s796, 4
          %s804 = int_to_ptr.vmem [resolvable:$true] %s803
          %809 = dma.hbm_to_vmem [thread:$0]  %s802, 4096, %s804, %s793, 128, 128, 8
        $region68: #{tpu_custom_call.1} parent=39 // pred_fallthru
          _
        // Predicated region
        $region69: #{tpu_custom_call.1} parent=39 // pred_check
          %p810 = pneg %p381
        $region70: #{tpu_custom_call.1} parent=39 // pred_check_branch
          %812 = sbr.rel (%p810) target = $region72
        $region71: #{tpu_custom_call.1} parent=39 // pred_region
          %p813 = scmp.lt.s32.totalorder %s48, 1
          %s814 = scalar_select %p813, %s48, 1
          %s815 = smul.addr %s814, 2
          %s816 = scalar_lea.vmem %s13, %s815
        $region72: #{tpu_custom_call.1} parent=39 // pred_fallthru
          _
        // Predicated region
        $region73: #{tpu_custom_call.1} parent=39 // pred_check
          %p817 = pneg %p407
        $region74: #{tpu_custom_call.1} parent=39 // pred_check_branch
          %819 = sbr.rel (%p817) target = $region76
        $region75: #{tpu_custom_call.1} parent=39 // pred_region
          %p820 = scmp.lt.s32.totalorder %s48, 1
          %s821 = scalar_select %p820, %s48, 1
          %s822 = smul.addr %s821, 2
          %s823 = scalar_lea.vmem %s14, %s822
        $region76: #{tpu_custom_call.1} parent=39 // pred_fallthru
          _
        // Predicated region
        $region77: #{tpu_custom_call.1} parent=39 // pred_check
          %p824 = pneg %p433
        $region78: #{tpu_custom_call.1} parent=39 // pred_check_branch
          %826 = sbr.rel (%p824) target = $region80
        $region79: #{tpu_custom_call.1} parent=39 // pred_region
          %p827 = scmp.lt.s32.totalorder %s48, 1
          %s828 = scalar_select %p827, %s48, 1
          %s829 = smul.addr %s828, 2
          %s830 = scalar_lea.vmem %s15, %s829
        $region80: #{tpu_custom_call.1} parent=39 // pred_fallthru
          _
        // Predicated region
        $region81: #{tpu_custom_call.1} parent=39 // pred_check
          %p831 = pneg %p461
        $region82: #{tpu_custom_call.1} parent=39 // pred_check_branch
          %833 = sbr.rel (%p831) target = $region84
        $region83: #{tpu_custom_call.1} parent=39 // pred_region
          %s834 = sand.u32 %s41, 1
          %s835 = scalar_lea.sflag [#allocation20], %s834
          %s836 = sand.u32 %s451, 1
          %s837 = smul.addr %s836, 256
          %s838 = scalar_lea.vmem [#allocation19], %s837
          %s839 = smul.u32 2, %s49
          %s841 = ssub.s32 4096, 4096
          %842 = vsyncadd %s835, %s841
          %s843 = smul.addr %s48, 128
          %s844 = sadd.s32 %s839, %s843
          %s845 = smul.addr %s844, 64
          %s846 = scalar_lea.hbm %s16, %s845
          %s847 = sshll.u32 %s838, 4
          %s848 = int_to_ptr.vmem [resolvable:$true] %s847
          %853 = dma.hbm_to_vmem [thread:$0]  %s846, 4096, %s848, %s835, 256, 128, 8
        $region84: #{tpu_custom_call.1} parent=39 // pred_fallthru
          _
        // Predicated region
        $region85: #{tpu_custom_call.1} parent=39 // pred_check
          %p854 = pneg %p489
        $region86: #{tpu_custom_call.1} parent=39 // pred_check_branch
          %856 = sbr.rel (%p854) target = $region88
        $region87: #{tpu_custom_call.1} parent=39 // pred_region
          %s857 = smul.u32 2, %s49
          %p858 = scmp.lt.s32.totalorder %s48, 1
          %s859 = scalar_select %p858, %s48, 1
          %p860 = scmp.lt.s32.totalorder %s857, 3
          %s861 = scalar_select %p860, %s857, 3
          %s862 = smul.addr %s859, 4
          %s863 = sadd.s32 %s861, %s862
          %s864 = scalar_lea.vmem %s17, %s863
          %s865 = smul.u32 2, %s49
        $region88: #{tpu_custom_call.1} parent=39 // pred_fallthru
          _
        // Predicated region
        $region89: #{tpu_custom_call.1} parent=39 // pred_check
          %p866 = pneg %p517
        $region90: #{tpu_custom_call.1} parent=39 // pred_check_branch
          %868 = sbr.rel (%p866) target = $region92
        $region91: #{tpu_custom_call.1} parent=39 // pred_region
          %s869 = sand.u32 %s41, 1
          %s870 = scalar_lea.sflag [#allocation20], %s869
          %s871 = sand.u32 %s507, 1
          %s872 = smul.addr %s871, 256
          %s873 = scalar_lea.vmem [#allocation21], %s872
          %s874 = smul.u32 32, %s49
          %s876 = ssub.s32 4096, 4096
          %877 = vsyncadd %s870, %s876
          %s878 = smul.addr %s874, 2
          %s879 = smul.addr %s48, 128
          %s880 = sadd.s32 %s878, %s879
          %s881 = smul.addr %s880, 64
          %s882 = scalar_lea.hbm %s18, %s881
          %s883 = sshll.u32 %s873, 4
          %s884 = int_to_ptr.vmem [resolvable:$true] %s883
          %889 = dma.hbm_to_vmem [thread:$0]  %s882, 4096, %s884, %s870, 128, 128, 8
        $region92: #{tpu_custom_call.1} parent=39 // pred_fallthru
          _
        // Predicated region
        $region93: #{tpu_custom_call.1} parent=39 // pred_check
          %p890 = pneg %p543
        $region94: #{tpu_custom_call.1} parent=39 // pred_check_branch
          %892 = sbr.rel (%p890) target = $region96
        $region95: #{tpu_custom_call.1} parent=39 // pred_region
          %p893 = scmp.lt.s32.totalorder %s48, 1
          %s894 = scalar_select %p893, %s48, 1
          %s895 = smul.addr %s894, 2
          %s896 = scalar_lea.vmem %s19, %s895
        $region96: #{tpu_custom_call.1} parent=39 // pred_fallthru
          _
        // Predicated region
        $region97: #{tpu_custom_call.1} parent=39 // pred_check
          %p897 = pneg %p569
        $region98: #{tpu_custom_call.1} parent=39 // pred_check_branch
          %899 = sbr.rel (%p897) target = $region100
        $region99: #{tpu_custom_call.1} parent=39 // pred_region
          %p900 = scmp.lt.s32.totalorder %s48, 1
          %s901 = scalar_select %p900, %s48, 1
          %s902 = smul.addr %s901, 2
          %s903 = scalar_lea.vmem %s20, %s902
        $region100: #{tpu_custom_call.1} parent=39 // pred_fallthru
          _
        // Predicated region
        $region101: #{tpu_custom_call.1} parent=39 // pred_check
          %p904 = pneg %p595
        $region102: #{tpu_custom_call.1} parent=39 // pred_check_branch
          %906 = sbr.rel (%p904) target = $region104
        $region103: #{tpu_custom_call.1} parent=39 // pred_region
          %p907 = scmp.lt.s32.totalorder %s48, 1
          %s908 = scalar_select %p907, %s48, 1
          %s909 = smul.addr %s908, 2
          %s910 = scalar_lea.vmem %s21, %s909
        $region104: #{tpu_custom_call.1} parent=39 // pred_fallthru
          _
      $region40: #{tpu_custom_call.1} parent=5 // pred_fallthru
        _
      %p911 = scmp.le.s32.totalorder 1, %s41
      %p912 = scmp.lt.s32.totalorder %s41, 5
      %p913 = pnand %p911, %p912
      %p914 = pneg %p913
      // Predicated region
      $region105: #{tpu_custom_call.1} parent=5 // pred_check
        _
      $region106: #{tpu_custom_call.1} parent=5 // pred_check_branch
        %916 = sbr.rel (%p913) target = $region108
      $region107: #{tpu_custom_call.1} parent=5 // pred_region
        %s917 = ssub.s32 %s41, 1
        // Predicated region
        $region109: #{tpu_custom_call.1} parent=107 // pred_check
          %p918 = pneg %p74
        $region110: #{tpu_custom_call.1} parent=107 // pred_check_branch
          %920 = sbr.rel (%p918) target = $region112
        $region111: #{tpu_custom_call.1} parent=107 // pred_region
          %921 = dma.done [#allocation5], 512
        $region112: #{tpu_custom_call.1} parent=107 // pred_fallthru
          _
        // Predicated region
        $region113: #{tpu_custom_call.1} parent=107 // pred_check
          %p922 = pneg %p95
        $region114: #{tpu_custom_call.1} parent=107 // pred_check_branch
          %924 = sbr.rel (%p922) target = $region116
        $region115: #{tpu_custom_call.1} parent=107 // pred_region
          %925 = dma.done [#allocation8], 256
        $region116: #{tpu_custom_call.1} parent=107 // pred_fallthru
          _
        // Predicated region
        $region117: #{tpu_custom_call.1} parent=107 // pred_check
          %p926 = pneg %p116
        $region118: #{tpu_custom_call.1} parent=107 // pred_check_branch
          %928 = sbr.rel (%p926) target = $region120
        $region119: #{tpu_custom_call.1} parent=107 // pred_region
          %929 = dma.done [#allocation8], 512
        $region120: #{tpu_custom_call.1} parent=107 // pred_fallthru
          _
        // Predicated region
        $region121: #{tpu_custom_call.1} parent=107 // pred_check
          %p930 = pneg %p137
        $region122: #{tpu_custom_call.1} parent=107 // pred_check_branch
          %932 = sbr.rel (%p930) target = $region124
        $region123: #{tpu_custom_call.1} parent=107 // pred_region
          %933 = dma.done [#allocation11], 32
        $region124: #{tpu_custom_call.1} parent=107 // pred_fallthru
          _
        // Predicated region
        $region125: #{tpu_custom_call.1} parent=107 // pred_check
          %p934 = pneg %p158
        $region126: #{tpu_custom_call.1} parent=107 // pred_check_branch
          %936 = sbr.rel (%p934) target = $region128
        $region127: #{tpu_custom_call.1} parent=107 // pred_region
          %937 = dma.done [#allocation11], 32
        $region128: #{tpu_custom_call.1} parent=107 // pred_fallthru
          _
        %s938 = sand.u32 %s46, 1
        %s939 = scalar_lea.sflag [#allocation14], %s938
        %s940 = sand.u32 %s192, 1
        %s941 = smul.addr %s940, 256
        %s942 = scalar_lea.vmem [#allocation13], %s941
        // Predicated region
        $region129: #{tpu_custom_call.1} parent=107 // pred_check
          %p943 = pneg %p205
        $region130: #{tpu_custom_call.1} parent=107 // pred_check_branch
          %945 = sbr.rel (%p943) target = $region132
        $region131: #{tpu_custom_call.1} parent=107 // pred_region
          %946 = dma.done %s939, 4096
        $region132: #{tpu_custom_call.1} parent=107 // pred_fallthru
          _
        %s947 = sand.u32 %s46, 1
        %s948 = scalar_lea.sflag [#allocation14], %s947
        %s949 = sand.u32 %s244, 1
        %s950 = smul.addr %s949, 256
        %s951 = scalar_lea.vmem [#allocation15], %s950
        // Predicated region
        $region133: #{tpu_custom_call.1} parent=107 // pred_check
          %p952 = pneg %p257
        $region134: #{tpu_custom_call.1} parent=107 // pred_check_branch
          %954 = sbr.rel (%p952) target = $region136
        $region135: #{tpu_custom_call.1} parent=107 // pred_region
          %955 = dma.done %s948, 4096
        $region136: #{tpu_custom_call.1} parent=107 // pred_fallthru
          _
        %s956 = sand.u32 %s46, 1
        %s957 = scalar_lea.sflag [#allocation17], %s956
        %s958 = sand.u32 %s296, 1
        %s959 = smul.addr %s958, 256
        %s960 = scalar_lea.vmem [#allocation16], %s959
        // Predicated region
        $region137: #{tpu_custom_call.1} parent=107 // pred_check
          %p961 = pneg %p309
        $region138: #{tpu_custom_call.1} parent=107 // pred_check_branch
          %963 = sbr.rel (%p961) target = $region140
        $region139: #{tpu_custom_call.1} parent=107 // pred_region
          %964 = dma.done %s957, 4096
        $region140: #{tpu_custom_call.1} parent=107 // pred_fallthru
          _
        %s965 = sand.u32 %s46, 1
        %s966 = scalar_lea.sflag [#allocation17], %s965
        %s967 = sand.u32 %s348, 1
        %s968 = smul.addr %s967, 256
        %s969 = scalar_lea.vmem [#allocation18], %s968
        // Predicated region
        $region141: #{tpu_custom_call.1} parent=107 // pred_check
          %p970 = pneg %p361
        $region142: #{tpu_custom_call.1} parent=107 // pred_check_branch
          %972 = sbr.rel (%p970) target = $region144
        $region143: #{tpu_custom_call.1} parent=107 // pred_region
          %973 = dma.done %s966, 4096
        $region144: #{tpu_custom_call.1} parent=107 // pred_fallthru
          _
        %s974 = sand.u32 %s46, 1
        %s975 = scalar_lea.sflag [#allocation20], %s974
        %s976 = sand.u32 %s454, 1
        %s977 = smul.addr %s976, 256
        %s978 = scalar_lea.vmem [#allocation19], %s977
        // Predicated region
        $region145: #{tpu_custom_call.1} parent=107 // pred_check
          %p979 = pneg %p467
        $region146: #{tpu_custom_call.1} parent=107 // pred_check_branch
          %981 = sbr.rel (%p979) target = $region148
        $region147: #{tpu_custom_call.1} parent=107 // pred_region
          %982 = dma.done %s975, 4096
        $region148: #{tpu_custom_call.1} parent=107 // pred_fallthru
          _
        %s983 = sand.u32 %s46, 1
        %s984 = scalar_lea.sflag [#allocation20], %s983
        %s985 = sand.u32 %s510, 1
        %s986 = smul.addr %s985, 256
        %s987 = scalar_lea.vmem [#allocation21], %s986
        // Predicated region
        $region149: #{tpu_custom_call.1} parent=107 // pred_check
          %p988 = pneg %p523
        $region150: #{tpu_custom_call.1} parent=107 // pred_check_branch
          %990 = sbr.rel (%p988) target = $region152
        $region151: #{tpu_custom_call.1} parent=107 // pred_region
          %991 = dma.done %s984, 4096
        $region152: #{tpu_custom_call.1} parent=107 // pred_fallthru
          _
        %p992 = pneg %p74
        %p993 = pneg %p71
        %p994 = pneg %p95
        %p995 = pneg %p92
        %p996 = pneg %p116
        %p997 = pneg %p113
        %p998 = pneg %p137
        %p999 = pneg %p134
        %p1000 = pneg %p158
        %p1001 = pneg %p155
        %p1002 = pneg %p179
        %p1003 = pneg %p176
        %s1004 = sand.u32 %s46, 1
        %s1005 = scalar_lea.sflag [#allocation14], %s1004
        %s1006 = sand.u32 %s192, 1
        %s1007 = smul.addr %s1006, 256
        %s1008 = scalar_lea.vmem [#allocation13], %s1007
        %p1009 = pneg %p205
        %p1010 = pneg %p202
        %p1011 = scmp.lt.s32.totalorder %s50, 1
        %s1012 = scalar_select %p1011, %s50, 1
        %s1013 = smul.addr %s1012, 2
        %s1014 = scalar_lea.vmem %s7, %s1013
        %p1015 = pneg %p231
        %p1016 = pneg %p228
        %s1017 = sand.u32 %s46, 1
        %s1018 = scalar_lea.sflag [#allocation14], %s1017
        %s1019 = sand.u32 %s244, 1
        %s1020 = smul.addr %s1019, 256
        %s1021 = scalar_lea.vmem [#allocation15], %s1020
        %p1022 = pneg %p257
        %p1023 = pneg %p254
        %p1024 = scmp.lt.s32.totalorder %s50, 1
        %s1025 = scalar_select %p1024, %s50, 1
        %s1026 = smul.addr %s1025, 2
        %s1027 = scalar_lea.vmem %s9, %s1026
        %p1028 = pneg %p283
        %p1029 = pneg %p280
        %s1030 = sand.u32 %s46, 1
        %s1031 = scalar_lea.sflag [#allocation17], %s1030
        %s1032 = sand.u32 %s296, 1
        %s1033 = smul.addr %s1032, 256
        %s1034 = scalar_lea.vmem [#allocation16], %s1033
        %p1035 = pneg %p309
        %p1036 = pneg %p306
        %p1037 = scmp.lt.s32.totalorder %s50, 1
        %s1038 = scalar_select %p1037, %s50, 1
        %s1039 = smul.addr %s1038, 2
        %s1040 = scalar_lea.vmem %s11, %s1039
        %p1041 = pneg %p335
        %p1042 = pneg %p332
        %s1043 = sand.u32 %s46, 1
        %s1044 = scalar_lea.sflag [#allocation17], %s1043
        %s1045 = sand.u32 %s348, 1
        %s1046 = smul.addr %s1045, 256
        %s1047 = scalar_lea.vmem [#allocation18], %s1046
        %p1048 = pneg %p361
        %p1049 = pneg %p358
        %p1050 = scmp.lt.s32.totalorder %s50, 1
        %s1051 = scalar_select %p1050, %s50, 1
        %s1052 = smul.addr %s1051, 2
        %s1053 = scalar_lea.vmem %s13, %s1052
        %p1054 = pneg %p387
        %p1055 = pneg %p384
        %p1056 = scmp.lt.s32.totalorder %s50, 1
        %s1057 = scalar_select %p1056, %s50, 1
        %s1058 = smul.addr %s1057, 2
        %s1059 = scalar_lea.vmem %s14, %s1058
        %p1060 = pneg %p413
        %p1061 = pneg %p410
        %p1062 = scmp.lt.s32.totalorder %s50, 1
        %s1063 = scalar_select %p1062, %s50, 1
        %s1064 = smul.addr %s1063, 2
        %s1065 = scalar_lea.vmem %s15, %s1064
        %p1066 = pneg %p439
        %p1067 = pneg %p436
        %s1068 = sand.u32 %s46, 1
        %s1069 = scalar_lea.sflag [#allocation20], %s1068
        %s1070 = sand.u32 %s454, 1
        %s1071 = smul.addr %s1070, 256
        %s1072 = scalar_lea.vmem [#allocation19], %s1071
        %p1073 = pneg %p467
        %p1074 = pneg %p464
        %s1075 = smul.u32 2, %s51
        %p1076 = scmp.lt.s32.totalorder %s50, 1
        %s1077 = scalar_select %p1076, %s50, 1
        %p1078 = scmp.lt.s32.totalorder %s1075, 3
        %s1079 = scalar_select %p1078, %s1075, 3
        %s1080 = smul.addr %s1077, 4
        %s1081 = sadd.s32 %s1079, %s1080
        %s1082 = scalar_lea.vmem %s17, %s1081
        %p1083 = pneg %p495
        %p1084 = pneg %p492
        %s1085 = sand.u32 %s46, 1
        %s1086 = scalar_lea.sflag [#allocation20], %s1085
        %s1087 = sand.u32 %s510, 1
        %s1088 = smul.addr %s1087, 256
        %s1089 = scalar_lea.vmem [#allocation21], %s1088
        %p1090 = pneg %p523
        %p1091 = pneg %p520
        %p1092 = scmp.lt.s32.totalorder %s50, 1
        %s1093 = scalar_select %p1092, %s50, 1
        %s1094 = smul.addr %s1093, 2
        %s1095 = scalar_lea.vmem %s19, %s1094
        %p1096 = pneg %p549
        %p1097 = pneg %p546
        %p1098 = scmp.lt.s32.totalorder %s50, 1
        %s1099 = scalar_select %p1098, %s50, 1
        %s1100 = smul.addr %s1099, 2
        %s1101 = scalar_lea.vmem %s20, %s1100
        %p1102 = pneg %p575
        %p1103 = pneg %p572
        %p1104 = scmp.lt.s32.totalorder %s50, 1
        %s1105 = scalar_select %p1104, %s50, 1
        %s1106 = smul.addr %s1105, 2
        %s1107 = scalar_lea.vmem %s21, %s1106
        %p1108 = pneg %p601
        %p1109 = pneg %p598
        %p1110 = pneg %p622
        %p1111 = pneg %p619
        %p1112 = scmp.lt.s32.totalorder %s50, 1
        %s1113 = scalar_select %p1112, %s50, 1
        %s1114 = smul.addr %s1113, 2
        %s1115 = scalar_lea.vmem %s7, %s1114
        %p1116 = scmp.lt.s32.totalorder %s50, 1
        %s1117 = scalar_select %p1116, %s50, 1
        %s1118 = smul.addr %s1117, 2
        %s1119 = scalar_lea.vmem %s9, %s1118
        %p1120 = scmp.lt.s32.totalorder %s50, 1
        %s1121 = scalar_select %p1120, %s50, 1
        %s1122 = smul.addr %s1121, 2
        %s1123 = scalar_lea.vmem %s11, %s1122
        %p1124 = scmp.lt.s32.totalorder %s50, 1
        %s1125 = scalar_select %p1124, %s50, 1
        %s1126 = smul.addr %s1125, 2
        %s1127 = scalar_lea.vmem %s13, %s1126
        %p1128 = scmp.lt.s32.totalorder %s50, 1
        %s1129 = scalar_select %p1128, %s50, 1
        %s1130 = smul.addr %s1129, 2
        %s1131 = scalar_lea.vmem %s14, %s1130
        %p1132 = scmp.lt.s32.totalorder %s50, 1
        %s1133 = scalar_select %p1132, %s50, 1
        %s1134 = smul.addr %s1133, 2
        %s1135 = scalar_lea.vmem %s15, %s1134
        %s1136 = smul.u32 2, %s51
        %s1137 = smul.u32 2, %s51
        %p1138 = scmp.lt.s32.totalorder %s50, 1
        %s1139 = scalar_select %p1138, %s50, 1
        %p1140 = scmp.lt.s32.totalorder %s1137, 3
        %s1141 = scalar_select %p1140, %s1137, 3
        %s1142 = smul.addr %s1139, 4
        %s1143 = sadd.s32 %s1141, %s1142
        %s1144 = scalar_lea.vmem %s17, %s1143
        %s1145 = smul.u32 2, %s51
        %s1146 = smul.u32 32, %s51
        %p1147 = scmp.lt.s32.totalorder %s50, 1
        %s1148 = scalar_select %p1147, %s50, 1
        %s1149 = smul.addr %s1148, 2
        %s1150 = scalar_lea.vmem %s19, %s1149
        %p1151 = scmp.lt.s32.totalorder %s50, 1
        %s1152 = scalar_select %p1151, %s50, 1
        %s1153 = smul.addr %s1152, 2
        %s1154 = scalar_lea.vmem %s20, %s1153
        %p1155 = scmp.lt.s32.totalorder %s50, 1
        %s1156 = scalar_select %p1155, %s50, 1
        %s1157 = smul.addr %s1156, 2
        %s1158 = scalar_lea.vmem %s21, %s1157
        %p1160 = scmp.eq.s32.totalorder %s50, 0
        %p1161 = scmp.eq.s32.totalorder %s51, 0
        %p1162 = pnand %p1160, %p1161
        %p1163 = pneg %p1162
        // Predicated region
        $region153: #{tpu_custom_call.1} parent=107 // pred_check
          _
        $region154: #{tpu_custom_call.1} parent=107 // pred_check_branch
          %1165 = sbr.rel (%p1162) target = $region156
        $region155: #{tpu_custom_call.1} parent=107 // pred_region
          %v1166 = vld [vmem:[#allocation4] sm:$0xff]
          %v1167 = vld [vmem:[#allocation4 + $0x8] sm:$0xff]
          %v1168 = vld [vmem:[#allocation4 + $0x10] sm:$0xff]
          %v1169 = vld [vmem:[#allocation4 + $0x18] sm:$0xff]
          %v1170 = vunpack.c.l.bf16 %v1166
          %v1171 = vunpack.c.h.bf16 %v1166
          %v1172 = vunpack.c.l.bf16 %v1167
          %v1173 = vunpack.c.h.bf16 %v1167
          %v1174 = vunpack.c.l.bf16 %v1168
          %v1175 = vunpack.c.h.bf16 %v1168
          %v1176 = vunpack.c.l.bf16 %v1169
          %v1177 = vunpack.c.h.bf16 %v1169
          %v1178 = vld [vmem:[#allocation7] sm:$0xff]
          %v1179 = vld [vmem:[#allocation7 + $0x8] sm:$0xff]
          %v1180 = vunpack.c.l.bf16 %v1178
          %v1181 = vunpack.c.h.bf16 %v1178
          %v1182 = vunpack.c.l.bf16 %v1179
          %v1183 = vunpack.c.h.bf16 %v1179
          %v1184 = vadd.f32 %v1170, %v1180
          %v1185 = vadd.f32 %v1171, %v1181
          %v1186 = vadd.f32 %v1172, %v1182
          %v1187 = vadd.f32 %v1173, %v1183
          %v1188 = vadd.f32 %v1174, %v1180
          %v1189 = vadd.f32 %v1175, %v1181
          %v1190 = vadd.f32 %v1176, %v1182
          %v1191 = vadd.f32 %v1177, %v1183
          %v1192 = vld [vmem:[#allocation9] sm:$0xff]
          %v1193 = vld [vmem:[#allocation9 + $0x8] sm:$0xff]
          %v1194 = vld [vmem:[#allocation9 + $0x10] sm:$0xff]
          %v1195 = vld [vmem:[#allocation9 + $0x18] sm:$0xff]
          %v1196 = vunpack.c.l.bf16 %v1192
          %v1197 = vunpack.c.h.bf16 %v1192
          %v1198 = vunpack.c.l.bf16 %v1193
          %v1199 = vunpack.c.h.bf16 %v1193
          %v1200 = vunpack.c.l.bf16 %v1194
          %v1201 = vunpack.c.h.bf16 %v1194
          %v1202 = vunpack.c.l.bf16 %v1195
          %v1203 = vunpack.c.h.bf16 %v1195
          %v1204 = vadd.f32 %v1184, %v1196
          %v1205 = vadd.f32 %v1185, %v1197
          %v1206 = vadd.f32 %v1186, %v1198
          %v1207 = vadd.f32 %v1187, %v1199
          %v1208 = vadd.f32 %v1188, %v1200
          %v1209 = vadd.f32 %v1189, %v1201
          %v1210 = vadd.f32 %v1190, %v1202
          %v1211 = vadd.f32 %v1191, %v1203
          %v1212 = vadd.f32 %v1204, %v1205
          %1213 = vadd.xlane.f32.xlu0 %v1212
          %v1214 = vpop.xlane.xlu0 %1213
          %v1215 = vadd.f32 %v1206, %v1207
          %1216 = vadd.xlane.f32.xlu0 %v1215
          %v1217 = vpop.xlane.xlu0 %1216
          %v1218 = vadd.f32 %v1208, %v1209
          %1219 = vadd.xlane.f32.xlu0 %v1218
          %v1220 = vpop.xlane.xlu0 %1219
          %v1221 = vadd.f32 %v1210, %v1211
          %1222 = vadd.xlane.f32.xlu0 %v1221
          %v1223 = vpop.xlane.xlu0 %1222
          %v1224 = vrcp.pop 256.0
          %v1225 = vmul.f32 %v1214, %v1224
          %v1226 = vmul.f32 %v1217, %v1224
          %v1227 = vmul.f32 %v1220, %v1224
          %v1228 = vmul.f32 %v1223, %v1224
          %v1229 = vsub.f32 %v1204, %v1225
          %v1230 = vsub.f32 %v1205, %v1225
          %v1231 = vsub.f32 %v1206, %v1226
          %v1232 = vsub.f32 %v1207, %v1226
          %v1233 = vsub.f32 %v1208, %v1227
          %v1234 = vsub.f32 %v1209, %v1227
          %v1235 = vsub.f32 %v1210, %v1228
          %v1236 = vsub.f32 %v1211, %v1228
          %v1237 = vmul.f32 %v1229, %v1229
          %v1238 = vmul.f32 %v1230, %v1230
          %v1239 = vmul.f32 %v1231, %v1231
          %v1240 = vmul.f32 %v1232, %v1232
          %v1241 = vmul.f32 %v1233, %v1233
          %v1242 = vmul.f32 %v1234, %v1234
          %v1243 = vmul.f32 %v1235, %v1235
          %v1244 = vmul.f32 %v1236, %v1236
          %v1245 = vadd.f32 %v1237, %v1238
          %1246 = vadd.xlane.f32.xlu0 %v1245
          %v1247 = vpop.xlane.xlu0 %1246
          %v1248 = vadd.f32 %v1239, %v1240
          %1249 = vadd.xlane.f32.xlu0 %v1248
          %v1250 = vpop.xlane.xlu0 %1249
          %v1251 = vadd.f32 %v1241, %v1242
          %1252 = vadd.xlane.f32.xlu0 %v1251
          %v1253 = vpop.xlane.xlu0 %1252
          %v1254 = vadd.f32 %v1243, %v1244
          %1255 = vadd.xlane.f32.xlu0 %v1254
          %v1256 = vpop.xlane.xlu0 %1255
          %v1257 = vmul.f32 %v1247, %v1224
          %v1258 = vmul.f32 %v1250, %v1224
          %v1259 = vmul.f32 %v1253, %v1224
          %v1260 = vmul.f32 %v1256, %v1224
          %v1261 = vadd.f32 %v1257, 1e-12
          %v1262 = vadd.f32 %v1258, 1e-12
          %v1263 = vadd.f32 %v1259, 1e-12
          %v1264 = vadd.f32 %v1260, 1e-12
          %v1265 = vrsqrt.pop %v1261
          %v1266 = vrsqrt.pop %v1262
          %v1267 = vrsqrt.pop %v1263
          %v1268 = vrsqrt.pop %v1264
          %v1269 = vmul.f32 %v1229, %v1265
          %v1270 = vmul.f32 %v1230, %v1265
          %v1271 = vmul.f32 %v1231, %v1266
          %v1272 = vmul.f32 %v1232, %v1266
          %v1273 = vmul.f32 %v1233, %v1267
          %v1274 = vmul.f32 %v1234, %v1267
          %v1275 = vmul.f32 %v1235, %v1268
          %v1276 = vmul.f32 %v1236, %v1268
          %v1277 = vld [vmem:[#allocation10] sm:$0x3]
          %v1279 = vlaneseq
          %v1280 = vshrl.u32 %v1279, 7
          %v1281 = vsub.s32 0, %v1280
          %v1282 = vrot.slane %v1277, %v1281
          %v1283 = vlaneseq
          %v1284 = vshrl.u32 %v1283, 7
          %v1285 = vsub.s32 1, %v1284
          %v1286 = vrot.slane %v1277, %v1285
          %v1289 = vmul.f32 %v1269, %v1282
          %v1290 = vmul.f32 %v1270, %v1286
          %v1291 = vmul.f32 %v1271, %v1282
          %v1292 = vmul.f32 %v1272, %v1286
          %v1293 = vmul.f32 %v1273, %v1282
          %v1294 = vmul.f32 %v1274, %v1286
          %v1295 = vmul.f32 %v1275, %v1282
          %v1296 = vmul.f32 %v1276, %v1286
          %v1297 = vld [vmem:[#allocation12] sm:$0x3]
          %v1299 = vlaneseq
          %v1300 = vshrl.u32 %v1299, 7
          %v1301 = vsub.s32 0, %v1300
          %v1302 = vrot.slane %v1297, %v1301
          %v1303 = vlaneseq
          %v1304 = vshrl.u32 %v1303, 7
          %v1305 = vsub.s32 1, %v1304
          %v1306 = vrot.slane %v1297, %v1305
          %v1309 = vadd.f32 %v1289, %v1302
          %v1310 = vadd.f32 %v1290, %v1306
          %v1311 = vadd.f32 %v1291, %v1302
          %v1312 = vadd.f32 %v1292, %v1306
          %v1313 = vadd.f32 %v1293, %v1302
          %v1314 = vadd.f32 %v1294, %v1306
          %v1315 = vadd.f32 %v1295, %v1302
          %v1316 = vadd.f32 %v1296, %v1306
          %1317 = vst [vmem:[#allocation22] sm:$0xff] %v1309
          %1318 = vst [vmem:[#allocation22 + $0x8] sm:$0xff] %v1310
          %1319 = vst [vmem:[#allocation22 + $0x10] sm:$0xff] %v1311
          %1320 = vst [vmem:[#allocation22 + $0x18] sm:$0xff] %v1312
          %1321 = vst [vmem:[#allocation22 + $0x20] sm:$0xff] %v1313
          %1322 = vst [vmem:[#allocation22 + $0x28] sm:$0xff] %v1314
          %1323 = vst [vmem:[#allocation22 + $0x30] sm:$0xff] %v1315
          %1324 = vst [vmem:[#allocation22 + $0x38] sm:$0xff] %v1316
        $region156: #{tpu_custom_call.1} parent=107 // pred_fallthru
          _
        // Predicated region
        $region157: #{tpu_custom_call.1} parent=107 // pred_check
          %p1325 = pneg %p1161
        $region158: #{tpu_custom_call.1} parent=107 // pred_check_branch
          %1327 = sbr.rel (%p1325) target = $region160
        $region159: #{tpu_custom_call.1} parent=107 // pred_region
          %v1328 = vld [vmem:[#allocation22] sm:$0xff]
          %v1329 = vld [vmem:[#allocation22 + $0x8] sm:$0xff]
          %v1330 = vld [vmem:[#allocation22 + $0x10] sm:$0xff]
          %v1331 = vld [vmem:[#allocation22 + $0x18] sm:$0xff]
          %v1332 = vld [vmem:[#allocation22 + $0x20] sm:$0xff]
          %v1333 = vld [vmem:[#allocation22 + $0x28] sm:$0xff]
          %v1334 = vld [vmem:[#allocation22 + $0x30] sm:$0xff]
          %v1335 = vld [vmem:[#allocation22 + $0x38] sm:$0xff]
          %v1336 = vpack.c.bf16 %v1330, %v1328
          %v1337 = vpack.c.bf16 %v1331, %v1329
          %v1338 = vpack.c.bf16 %v1334, %v1332
          %v1339 = vpack.c.bf16 %v1335, %v1333
          %v1340 = vld [vmem:[%s942] sm:$0xff]
          %v1341 = vld [vmem:[%s942 + $0x8] sm:$0xff]
          %v1342 = vld [vmem:[%s942 + $0x10] sm:$0xff]
          %v1343 = vld [vmem:[%s942 + $0x18] sm:$0xff]
          %v1344 = vld [vmem:[%s942 + $0x20] sm:$0xff]
          %v1345 = vld [vmem:[%s942 + $0x28] sm:$0xff]
          %v1346 = vld [vmem:[%s942 + $0x30] sm:$0xff]
          %v1347 = vld [vmem:[%s942 + $0x38] sm:$0xff]
          %v1348 = vld [vmem:[%s942 + $0x40] sm:$0xff]
          %v1349 = vld [vmem:[%s942 + $0x48] sm:$0xff]
          %v1350 = vld [vmem:[%s942 + $0x50] sm:$0xff]
          %v1351 = vld [vmem:[%s942 + $0x58] sm:$0xff]
          %v1352 = vld [vmem:[%s942 + $0x60] sm:$0xff]
          %v1353 = vld [vmem:[%s942 + $0x68] sm:$0xff]
          %v1354 = vld [vmem:[%s942 + $0x70] sm:$0xff]
          %v1355 = vld [vmem:[%s942 + $0x78] sm:$0xff]
          %v1356 = vld [vmem:[%s942 + $0x80] sm:$0xff]
          %v1357 = vld [vmem:[%s942 + $0x88] sm:$0xff]
          %v1358 = vld [vmem:[%s942 + $0x90] sm:$0xff]
          %v1359 = vld [vmem:[%s942 + $0x98] sm:$0xff]
          %v1360 = vld [vmem:[%s942 + $0xa0] sm:$0xff]
          %v1361 = vld [vmem:[%s942 + $0xa8] sm:$0xff]
          %v1362 = vld [vmem:[%s942 + $0xb0] sm:$0xff]
          %v1363 = vld [vmem:[%s942 + $0xb8] sm:$0xff]
          %v1364 = vld [vmem:[%s942 + $0xc0] sm:$0xff]
          %v1365 = vld [vmem:[%s942 + $0xc8] sm:$0xff]
          %v1366 = vld [vmem:[%s942 + $0xd0] sm:$0xff]
          %v1367 = vld [vmem:[%s942 + $0xd8] sm:$0xff]
          %v1368 = vld [vmem:[%s942 + $0xe0] sm:$0xff]
          %v1369 = vld [vmem:[%s942 + $0xe8] sm:$0xff]
          %v1370 = vld [vmem:[%s942 + $0xf0] sm:$0xff]
          %v1371 = vld [vmem:[%s942 + $0xf8] sm:$0xff]
          %v1372 = vld [vmem:[%s1115] sm:$0x3]
          %v1374 = vlaneseq
          %v1375 = vshrl.u32 %v1374, 7
          %v1376 = vsub.s32 0, %v1375
          %v1377 = vrot.slane %v1372, %v1376
          %v1378 = vlaneseq
          %v1379 = vshrl.u32 %v1378, 7
          %v1380 = vsub.s32 1, %v1379
          %v1381 = vrot.slane %v1372, %v1380
          %v1416 = vunpack.c.l.b16 %v1340
          %v1417 = vunpack.c.h.b16 %v1340
          %v1418 = vunpack.c.l.b16 %v1341
          %v1419 = vunpack.c.h.b16 %v1341
          %v1420 = vunpack.c.l.b16 %v1342
          %v1421 = vunpack.c.h.b16 %v1342
          %v1422 = vunpack.c.l.b16 %v1343
          %v1423 = vunpack.c.h.b16 %v1343
          %v1424 = vunpack.c.l.b16 %v1344
          %v1425 = vunpack.c.h.b16 %v1344
          %v1426 = vunpack.c.l.b16 %v1345
          %v1427 = vunpack.c.h.b16 %v1345
          %v1428 = vunpack.c.l.b16 %v1346
          %v1429 = vunpack.c.h.b16 %v1346
          %v1430 = vunpack.c.l.b16 %v1347
          %v1431 = vunpack.c.h.b16 %v1347
          %v1432 = vunpack.c.l.b16 %v1348
          %v1433 = vunpack.c.h.b16 %v1348
          %v1434 = vunpack.c.l.b16 %v1349
          %v1435 = vunpack.c.h.b16 %v1349
          %v1436 = vunpack.c.l.b16 %v1350
          %v1437 = vunpack.c.h.b16 %v1350
          %v1438 = vunpack.c.l.b16 %v1351
          %v1439 = vunpack.c.h.b16 %v1351
          %v1440 = vunpack.c.l.b16 %v1352
          %v1441 = vunpack.c.h.b16 %v1352
          %v1442 = vunpack.c.l.b16 %v1353
          %v1443 = vunpack.c.h.b16 %v1353
          %v1444 = vunpack.c.l.b16 %v1354
          %v1445 = vunpack.c.h.b16 %v1354
          %v1446 = vunpack.c.l.b16 %v1355
          %v1447 = vunpack.c.h.b16 %v1355
          %v1448 = vunpack.c.l.b16 %v1356
          %v1449 = vunpack.c.h.b16 %v1356
          %v1450 = vunpack.c.l.b16 %v1357
          %v1451 = vunpack.c.h.b16 %v1357
          %v1452 = vunpack.c.l.b16 %v1358
          %v1453 = vunpack.c.h.b16 %v1358
          %v1454 = vunpack.c.l.b16 %v1359
          %v1455 = vunpack.c.h.b16 %v1359
          %v1456 = vunpack.c.l.b16 %v1360
          %v1457 = vunpack.c.h.b16 %v1360
          %v1458 = vunpack.c.l.b16 %v1361
          %v1459 = vunpack.c.h.b16 %v1361
          %v1460 = vunpack.c.l.b16 %v1362
          %v1461 = vunpack.c.h.b16 %v1362
          %v1462 = vunpack.c.l.b16 %v1363
          %v1463 = vunpack.c.h.b16 %v1363
          %v1464 = vunpack.c.l.b16 %v1364
          %v1465 = vunpack.c.h.b16 %v1364
          %v1466 = vunpack.c.l.b16 %v1365
          %v1467 = vunpack.c.h.b16 %v1365
          %v1468 = vunpack.c.l.b16 %v1366
          %v1469 = vunpack.c.h.b16 %v1366
          %v1470 = vunpack.c.l.b16 %v1367
          %v1471 = vunpack.c.h.b16 %v1367
          %v1472 = vunpack.c.l.b16 %v1368
          %v1473 = vunpack.c.h.b16 %v1368
          %v1474 = vunpack.c.l.b16 %v1369
          %v1475 = vunpack.c.h.b16 %v1369
          %v1476 = vunpack.c.l.b16 %v1370
          %v1477 = vunpack.c.h.b16 %v1370
          %v1478 = vunpack.c.l.b16 %v1371
          %v1479 = vunpack.c.h.b16 %v1371
          %v1480 = vpack.c.b16 %v1418, %v1416
          %v1481 = vpack.c.b16 %v1419, %v1417
          %v1482 = vpack.c.b16 %v1422, %v1420
          %v1483 = vpack.c.b16 %v1423, %v1421
          %v1484 = vpack.c.b16 %v1426, %v1424
          %v1485 = vpack.c.b16 %v1427, %v1425
          %v1486 = vpack.c.b16 %v1430, %v1428
          %v1487 = vpack.c.b16 %v1431, %v1429
          %v1488 = vpack.c.b16 %v1434, %v1432
          %v1489 = vpack.c.b16 %v1435, %v1433
          %v1490 = vpack.c.b16 %v1438, %v1436
          %v1491 = vpack.c.b16 %v1439, %v1437
          %v1492 = vpack.c.b16 %v1442, %v1440
          %v1493 = vpack.c.b16 %v1443, %v1441
          %v1494 = vpack.c.b16 %v1446, %v1444
          %v1495 = vpack.c.b16 %v1447, %v1445
          %v1496 = vpack.c.b16 %v1450, %v1448
          %v1497 = vpack.c.b16 %v1451, %v1449
          %v1498 = vpack.c.b16 %v1454, %v1452
          %v1499 = vpack.c.b16 %v1455, %v1453
          %v1500 = vpack.c.b16 %v1458, %v1456
          %v1501 = vpack.c.b16 %v1459, %v1457
          %v1502 = vpack.c.b16 %v1462, %v1460
          %v1503 = vpack.c.b16 %v1463, %v1461
          %v1504 = vpack.c.b16 %v1466, %v1464
          %v1505 = vpack.c.b16 %v1467, %v1465
          %v1506 = vpack.c.b16 %v1470, %v1468
          %v1507 = vpack.c.b16 %v1471, %v1469
          %v1508 = vpack.c.b16 %v1474, %v1472
          %v1509 = vpack.c.b16 %v1475, %v1473
          %v1510 = vpack.c.b16 %v1478, %v1476
          %v1511 = vpack.c.b16 %v1479, %v1477
          %1544 = vmatprep.subr.bf16.mxu0 %v1481
          %1545 = vmatpush1.bf16.msra.mxu0 %v1480
          %1546 = vmatprep.subr.bf16.mxu0 %v1483
          %1547 = vmatpush1.bf16.msra.mxu0 %v1482
          %1548 = vmatprep.subr.bf16.mxu0 %v1485
          %1549 = vmatpush1.bf16.msra.mxu0 %v1484
          %1550 = vmatprep.subr.bf16.mxu0 %v1487
          %1551 = vmatpush1.bf16.msra.mxu0 %v1486
          %1552 = vmatprep.subr.bf16.mxu0 %v1489
          %1553 = vmatpush1.bf16.msra.mxu0 %v1488
          %1554 = vmatprep.subr.bf16.mxu0 %v1491
          %1555 = vmatpush1.bf16.msra.mxu0 %v1490
          %1556 = vmatprep.subr.bf16.mxu0 %v1493
          %1557 = vmatpush1.bf16.msra.mxu0 %v1492
          %1558 = vmatprep.subr.bf16.mxu0 %v1495
          %1559 = vmatpush1.bf16.msra.mxu0 %v1494
          %1560 = vmatprep.subr.bf16.mxu0 %v1497
          %1561 = vmatpush1.bf16.msra.mxu0 %v1496
          %1562 = vmatprep.subr.bf16.mxu0 %v1499
          %1563 = vmatpush1.bf16.msra.mxu0 %v1498
          %1564 = vmatprep.subr.bf16.mxu0 %v1501
          %1565 = vmatpush1.bf16.msra.mxu0 %v1500
          %1566 = vmatprep.subr.bf16.mxu0 %v1503
          %1567 = vmatpush1.bf16.msra.mxu0 %v1502
          %1568 = vmatprep.subr.bf16.mxu0 %v1505
          %1569 = vmatpush1.bf16.msra.mxu0 %v1504
          %1570 = vmatprep.subr.bf16.mxu0 %v1507
          %1571 = vmatpush1.bf16.msra.mxu0 %v1506
          %1572 = vmatprep.subr.bf16.mxu0 %v1509
          %1573 = vmatpush1.bf16.msra.mxu0 %v1508
          %1574 = vmatprep.subr.bf16.mxu0 %v1511
          %1575 = vmatpush1.bf16.msra.mxu0 %v1510
          %1576 = vmatprep.mubr.bf16.mxu0 %v1337
          %1577 = vmatmul.mubr.bf16.gmra.mrb[0].mxu0 %v1336
          %v1578 = vpop.f32.mrb[0].mxu0
          %v1579 = vadd.f32 %v1377, %v1578
          %v1580 = vpop.f32.mrb[0].mxu0
          %v1581 = vadd.f32 %v1381, %v1580
          %v1582 = vpop.f32.mrb[0].mxu0
          %v1583 = vadd.f32 %v1377, %v1582
          %v1584 = vpop.f32.mrb[0].mxu0
          %v1585 = vadd.f32 %v1381, %v1584
          %1586 = vmatprep.mubr.bf16.mxu0 %v1339
          %1587 = vmatmul.mubr.bf16.gmra.mrb[0].mxu0 %v1338
          %v1588 = vpop.f32.mrb[0].mxu0
          %v1589 = vadd.f32 %v1377, %v1588
          %v1590 = vpop.f32.mrb[0].mxu0
          %v1591 = vadd.f32 %v1381, %v1590
          %v1592 = vpop.f32.mrb[0].mxu0
          %v1593 = vadd.f32 %v1377, %v1592
          %v1594 = vpop.f32.mrb[0].mxu0
          %v1595 = vadd.f32 %v1381, %v1594
          %1596 = vdwg.mxu0
          %v1597 = vld [vmem:[%s951] sm:$0xff]
          %v1598 = vld [vmem:[%s951 + $0x8] sm:$0xff]
          %v1599 = vld [vmem:[%s951 + $0x10] sm:$0xff]
          %v1600 = vld [vmem:[%s951 + $0x18] sm:$0xff]
          %v1601 = vld [vmem:[%s951 + $0x20] sm:$0xff]
          %v1602 = vld [vmem:[%s951 + $0x28] sm:$0xff]
          %v1603 = vld [vmem:[%s951 + $0x30] sm:$0xff]
          %v1604 = vld [vmem:[%s951 + $0x38] sm:$0xff]
          %v1605 = vld [vmem:[%s951 + $0x40] sm:$0xff]
          %v1606 = vld [vmem:[%s951 + $0x48] sm:$0xff]
          %v1607 = vld [vmem:[%s951 + $0x50] sm:$0xff]
          %v1608 = vld [vmem:[%s951 + $0x58] sm:$0xff]
          %v1609 = vld [vmem:[%s951 + $0x60] sm:$0xff]
          %v1610 = vld [vmem:[%s951 + $0x68] sm:$0xff]
          %v1611 = vld [vmem:[%s951 + $0x70] sm:$0xff]
          %v1612 = vld [vmem:[%s951 + $0x78] sm:$0xff]
          %v1613 = vld [vmem:[%s951 + $0x80] sm:$0xff]
          %v1614 = vld [vmem:[%s951 + $0x88] sm:$0xff]
          %v1615 = vld [vmem:[%s951 + $0x90] sm:$0xff]
          %v1616 = vld [vmem:[%s951 + $0x98] sm:$0xff]
          %v1617 = vld [vmem:[%s951 + $0xa0] sm:$0xff]
          %v1618 = vld [vmem:[%s951 + $0xa8] sm:$0xff]
          %v1619 = vld [vmem:[%s951 + $0xb0] sm:$0xff]
          %v1620 = vld [vmem:[%s951 + $0xb8] sm:$0xff]
          %v1621 = vld [vmem:[%s951 + $0xc0] sm:$0xff]
          %v1622 = vld [vmem:[%s951 + $0xc8] sm:$0xff]
          %v1623 = vld [vmem:[%s951 + $0xd0] sm:$0xff]
          %v1624 = vld [vmem:[%s951 + $0xd8] sm:$0xff]
          %v1625 = vld [vmem:[%s951 + $0xe0] sm:$0xff]
          %v1626 = vld [vmem:[%s951 + $0xe8] sm:$0xff]
          %v1627 = vld [vmem:[%s951 + $0xf0] sm:$0xff]
          %v1628 = vld [vmem:[%s951 + $0xf8] sm:$0xff]
          %v1629 = vld [vmem:[%s1119] sm:$0x3]
          %v1631 = vlaneseq
          %v1632 = vshrl.u32 %v1631, 7
          %v1633 = vsub.s32 0, %v1632
          %v1634 = vrot.slane %v1629, %v1633
          %v1635 = vlaneseq
          %v1636 = vshrl.u32 %v1635, 7
          %v1637 = vsub.s32 1, %v1636
          %v1638 = vrot.slane %v1629, %v1637
          %v1673 = vunpack.c.l.b16 %v1597
          %v1674 = vunpack.c.h.b16 %v1597
          %v1675 = vunpack.c.l.b16 %v1598
          %v1676 = vunpack.c.h.b16 %v1598
          %v1677 = vunpack.c.l.b16 %v1599
          %v1678 = vunpack.c.h.b16 %v1599
          %v1679 = vunpack.c.l.b16 %v1600
          %v1680 = vunpack.c.h.b16 %v1600
          %v1681 = vunpack.c.l.b16 %v1601
          %v1682 = vunpack.c.h.b16 %v1601
          %v1683 = vunpack.c.l.b16 %v1602
          %v1684 = vunpack.c.h.b16 %v1602
          %v1685 = vunpack.c.l.b16 %v1603
          %v1686 = vunpack.c.h.b16 %v1603
          %v1687 = vunpack.c.l.b16 %v1604
          %v1688 = vunpack.c.h.b16 %v1604
          %v1689 = vunpack.c.l.b16 %v1605
          %v1690 = vunpack.c.h.b16 %v1605
          %v1691 = vunpack.c.l.b16 %v1606
          %v1692 = vunpack.c.h.b16 %v1606
          %v1693 = vunpack.c.l.b16 %v1607
          %v1694 = vunpack.c.h.b16 %v1607
          %v1695 = vunpack.c.l.b16 %v1608
          %v1696 = vunpack.c.h.b16 %v1608
          %v1697 = vunpack.c.l.b16 %v1609
          %v1698 = vunpack.c.h.b16 %v1609
          %v1699 = vunpack.c.l.b16 %v1610
          %v1700 = vunpack.c.h.b16 %v1610
          %v1701 = vunpack.c.l.b16 %v1611
          %v1702 = vunpack.c.h.b16 %v1611
          %v1703 = vunpack.c.l.b16 %v1612
          %v1704 = vunpack.c.h.b16 %v1612
          %v1705 = vunpack.c.l.b16 %v1613
          %v1706 = vunpack.c.h.b16 %v1613
          %v1707 = vunpack.c.l.b16 %v1614
          %v1708 = vunpack.c.h.b16 %v1614
          %v1709 = vunpack.c.l.b16 %v1615
          %v1710 = vunpack.c.h.b16 %v1615
          %v1711 = vunpack.c.l.b16 %v1616
          %v1712 = vunpack.c.h.b16 %v1616
          %v1713 = vunpack.c.l.b16 %v1617
          %v1714 = vunpack.c.h.b16 %v1617
          %v1715 = vunpack.c.l.b16 %v1618
          %v1716 = vunpack.c.h.b16 %v1618
          %v1717 = vunpack.c.l.b16 %v1619
          %v1718 = vunpack.c.h.b16 %v1619
          %v1719 = vunpack.c.l.b16 %v1620
          %v1720 = vunpack.c.h.b16 %v1620
          %v1721 = vunpack.c.l.b16 %v1621
          %v1722 = vunpack.c.h.b16 %v1621
          %v1723 = vunpack.c.l.b16 %v1622
          %v1724 = vunpack.c.h.b16 %v1622
          %v1725 = vunpack.c.l.b16 %v1623
          %v1726 = vunpack.c.h.b16 %v1623
          %v1727 = vunpack.c.l.b16 %v1624
          %v1728 = vunpack.c.h.b16 %v1624
          %v1729 = vunpack.c.l.b16 %v1625
          %v1730 = vunpack.c.h.b16 %v1625
          %v1731 = vunpack.c.l.b16 %v1626
          %v1732 = vunpack.c.h.b16 %v1626
          %v1733 = vunpack.c.l.b16 %v1627
          %v1734 = vunpack.c.h.b16 %v1627
          %v1735 = vunpack.c.l.b16 %v1628
          %v1736 = vunpack.c.h.b16 %v1628
          %v1737 = vpack.c.b16 %v1675, %v1673
          %v1738 = vpack.c.b16 %v1676, %v1674
          %v1739 = vpack.c.b16 %v1679, %v1677
          %v1740 = vpack.c.b16 %v1680, %v1678
          %v1741 = vpack.c.b16 %v1683, %v1681
          %v1742 = vpack.c.b16 %v1684, %v1682
          %v1743 = vpack.c.b16 %v1687, %v1685
          %v1744 = vpack.c.b16 %v1688, %v1686
          %v1745 = vpack.c.b16 %v1691, %v1689
          %v1746 = vpack.c.b16 %v1692, %v1690
          %v1747 = vpack.c.b16 %v1695, %v1693
          %v1748 = vpack.c.b16 %v1696, %v1694
          %v1749 = vpack.c.b16 %v1699, %v1697
          %v1750 = vpack.c.b16 %v1700, %v1698
          %v1751 = vpack.c.b16 %v1703, %v1701
          %v1752 = vpack.c.b16 %v1704, %v1702
          %v1753 = vpack.c.b16 %v1707, %v1705
          %v1754 = vpack.c.b16 %v1708, %v1706
          %v1755 = vpack.c.b16 %v1711, %v1709
          %v1756 = vpack.c.b16 %v1712, %v1710
          %v1757 = vpack.c.b16 %v1715, %v1713
          %v1758 = vpack.c.b16 %v1716, %v1714
          %v1759 = vpack.c.b16 %v1719, %v1717
          %v1760 = vpack.c.b16 %v1720, %v1718
          %v1761 = vpack.c.b16 %v1723, %v1721
          %v1762 = vpack.c.b16 %v1724, %v1722
          %v1763 = vpack.c.b16 %v1727, %v1725
          %v1764 = vpack.c.b16 %v1728, %v1726
          %v1765 = vpack.c.b16 %v1731, %v1729
          %v1766 = vpack.c.b16 %v1732, %v1730
          %v1767 = vpack.c.b16 %v1735, %v1733
          %v1768 = vpack.c.b16 %v1736, %v1734
          %1801 = vmatprep.subr.bf16.mxu0 %v1738
          %1802 = vmatpush1.bf16.msra.mxu0 %v1737
          %1803 = vmatprep.subr.bf16.mxu0 %v1740
          %1804 = vmatpush1.bf16.msra.mxu0 %v1739
          %1805 = vmatprep.subr.bf16.mxu0 %v1742
          %1806 = vmatpush1.bf16.msra.mxu0 %v1741
          %1807 = vmatprep.subr.bf16.mxu0 %v1744
          %1808 = vmatpush1.bf16.msra.mxu0 %v1743
          %1809 = vmatprep.subr.bf16.mxu0 %v1746
          %1810 = vmatpush1.bf16.msra.mxu0 %v1745
          %1811 = vmatprep.subr.bf16.mxu0 %v1748
          %1812 = vmatpush1.bf16.msra.mxu0 %v1747
          %1813 = vmatprep.subr.bf16.mxu0 %v1750
          %1814 = vmatpush1.bf16.msra.mxu0 %v1749
          %1815 = vmatprep.subr.bf16.mxu0 %v1752
          %1816 = vmatpush1.bf16.msra.mxu0 %v1751
          %1817 = vmatprep.subr.bf16.mxu0 %v1754
          %1818 = vmatpush1.bf16.msra.mxu0 %v1753
          %1819 = vmatprep.subr.bf16.mxu0 %v1756
          %1820 = vmatpush1.bf16.msra.mxu0 %v1755
          %1821 = vmatprep.subr.bf16.mxu0 %v1758
          %1822 = vmatpush1.bf16.msra.mxu0 %v1757
          %1823 = vmatprep.subr.bf16.mxu0 %v1760
          %1824 = vmatpush1.bf16.msra.mxu0 %v1759
          %1825 = vmatprep.subr.bf16.mxu0 %v1762
          %1826 = vmatpush1.bf16.msra.mxu0 %v1761
          %1827 = vmatprep.subr.bf16.mxu0 %v1764
          %1828 = vmatpush1.bf16.msra.mxu0 %v1763
          %1829 = vmatprep.subr.bf16.mxu0 %v1766
          %1830 = vmatpush1.bf16.msra.mxu0 %v1765
          %1831 = vmatprep.subr.bf16.mxu0 %v1768
          %1832 = vmatpush1.bf16.msra.mxu0 %v1767
          %1833 = vmatprep.mubr.bf16.mxu0 %v1337
          %1834 = vmatmul.mubr.bf16.gmra.mrb[0].mxu0 %v1336
          %v1835 = vpop.f32.mrb[0].mxu0
          %v1836 = vadd.f32 %v1634, %v1835
          %v1837 = vpop.f32.mrb[0].mxu0
          %v1838 = vadd.f32 %v1638, %v1837
          %v1839 = vpop.f32.mrb[0].mxu0
          %v1840 = vadd.f32 %v1634, %v1839
          %v1841 = vpop.f32.mrb[0].mxu0
          %v1842 = vadd.f32 %v1638, %v1841
          %1843 = vmatprep.mubr.bf16.mxu0 %v1339
          %1844 = vmatmul.mubr.bf16.gmra.mrb[0].mxu0 %v1338
          %v1845 = vpop.f32.mrb[0].mxu0
          %v1846 = vadd.f32 %v1634, %v1845
          %v1847 = vpop.f32.mrb[0].mxu0
          %v1848 = vadd.f32 %v1638, %v1847
          %v1849 = vpop.f32.mrb[0].mxu0
          %v1850 = vadd.f32 %v1634, %v1849
          %v1851 = vpop.f32.mrb[0].mxu0
          %v1852 = vadd.f32 %v1638, %v1851
          %1853 = vdwg.mxu0
          %v1854 = vld [vmem:[%s960] sm:$0xff]
          %v1855 = vld [vmem:[%s960 + $0x8] sm:$0xff]
          %v1856 = vld [vmem:[%s960 + $0x10] sm:$0xff]
          %v1857 = vld [vmem:[%s960 + $0x18] sm:$0xff]
          %v1858 = vld [vmem:[%s960 + $0x20] sm:$0xff]
          %v1859 = vld [vmem:[%s960 + $0x28] sm:$0xff]
          %v1860 = vld [vmem:[%s960 + $0x30] sm:$0xff]
          %v1861 = vld [vmem:[%s960 + $0x38] sm:$0xff]
          %v1862 = vld [vmem:[%s960 + $0x40] sm:$0xff]
          %v1863 = vld [vmem:[%s960 + $0x48] sm:$0xff]
          %v1864 = vld [vmem:[%s960 + $0x50] sm:$0xff]
          %v1865 = vld [vmem:[%s960 + $0x58] sm:$0xff]
          %v1866 = vld [vmem:[%s960 + $0x60] sm:$0xff]
          %v1867 = vld [vmem:[%s960 + $0x68] sm:$0xff]
          %v1868 = vld [vmem:[%s960 + $0x70] sm:$0xff]
          %v1869 = vld [vmem:[%s960 + $0x78] sm:$0xff]
          %v1870 = vld [vmem:[%s960 + $0x80] sm:$0xff]
          %v1871 = vld [vmem:[%s960 + $0x88] sm:$0xff]
          %v1872 = vld [vmem:[%s960 + $0x90] sm:$0xff]
          %v1873 = vld [vmem:[%s960 + $0x98] sm:$0xff]
          %v1874 = vld [vmem:[%s960 + $0xa0] sm:$0xff]
          %v1875 = vld [vmem:[%s960 + $0xa8] sm:$0xff]
          %v1876 = vld [vmem:[%s960 + $0xb0] sm:$0xff]
          %v1877 = vld [vmem:[%s960 + $0xb8] sm:$0xff]
          %v1878 = vld [vmem:[%s960 + $0xc0] sm:$0xff]
          %v1879 = vld [vmem:[%s960 + $0xc8] sm:$0xff]
          %v1880 = vld [vmem:[%s960 + $0xd0] sm:$0xff]
          %v1881 = vld [vmem:[%s960 + $0xd8] sm:$0xff]
          %v1882 = vld [vmem:[%s960 + $0xe0] sm:$0xff]
          %v1883 = vld [vmem:[%s960 + $0xe8] sm:$0xff]
          %v1884 = vld [vmem:[%s960 + $0xf0] sm:$0xff]
          %v1885 = vld [vmem:[%s960 + $0xf8] sm:$0xff]
          %v1886 = vld [vmem:[%s1123] sm:$0x3]
          %v1888 = vlaneseq
          %v1889 = vshrl.u32 %v1888, 7
          %v1890 = vsub.s32 0, %v1889
          %v1891 = vrot.slane %v1886, %v1890
          %v1892 = vlaneseq
          %v1893 = vshrl.u32 %v1892, 7
          %v1894 = vsub.s32 1, %v1893
          %v1895 = vrot.slane %v1886, %v1894
          %v1930 = vunpack.c.l.b16 %v1854
          %v1931 = vunpack.c.h.b16 %v1854
          %v1932 = vunpack.c.l.b16 %v1855
          %v1933 = vunpack.c.h.b16 %v1855
          %v1934 = vunpack.c.l.b16 %v1856
          %v1935 = vunpack.c.h.b16 %v1856
          %v1936 = vunpack.c.l.b16 %v1857
          %v1937 = vunpack.c.h.b16 %v1857
          %v1938 = vunpack.c.l.b16 %v1858
          %v1939 = vunpack.c.h.b16 %v1858
          %v1940 = vunpack.c.l.b16 %v1859
          %v1941 = vunpack.c.h.b16 %v1859
          %v1942 = vunpack.c.l.b16 %v1860
          %v1943 = vunpack.c.h.b16 %v1860
          %v1944 = vunpack.c.l.b16 %v1861
          %v1945 = vunpack.c.h.b16 %v1861
          %v1946 = vunpack.c.l.b16 %v1862
          %v1947 = vunpack.c.h.b16 %v1862
          %v1948 = vunpack.c.l.b16 %v1863
          %v1949 = vunpack.c.h.b16 %v1863
          %v1950 = vunpack.c.l.b16 %v1864
          %v1951 = vunpack.c.h.b16 %v1864
          %v1952 = vunpack.c.l.b16 %v1865
          %v1953 = vunpack.c.h.b16 %v1865
          %v1954 = vunpack.c.l.b16 %v1866
          %v1955 = vunpack.c.h.b16 %v1866
          %v1956 = vunpack.c.l.b16 %v1867
          %v1957 = vunpack.c.h.b16 %v1867
          %v1958 = vunpack.c.l.b16 %v1868
          %v1959 = vunpack.c.h.b16 %v1868
          %v1960 = vunpack.c.l.b16 %v1869
          %v1961 = vunpack.c.h.b16 %v1869
          %v1962 = vunpack.c.l.b16 %v1870
          %v1963 = vunpack.c.h.b16 %v1870
          %v1964 = vunpack.c.l.b16 %v1871
          %v1965 = vunpack.c.h.b16 %v1871
          %v1966 = vunpack.c.l.b16 %v1872
          %v1967 = vunpack.c.h.b16 %v1872
          %v1968 = vunpack.c.l.b16 %v1873
          %v1969 = vunpack.c.h.b16 %v1873
          %v1970 = vunpack.c.l.b16 %v1874
          %v1971 = vunpack.c.h.b16 %v1874
          %v1972 = vunpack.c.l.b16 %v1875
          %v1973 = vunpack.c.h.b16 %v1875
          %v1974 = vunpack.c.l.b16 %v1876
          %v1975 = vunpack.c.h.b16 %v1876
          %v1976 = vunpack.c.l.b16 %v1877
          %v1977 = vunpack.c.h.b16 %v1877
          %v1978 = vunpack.c.l.b16 %v1878
          %v1979 = vunpack.c.h.b16 %v1878
          %v1980 = vunpack.c.l.b16 %v1879
          %v1981 = vunpack.c.h.b16 %v1879
          %v1982 = vunpack.c.l.b16 %v1880
          %v1983 = vunpack.c.h.b16 %v1880
          %v1984 = vunpack.c.l.b16 %v1881
          %v1985 = vunpack.c.h.b16 %v1881
          %v1986 = vunpack.c.l.b16 %v1882
          %v1987 = vunpack.c.h.b16 %v1882
          %v1988 = vunpack.c.l.b16 %v1883
          %v1989 = vunpack.c.h.b16 %v1883
          %v1990 = vunpack.c.l.b16 %v1884
          %v1991 = vunpack.c.h.b16 %v1884
          %v1992 = vunpack.c.l.b16 %v1885
          %v1993 = vunpack.c.h.b16 %v1885
          %v1994 = vpack.c.b16 %v1932, %v1930
          %v1995 = vpack.c.b16 %v1933, %v1931
          %v1996 = vpack.c.b16 %v1936, %v1934
          %v1997 = vpack.c.b16 %v1937, %v1935
          %v1998 = vpack.c.b16 %v1940, %v1938
          %v1999 = vpack.c.b16 %v1941, %v1939
          %v2000 = vpack.c.b16 %v1944, %v1942
          %v2001 = vpack.c.b16 %v1945, %v1943
          %v2002 = vpack.c.b16 %v1948, %v1946
          %v2003 = vpack.c.b16 %v1949, %v1947
          %v2004 = vpack.c.b16 %v1952, %v1950
          %v2005 = vpack.c.b16 %v1953, %v1951
          %v2006 = vpack.c.b16 %v1956, %v1954
          %v2007 = vpack.c.b16 %v1957, %v1955
          %v2008 = vpack.c.b16 %v1960, %v1958
          %v2009 = vpack.c.b16 %v1961, %v1959
          %v2010 = vpack.c.b16 %v1964, %v1962
          %v2011 = vpack.c.b16 %v1965, %v1963
          %v2012 = vpack.c.b16 %v1968, %v1966
          %v2013 = vpack.c.b16 %v1969, %v1967
          %v2014 = vpack.c.b16 %v1972, %v1970
          %v2015 = vpack.c.b16 %v1973, %v1971
          %v2016 = vpack.c.b16 %v1976, %v1974
          %v2017 = vpack.c.b16 %v1977, %v1975
          %v2018 = vpack.c.b16 %v1980, %v1978
          %v2019 = vpack.c.b16 %v1981, %v1979
          %v2020 = vpack.c.b16 %v1984, %v1982
          %v2021 = vpack.c.b16 %v1985, %v1983
          %v2022 = vpack.c.b16 %v1988, %v1986
          %v2023 = vpack.c.b16 %v1989, %v1987
          %v2024 = vpack.c.b16 %v1992, %v1990
          %v2025 = vpack.c.b16 %v1993, %v1991
          %2058 = vmatprep.subr.bf16.mxu0 %v1995
          %2059 = vmatpush1.bf16.msra.mxu0 %v1994
          %2060 = vmatprep.subr.bf16.mxu0 %v1997
          %2061 = vmatpush1.bf16.msra.mxu0 %v1996
          %2062 = vmatprep.subr.bf16.mxu0 %v1999
          %2063 = vmatpush1.bf16.msra.mxu0 %v1998
          %2064 = vmatprep.subr.bf16.mxu0 %v2001
          %2065 = vmatpush1.bf16.msra.mxu0 %v2000
          %2066 = vmatprep.subr.bf16.mxu0 %v2003
          %2067 = vmatpush1.bf16.msra.mxu0 %v2002
          %2068 = vmatprep.subr.bf16.mxu0 %v2005
          %2069 = vmatpush1.bf16.msra.mxu0 %v2004
          %2070 = vmatprep.subr.bf16.mxu0 %v2007
          %2071 = vmatpush1.bf16.msra.mxu0 %v2006
          %2072 = vmatprep.subr.bf16.mxu0 %v2009
          %2073 = vmatpush1.bf16.msra.mxu0 %v2008
          %2074 = vmatprep.subr.bf16.mxu0 %v2011
          %2075 = vmatpush1.bf16.msra.mxu0 %v2010
          %2076 = vmatprep.subr.bf16.mxu0 %v2013
          %2077 = vmatpush1.bf16.msra.mxu0 %v2012
          %2078 = vmatprep.subr.bf16.mxu0 %v2015
          %2079 = vmatpush1.bf16.msra.mxu0 %v2014
          %2080 = vmatprep.subr.bf16.mxu0 %v2017
          %2081 = vmatpush1.bf16.msra.mxu0 %v2016
          %2082 = vmatprep.subr.bf16.mxu0 %v2019
          %2083 = vmatpush1.bf16.msra.mxu0 %v2018
          %2084 = vmatprep.subr.bf16.mxu0 %v2021
          %2085 = vmatpush1.bf16.msra.mxu0 %v2020
          %2086 = vmatprep.subr.bf16.mxu0 %v2023
          %2087 = vmatpush1.bf16.msra.mxu0 %v2022
          %2088 = vmatprep.subr.bf16.mxu0 %v2025
          %2089 = vmatpush1.bf16.msra.mxu0 %v2024
          %2090 = vmatprep.mubr.bf16.mxu0 %v1337
          %2091 = vmatmul.mubr.bf16.gmra.mrb[0].mxu0 %v1336
          %v2092 = vpop.f32.mrb[0].mxu0
          %v2093 = vadd.f32 %v1891, %v2092
          %v2094 = vpop.f32.mrb[0].mxu0
          %v2095 = vadd.f32 %v1895, %v2094
          %v2096 = vpop.f32.mrb[0].mxu0
          %v2097 = vadd.f32 %v1891, %v2096
          %v2098 = vpop.f32.mrb[0].mxu0
          %v2099 = vadd.f32 %v1895, %v2098
          %2100 = vmatprep.mubr.bf16.mxu0 %v1339
          %2101 = vmatmul.mubr.bf16.gmra.mrb[0].mxu0 %v1338
          %v2102 = vpop.f32.mrb[0].mxu0
          %v2103 = vadd.f32 %v1891, %v2102
          %v2104 = vpop.f32.mrb[0].mxu0
          %v2105 = vadd.f32 %v1895, %v2104
          %v2106 = vpop.f32.mrb[0].mxu0
          %v2107 = vadd.f32 %v1891, %v2106
          %v2108 = vpop.f32.mrb[0].mxu0
          %v2109 = vadd.f32 %v1895, %v2108
          %2110 = vdwg.mxu0
          %v2111 = vpack.c.bf16 %v1583, %v1579
          %v2112 = vpack.c.bf16 %v1585, %v1581
          %v2113 = vpack.c.bf16 %v1593, %v1589
          %v2114 = vpack.c.bf16 %v1595, %v1591
          %v2115 = vpack.c.bf16 %v1840, %v1836
          %v2116 = vpack.c.bf16 %v1842, %v1838
          %v2117 = vpack.c.bf16 %v1850, %v1846
          %v2118 = vpack.c.bf16 %v1852, %v1848
          %v2119 = vpack.c.bf16 %v2097, %v2093
          %v2120 = vpack.c.bf16 %v2099, %v2095
          %v2121 = vpack.c.bf16 %v2107, %v2103
          %v2122 = vpack.c.bf16 %v2109, %v2105
          %2123 = vmatprep.subr.bf16.mxu0 0
          %2124 = vmatpush1.bf16.xpose.msra.mxu0 %v2115
          %2125 = vmatprep.subr.bf16.mxu0 0
          %2126 = vmatpush1.bf16.xpose.msra.mxu0 0
          %2127 = vmatprep.subr.bf16.mxu0 0
          %2128 = vmatpush1.bf16.xpose.msra.mxu0 0
          %2129 = vmatprep.subr.bf16.mxu0 0
          %2130 = vmatpush1.bf16.xpose.msra.mxu0 0
          %2131 = vmatprep.subr.bf16.mxu0 0
          %2132 = vmatpush1.bf16.xpose.msra.mxu0 0
          %2133 = vmatprep.subr.bf16.mxu0 0
          %2134 = vmatpush1.bf16.xpose.msra.mxu0 0
          %2135 = vmatprep.subr.bf16.mxu0 0
          %2136 = vmatpush1.bf16.xpose.msra.mxu0 0
          %2137 = vmatprep.subr.bf16.mxu0 0
          %2138 = vmatpush1.bf16.xpose.msra.mxu0 0
          %2139 = vmatprep.subr.bf16.mxu0 0
          %2140 = vmatpush1.bf16.xpose.msra.mxu0 0
          %2141 = vmatprep.subr.bf16.mxu0 0
          %2142 = vmatpush1.bf16.xpose.msra.mxu0 0
          %2143 = vmatprep.subr.bf16.mxu0 0
          %2144 = vmatpush1.bf16.xpose.msra.mxu0 0
          %2145 = vmatprep.subr.bf16.mxu0 0
          %2146 = vmatpush1.bf16.xpose.msra.mxu0 0
          %2147 = vmatprep.subr.bf16.mxu0 0
          %2148 = vmatpush1.bf16.xpose.msra.mxu0 0
          %2149 = vmatprep.subr.bf16.mxu0 0
          %2150 = vmatpush1.bf16.xpose.msra.mxu0 0
          %2151 = vmatprep.subr.bf16.mxu0 0
          %2152 = vmatpush1.bf16.xpose.msra.mxu0 0
          %2153 = vmatprep.subr.bf16.mxu0 0
          %2154 = vmatpush1.bf16.xpose.msra.mxu0 0
          %2155 = vmatprep.mubr.bf16.mxu0 0
          %2156 = vmatmul.mubr.bf16.gmra.mrb[0].mxu0 %v2111
          %v2157 = vpop.f32.mrb[0].mxu0
          %v2158 = vadd.f32 0.0, %v2157
          %v2159 = vpop.f32.mrb[0].mxu0
          %v2160 = vpop.f32.mrb[0].mxu0
          %v2161 = vadd.f32 0.0, %v2160
          %v2162 = vpop.f32.mrb[0].mxu0
          %2163 = vdwg.mxu0
          %2164 = vmatprep.subr.bf16.mxu0 0
          %2165 = vmatpush1.bf16.xpose.msra.mxu0 %v2117
          %2166 = vmatprep.subr.bf16.mxu0 0
          %2167 = vmatpush1.bf16.xpose.msra.mxu0 0
          %2168 = vmatprep.subr.bf16.mxu0 0
          %2169 = vmatpush1.bf16.xpose.msra.mxu0 0
          %2170 = vmatprep.subr.bf16.mxu0 0
          %2171 = vmatpush1.bf16.xpose.msra.mxu0 0
          %2172 = vmatprep.subr.bf16.mxu0 0
          %2173 = vmatpush1.bf16.xpose.msra.mxu0 0
          %2174 = vmatprep.subr.bf16.mxu0 0
          %2175 = vmatpush1.bf16.xpose.msra.mxu0 0
          %2176 = vmatprep.subr.bf16.mxu0 0
          %2177 = vmatpush1.bf16.xpose.msra.mxu0 0
          %2178 = vmatprep.subr.bf16.mxu0 0
          %2179 = vmatpush1.bf16.xpose.msra.mxu0 0
          %2180 = vmatprep.subr.bf16.mxu0 0
          %2181 = vmatpush1.bf16.xpose.msra.mxu0 0
          %2182 = vmatprep.subr.bf16.mxu0 0
          %2183 = vmatpush1.bf16.xpose.msra.mxu0 0
          %2184 = vmatprep.subr.bf16.mxu0 0
          %2185 = vmatpush1.bf16.xpose.msra.mxu0 0
          %2186 = vmatprep.subr.bf16.mxu0 0
          %2187 = vmatpush1.bf16.xpose.msra.mxu0 0
          %2188 = vmatprep.subr.bf16.mxu0 0
          %2189 = vmatpush1.bf16.xpose.msra.mxu0 0
          %2190 = vmatprep.subr.bf16.mxu0 0
          %2191 = vmatpush1.bf16.xpose.msra.mxu0 0
          %2192 = vmatprep.subr.bf16.mxu0 0
          %2193 = vmatpush1.bf16.xpose.msra.mxu0 0
          %2194 = vmatprep.subr.bf16.mxu0 0
          %2195 = vmatpush1.bf16.xpose.msra.mxu0 0
          %2196 = vmatprep.mubr.bf16.mxu0 0
          %2197 = vmatmul.mubr.bf16.gmra.mrb[0].mxu0 %v2113
          %v2198 = vpop.f32.mrb[0].mxu0
          %v2199 = vadd.f32 0.0, %v2198
          %v2200 = vpop.f32.mrb[0].mxu0
          %v2201 = vpop.f32.mrb[0].mxu0
          %v2202 = vadd.f32 0.0, %v2201
          %v2203 = vpop.f32.mrb[0].mxu0
          %2204 = vdwg.mxu0
          %2205 = vmatprep.subr.bf16.mxu0 0
          %2206 = vmatpush1.bf16.xpose.msra.mxu0 %v2116
          %2207 = vmatprep.subr.bf16.mxu0 0
          %2208 = vmatpush1.bf16.xpose.msra.mxu0 0
          %2209 = vmatprep.subr.bf16.mxu0 0
          %2210 = vmatpush1.bf16.xpose.msra.mxu0 0
          %2211 = vmatprep.subr.bf16.mxu0 0
          %2212 = vmatpush1.bf16.xpose.msra.mxu0 0
          %2213 = vmatprep.subr.bf16.mxu0 0
          %2214 = vmatpush1.bf16.xpose.msra.mxu0 0
          %2215 = vmatprep.subr.bf16.mxu0 0
          %2216 = vmatpush1.bf16.xpose.msra.mxu0 0
          %2217 = vmatprep.subr.bf16.mxu0 0
          %2218 = vmatpush1.bf16.xpose.msra.mxu0 0
          %2219 = vmatprep.subr.bf16.mxu0 0
          %2220 = vmatpush1.bf16.xpose.msra.mxu0 0
          %2221 = vmatprep.subr.bf16.mxu0 0
          %2222 = vmatpush1.bf16.xpose.msra.mxu0 0
          %2223 = vmatprep.subr.bf16.mxu0 0
          %2224 = vmatpush1.bf16.xpose.msra.mxu0 0
          %2225 = vmatprep.subr.bf16.mxu0 0
          %2226 = vmatpush1.bf16.xpose.msra.mxu0 0
          %2227 = vmatprep.subr.bf16.mxu0 0
          %2228 = vmatpush1.bf16.xpose.msra.mxu0 0
          %2229 = vmatprep.subr.bf16.mxu0 0
          %2230 = vmatpush1.bf16.xpose.msra.mxu0 0
          %2231 = vmatprep.subr.bf16.mxu0 0
          %2232 = vmatpush1.bf16.xpose.msra.mxu0 0
          %2233 = vmatprep.subr.bf16.mxu0 0
          %2234 = vmatpush1.bf16.xpose.msra.mxu0 0
          %2235 = vmatprep.subr.bf16.mxu0 0
          %2236 = vmatpush1.bf16.xpose.msra.mxu0 0
          %2237 = vmatprep.mubr.bf16.mxu0 0
          %2238 = vmatmul.mubr.bf16.gmra.mrb[0].mxu0 %v2112
          %v2239 = vpop.f32.mrb[0].mxu0
          %v2240 = vadd.f32 0.0, %v2239
          %v2241 = vpop.f32.mrb[0].mxu0
          %v2242 = vpop.f32.mrb[0].mxu0
          %v2243 = vadd.f32 0.0, %v2242
          %v2244 = vpop.f32.mrb[0].mxu0
          %2245 = vdwg.mxu0
          %2246 = vmatprep.subr.bf16.mxu0 0
          %2247 = vmatpush1.bf16.xpose.msra.mxu0 %v2118
          %2248 = vmatprep.subr.bf16.mxu0 0
          %2249 = vmatpush1.bf16.xpose.msra.mxu0 0
          %2250 = vmatprep.subr.bf16.mxu0 0
          %2251 = vmatpush1.bf16.xpose.msra.mxu0 0
          %2252 = vmatprep.subr.bf16.mxu0 0
          %2253 = vmatpush1.bf16.xpose.msra.mxu0 0
          %2254 = vmatprep.subr.bf16.mxu0 0
          %2255 = vmatpush1.bf16.xpose.msra.mxu0 0
          %2256 = vmatprep.subr.bf16.mxu0 0
          %2257 = vmatpush1.bf16.xpose.msra.mxu0 0
          %2258 = vmatprep.subr.bf16.mxu0 0
          %2259 = vmatpush1.bf16.xpose.msra.mxu0 0
          %2260 = vmatprep.subr.bf16.mxu0 0
          %2261 = vmatpush1.bf16.xpose.msra.mxu0 0
          %2262 = vmatprep.subr.bf16.mxu0 0
          %2263 = vmatpush1.bf16.xpose.msra.mxu0 0
          %2264 = vmatprep.subr.bf16.mxu0 0
          %2265 = vmatpush1.bf16.xpose.msra.mxu0 0
          %2266 = vmatprep.subr.bf16.mxu0 0
          %2267 = vmatpush1.bf16.xpose.msra.mxu0 0
          %2268 = vmatprep.subr.bf16.mxu0 0
          %2269 = vmatpush1.bf16.xpose.msra.mxu0 0
          %2270 = vmatprep.subr.bf16.mxu0 0
          %2271 = vmatpush1.bf16.xpose.msra.mxu0 0
          %2272 = vmatprep.subr.bf16.mxu0 0
          %2273 = vmatpush1.bf16.xpose.msra.mxu0 0
          %2274 = vmatprep.subr.bf16.mxu0 0
          %2275 = vmatpush1.bf16.xpose.msra.mxu0 0
          %2276 = vmatprep.subr.bf16.mxu0 0
          %2277 = vmatpush1.bf16.xpose.msra.mxu0 0
          %2278 = vmatprep.mubr.bf16.mxu0 0
          %2279 = vmatmul.mubr.bf16.gmra.mrb[0].mxu0 %v2114
          %v2280 = vpop.f32.mrb[0].mxu0
          %v2281 = vadd.f32 0.0, %v2280
          %v2282 = vpop.f32.mrb[0].mxu0
          %v2283 = vpop.f32.mrb[0].mxu0
          %v2284 = vadd.f32 0.0, %v2283
          %v2285 = vpop.f32.mrb[0].mxu0
          %2286 = vdwg.mxu0
          %v2287 = vmul.f32 %v2158, 0.088388346
          %v2288 = vmul.f32 %v2161, 0.088388346
          %v2289 = vmul.f32 %v2199, 0.088388346
          %v2290 = vmul.f32 %v2202, 0.088388346
          %v2291 = vmul.f32 %v2240, 0.088388346
          %v2292 = vmul.f32 %v2243, 0.088388346
          %v2293 = vmul.f32 %v2281, 0.088388346
          %v2294 = vmul.f32 %v2284, 0.088388346
          %v2295 = vld [vmem:[%s5] sm:$0x1]
          %v2296 = vld [vmem:[%s5 + $0x1] sm:$0x1]
          %v2297 = vld [vmem:[%s5 + $0x2] sm:$0x1]
          %v2298 = vld [vmem:[%s5 + $0x3] sm:$0x1]
          %v2303 = vlaneseq
          %v2304 = vshrl.u32 %v2303, 7
          %v2305 = vsub.s32 0, %v2304
          %v2306 = vrot.slane %v2295, %v2305
          %v2307 = vlaneseq
          %v2308 = vshrl.u32 %v2307, 7
          %v2309 = vsub.s32 0, %v2308
          %v2310 = vrot.slane %v2296, %v2309
          %v2311 = vlaneseq
          %v2312 = vshrl.u32 %v2311, 7
          %v2313 = vsub.s32 0, %v2312
          %v2314 = vrot.slane %v2297, %v2313
          %v2315 = vlaneseq
          %v2316 = vshrl.u32 %v2315, 7
          %v2317 = vsub.s32 0, %v2316
          %v2318 = vrot.slane %v2298, %v2317
          %v2323 = vadd.f32 %v2287, %v2306
          %v2324 = vadd.f32 %v2288, %v2306
          %v2325 = vadd.f32 %v2289, %v2310
          %v2326 = vadd.f32 %v2290, %v2310
          %v2327 = vadd.f32 %v2291, %v2314
          %v2328 = vadd.f32 %v2292, %v2314
          %v2329 = vadd.f32 %v2293, %v2318
          %v2330 = vadd.f32 %v2294, %v2318
          %vm2331 = vcmask 130048
          %v2332 = vsel %vm2331, %v2323, -inf
          %2333 = vmax.xlane.f32.xlu0 %v2332
          %v2334 = vpop.xlane.xlu0 %2333
          %v2335 = vsel %vm2331, %v2324, -inf
          %2336 = vmax.xlane.f32.xlu0 %v2335
          %v2337 = vpop.xlane.xlu0 %2336
          %v2338 = vsel %vm2331, %v2325, -inf
          %2339 = vmax.xlane.f32.xlu0 %v2338
          %v2340 = vpop.xlane.xlu0 %2339
          %v2341 = vsel %vm2331, %v2326, -inf
          %2342 = vmax.xlane.f32.xlu0 %v2341
          %v2343 = vpop.xlane.xlu0 %2342
          %v2344 = vsel %vm2331, %v2327, -inf
          %2345 = vmax.xlane.f32.xlu0 %v2344
          %v2346 = vpop.xlane.xlu0 %2345
          %v2347 = vsel %vm2331, %v2328, -inf
          %2348 = vmax.xlane.f32.xlu0 %v2347
          %v2349 = vpop.xlane.xlu0 %2348
          %v2350 = vsel %vm2331, %v2329, -inf
          %2351 = vmax.xlane.f32.xlu0 %v2350
          %v2352 = vpop.xlane.xlu0 %2351
          %v2353 = vsel %vm2331, %v2330, -inf
          %2354 = vmax.xlane.f32.xlu0 %v2353
          %v2355 = vpop.xlane.xlu0 %2354
          %v2356 = vsub.f32 %v2323, %v2334
          %v2357 = vsub.f32 %v2324, %v2337
          %v2358 = vsub.f32 %v2325, %v2340
          %v2359 = vsub.f32 %v2326, %v2343
          %v2360 = vsub.f32 %v2327, %v2346
          %v2361 = vsub.f32 %v2328, %v2349
          %v2362 = vsub.f32 %v2329, %v2352
          %v2363 = vsub.f32 %v2330, %v2355
          %v2364 = vmul.f32 %v2356, 1.442695
          %v2365 = vpow.pop %v2364
          %v2366 = vmul.f32 %v2357, 1.442695
          %v2367 = vpow.pop %v2366
          %v2368 = vmul.f32 %v2358, 1.442695
          %v2369 = vpow.pop %v2368
          %v2370 = vmul.f32 %v2359, 1.442695
          %v2371 = vpow.pop %v2370
          %v2372 = vmul.f32 %v2360, 1.442695
          %v2373 = vpow.pop %v2372
          %v2374 = vmul.f32 %v2361, 1.442695
          %v2375 = vpow.pop %v2374
          %v2376 = vmul.f32 %v2362, 1.442695
          %v2377 = vpow.pop %v2376
          %v2378 = vmul.f32 %v2363, 1.442695
          %v2379 = vpow.pop %v2378
          %v2380 = vsel %vm2331, %v2365, 0.0
          %2381 = vadd.xlane.f32.xlu0 %v2380
          %v2382 = vpop.xlane.xlu0 %2381
          %v2383 = vsel %vm2331, %v2367, 0.0
          %2384 = vadd.xlane.f32.xlu0 %v2383
          %v2385 = vpop.xlane.xlu0 %2384
          %v2386 = vsel %vm2331, %v2369, 0.0
          %2387 = vadd.xlane.f32.xlu0 %v2386
          %v2388 = vpop.xlane.xlu0 %2387
          %v2389 = vsel %vm2331, %v2371, 0.0
          %2390 = vadd.xlane.f32.xlu0 %v2389
          %v2391 = vpop.xlane.xlu0 %2390
          %v2392 = vsel %vm2331, %v2373, 0.0
          %2393 = vadd.xlane.f32.xlu0 %v2392
          %v2394 = vpop.xlane.xlu0 %2393
          %v2395 = vsel %vm2331, %v2375, 0.0
          %2396 = vadd.xlane.f32.xlu0 %v2395
          %v2397 = vpop.xlane.xlu0 %2396
          %v2398 = vsel %vm2331, %v2377, 0.0
          %2399 = vadd.xlane.f32.xlu0 %v2398
          %v2400 = vpop.xlane.xlu0 %2399
          %v2401 = vsel %vm2331, %v2379, 0.0
          %2402 = vadd.xlane.f32.xlu0 %v2401
          %v2403 = vpop.xlane.xlu0 %2402
          %v2404 = vrcp.pop %v2382
          %v2405 = vrcp.pop %v2385
          %v2406 = vrcp.pop %v2388
          %v2407 = vrcp.pop %v2391
          %v2408 = vrcp.pop %v2394
          %v2409 = vrcp.pop %v2397
          %v2410 = vrcp.pop %v2400
          %v2411 = vrcp.pop %v2403
          %v2412 = vmul.f32 %v2365, %v2404
          %v2413 = vmul.f32 %v2367, %v2405
          %v2414 = vmul.f32 %v2369, %v2406
          %v2415 = vmul.f32 %v2371, %v2407
          %v2416 = vmul.f32 %v2373, %v2408
          %v2417 = vmul.f32 %v2375, %v2409
          %v2418 = vmul.f32 %v2377, %v2410
          %v2419 = vmul.f32 %v2379, %v2411
          %v2420 = vpack.c.bf16 %v2413, %v2412
          %v2421 = vpack.c.bf16 %v2415, %v2414
          %v2422 = vpack.c.bf16 %v2417, %v2416
          %v2423 = vpack.c.bf16 %v2419, %v2418
          %v2425 = vsel %vm2331, %v2420, 0
          %2427 = vmatprep.subr.bf16.mxu0 0
          %2428 = vmatpush1.bf16.msra.mxu0 %v2119
          %2429 = vmatprep.subr.bf16.mxu0 0
          %2430 = vmatpush1.bf16.msra.mxu0 0
          %2431 = vmatprep.subr.bf16.mxu0 0
          %2432 = vmatpush1.bf16.msra.mxu0 0
          %2433 = vmatprep.subr.bf16.mxu0 0
          %2434 = vmatpush1.bf16.msra.mxu0 0
          %2435 = vmatprep.subr.bf16.mxu0 0
          %2436 = vmatpush1.bf16.msra.mxu0 0
          %2437 = vmatprep.subr.bf16.mxu0 0
          %2438 = vmatpush1.bf16.msra.mxu0 0
          %2439 = vmatprep.subr.bf16.mxu0 0
          %2440 = vmatpush1.bf16.msra.mxu0 0
          %2441 = vmatprep.subr.bf16.mxu0 0
          %2442 = vmatpush1.bf16.msra.mxu0 0
          %2443 = vmatprep.subr.bf16.mxu0 0
          %2444 = vmatpush1.bf16.msra.mxu0 0
          %2445 = vmatprep.subr.bf16.mxu0 0
          %2446 = vmatpush1.bf16.msra.mxu0 0
          %2447 = vmatprep.subr.bf16.mxu0 0
          %2448 = vmatpush1.bf16.msra.mxu0 0
          %2449 = vmatprep.subr.bf16.mxu0 0
          %2450 = vmatpush1.bf16.msra.mxu0 0
          %2451 = vmatprep.subr.bf16.mxu0 0
          %2452 = vmatpush1.bf16.msra.mxu0 0
          %2453 = vmatprep.subr.bf16.mxu0 0
          %2454 = vmatpush1.bf16.msra.mxu0 0
          %2455 = vmatprep.subr.bf16.mxu0 0
          %2456 = vmatpush1.bf16.msra.mxu0 0
          %2457 = vmatprep.subr.bf16.mxu0 0
          %2458 = vmatpush1.bf16.msra.mxu0 0
          %2459 = vmatprep.mubr.bf16.mxu0 0
          %2460 = vmatmul.mubr.bf16.gmra.mrb[0].mxu0 %v2425
          %v2461 = vpop.f32.mrb[0].mxu0
          %v2462 = vadd.f32 0.0, %v2461
          %v2463 = vpop.f32.mrb[0].mxu0
          %v2464 = vpop.f32.mrb[0].mxu0
          %v2465 = vadd.f32 0.0, %v2464
          %v2466 = vpop.f32.mrb[0].mxu0
          %2467 = vdwg.mxu0
          %v2469 = vsel %vm2331, %v2421, 0
          %2471 = vmatprep.subr.bf16.mxu0 0
          %2472 = vmatpush1.bf16.msra.mxu0 %v2121
          %2473 = vmatprep.subr.bf16.mxu0 0
          %2474 = vmatpush1.bf16.msra.mxu0 0
          %2475 = vmatprep.subr.bf16.mxu0 0
          %2476 = vmatpush1.bf16.msra.mxu0 0
          %2477 = vmatprep.subr.bf16.mxu0 0
          %2478 = vmatpush1.bf16.msra.mxu0 0
          %2479 = vmatprep.subr.bf16.mxu0 0
          %2480 = vmatpush1.bf16.msra.mxu0 0
          %2481 = vmatprep.subr.bf16.mxu0 0
          %2482 = vmatpush1.bf16.msra.mxu0 0
          %2483 = vmatprep.subr.bf16.mxu0 0
          %2484 = vmatpush1.bf16.msra.mxu0 0
          %2485 = vmatprep.subr.bf16.mxu0 0
          %2486 = vmatpush1.bf16.msra.mxu0 0
          %2487 = vmatprep.subr.bf16.mxu0 0
          %2488 = vmatpush1.bf16.msra.mxu0 0
          %2489 = vmatprep.subr.bf16.mxu0 0
          %2490 = vmatpush1.bf16.msra.mxu0 0
          %2491 = vmatprep.subr.bf16.mxu0 0
          %2492 = vmatpush1.bf16.msra.mxu0 0
          %2493 = vmatprep.subr.bf16.mxu0 0
          %2494 = vmatpush1.bf16.msra.mxu0 0
          %2495 = vmatprep.subr.bf16.mxu0 0
          %2496 = vmatpush1.bf16.msra.mxu0 0
          %2497 = vmatprep.subr.bf16.mxu0 0
          %2498 = vmatpush1.bf16.msra.mxu0 0
          %2499 = vmatprep.subr.bf16.mxu0 0
          %2500 = vmatpush1.bf16.msra.mxu0 0
          %2501 = vmatprep.subr.bf16.mxu0 0
          %2502 = vmatpush1.bf16.msra.mxu0 0
          %2503 = vmatprep.mubr.bf16.mxu0 0
          %2504 = vmatmul.mubr.bf16.gmra.mrb[0].mxu0 %v2469
          %v2505 = vpop.f32.mrb[0].mxu0
          %v2506 = vadd.f32 0.0, %v2505
          %v2507 = vpop.f32.mrb[0].mxu0
          %v2508 = vpop.f32.mrb[0].mxu0
          %v2509 = vadd.f32 0.0, %v2508
          %v2510 = vpop.f32.mrb[0].mxu0
          %2511 = vdwg.mxu0
          %v2513 = vsel %vm2331, %v2422, 0
          %2515 = vmatprep.subr.bf16.mxu0 0
          %2516 = vmatpush1.bf16.msra.mxu0 %v2120
          %2517 = vmatprep.subr.bf16.mxu0 0
          %2518 = vmatpush1.bf16.msra.mxu0 0
          %2519 = vmatprep.subr.bf16.mxu0 0
          %2520 = vmatpush1.bf16.msra.mxu0 0
          %2521 = vmatprep.subr.bf16.mxu0 0
          %2522 = vmatpush1.bf16.msra.mxu0 0
          %2523 = vmatprep.subr.bf16.mxu0 0
          %2524 = vmatpush1.bf16.msra.mxu0 0
          %2525 = vmatprep.subr.bf16.mxu0 0
          %2526 = vmatpush1.bf16.msra.mxu0 0
          %2527 = vmatprep.subr.bf16.mxu0 0
          %2528 = vmatpush1.bf16.msra.mxu0 0
          %2529 = vmatprep.subr.bf16.mxu0 0
          %2530 = vmatpush1.bf16.msra.mxu0 0
          %2531 = vmatprep.subr.bf16.mxu0 0
          %2532 = vmatpush1.bf16.msra.mxu0 0
          %2533 = vmatprep.subr.bf16.mxu0 0
          %2534 = vmatpush1.bf16.msra.mxu0 0
          %2535 = vmatprep.subr.bf16.mxu0 0
          %2536 = vmatpush1.bf16.msra.mxu0 0
          %2537 = vmatprep.subr.bf16.mxu0 0
          %2538 = vmatpush1.bf16.msra.mxu0 0
          %2539 = vmatprep.subr.bf16.mxu0 0
          %2540 = vmatpush1.bf16.msra.mxu0 0
          %2541 = vmatprep.subr.bf16.mxu0 0
          %2542 = vmatpush1.bf16.msra.mxu0 0
          %2543 = vmatprep.subr.bf16.mxu0 0
          %2544 = vmatpush1.bf16.msra.mxu0 0
          %2545 = vmatprep.subr.bf16.mxu0 0
          %2546 = vmatpush1.bf16.msra.mxu0 0
          %2547 = vmatprep.mubr.bf16.mxu0 0
          %2548 = vmatmul.mubr.bf16.gmra.mrb[0].mxu0 %v2513
          %v2549 = vpop.f32.mrb[0].mxu0
          %v2550 = vadd.f32 0.0, %v2549
          %v2551 = vpop.f32.mrb[0].mxu0
          %v2552 = vpop.f32.mrb[0].mxu0
          %v2553 = vadd.f32 0.0, %v2552
          %v2554 = vpop.f32.mrb[0].mxu0
          %2555 = vdwg.mxu0
          %v2557 = vsel %vm2331, %v2423, 0
          %2559 = vmatprep.subr.bf16.mxu0 0
          %2560 = vmatpush1.bf16.msra.mxu0 %v2122
          %2561 = vmatprep.subr.bf16.mxu0 0
          %2562 = vmatpush1.bf16.msra.mxu0 0
          %2563 = vmatprep.subr.bf16.mxu0 0
          %2564 = vmatpush1.bf16.msra.mxu0 0
          %2565 = vmatprep.subr.bf16.mxu0 0
          %2566 = vmatpush1.bf16.msra.mxu0 0
          %2567 = vmatprep.subr.bf16.mxu0 0
          %2568 = vmatpush1.bf16.msra.mxu0 0
          %2569 = vmatprep.subr.bf16.mxu0 0
          %2570 = vmatpush1.bf16.msra.mxu0 0
          %2571 = vmatprep.subr.bf16.mxu0 0
          %2572 = vmatpush1.bf16.msra.mxu0 0
          %2573 = vmatprep.subr.bf16.mxu0 0
          %2574 = vmatpush1.bf16.msra.mxu0 0
          %2575 = vmatprep.subr.bf16.mxu0 0
          %2576 = vmatpush1.bf16.msra.mxu0 0
          %2577 = vmatprep.subr.bf16.mxu0 0
          %2578 = vmatpush1.bf16.msra.mxu0 0
          %2579 = vmatprep.subr.bf16.mxu0 0
          %2580 = vmatpush1.bf16.msra.mxu0 0
          %2581 = vmatprep.subr.bf16.mxu0 0
          %2582 = vmatpush1.bf16.msra.mxu0 0
          %2583 = vmatprep.subr.bf16.mxu0 0
          %2584 = vmatpush1.bf16.msra.mxu0 0
          %2585 = vmatprep.subr.bf16.mxu0 0
          %2586 = vmatpush1.bf16.msra.mxu0 0
          %2587 = vmatprep.subr.bf16.mxu0 0
          %2588 = vmatpush1.bf16.msra.mxu0 0
          %2589 = vmatprep.subr.bf16.mxu0 0
          %2590 = vmatpush1.bf16.msra.mxu0 0
          %2591 = vmatprep.mubr.bf16.mxu0 0
          %2592 = vmatmul.mubr.bf16.gmra.mrb[0].mxu0 %v2557
          %v2593 = vpop.f32.mrb[0].mxu0
          %v2594 = vadd.f32 0.0, %v2593
          %v2595 = vpop.f32.mrb[0].mxu0
          %v2596 = vpop.f32.mrb[0].mxu0
          %v2597 = vadd.f32 0.0, %v2596
          %v2598 = vpop.f32.mrb[0].mxu0
          %2599 = vdwg.mxu0
          %v2600 = vpack.c.bf16 %v2465, %v2462
          %v2601 = vpack.c.bf16 %v2553, %v2550
          %v2602 = vpack.c.bf16 %v2509, %v2506
          %v2603 = vpack.c.bf16 %v2597, %v2594
          %v2604 = vld [vmem:[%s969] sm:$0xff]
          %v2605 = vld [vmem:[%s969 + $0x8] sm:$0xff]
          %v2606 = vld [vmem:[%s969 + $0x10] sm:$0xff]
          %v2607 = vld [vmem:[%s969 + $0x18] sm:$0xff]
          %v2608 = vld [vmem:[%s969 + $0x20] sm:$0xff]
          %v2609 = vld [vmem:[%s969 + $0x28] sm:$0xff]
          %v2610 = vld [vmem:[%s969 + $0x30] sm:$0xff]
          %v2611 = vld [vmem:[%s969 + $0x38] sm:$0xff]
          %v2612 = vld [vmem:[%s969 + $0x40] sm:$0xff]
          %v2613 = vld [vmem:[%s969 + $0x48] sm:$0xff]
          %v2614 = vld [vmem:[%s969 + $0x50] sm:$0xff]
          %v2615 = vld [vmem:[%s969 + $0x58] sm:$0xff]
          %v2616 = vld [vmem:[%s969 + $0x60] sm:$0xff]
          %v2617 = vld [vmem:[%s969 + $0x68] sm:$0xff]
          %v2618 = vld [vmem:[%s969 + $0x70] sm:$0xff]
          %v2619 = vld [vmem:[%s969 + $0x78] sm:$0xff]
          %v2620 = vld [vmem:[%s969 + $0x80] sm:$0xff]
          %v2621 = vld [vmem:[%s969 + $0x88] sm:$0xff]
          %v2622 = vld [vmem:[%s969 + $0x90] sm:$0xff]
          %v2623 = vld [vmem:[%s969 + $0x98] sm:$0xff]
          %v2624 = vld [vmem:[%s969 + $0xa0] sm:$0xff]
          %v2625 = vld [vmem:[%s969 + $0xa8] sm:$0xff]
          %v2626 = vld [vmem:[%s969 + $0xb0] sm:$0xff]
          %v2627 = vld [vmem:[%s969 + $0xb8] sm:$0xff]
          %v2628 = vld [vmem:[%s969 + $0xc0] sm:$0xff]
          %v2629 = vld [vmem:[%s969 + $0xc8] sm:$0xff]
          %v2630 = vld [vmem:[%s969 + $0xd0] sm:$0xff]
          %v2631 = vld [vmem:[%s969 + $0xd8] sm:$0xff]
          %v2632 = vld [vmem:[%s969 + $0xe0] sm:$0xff]
          %v2633 = vld [vmem:[%s969 + $0xe8] sm:$0xff]
          %v2634 = vld [vmem:[%s969 + $0xf0] sm:$0xff]
          %v2635 = vld [vmem:[%s969 + $0xf8] sm:$0xff]
          %v2636 = vld [vmem:[%s1127] sm:$0x3]
          %v2638 = vlaneseq
          %v2639 = vshrl.u32 %v2638, 7
          %v2640 = vsub.s32 0, %v2639
          %v2641 = vrot.slane %v2636, %v2640
          %v2642 = vlaneseq
          %v2643 = vshrl.u32 %v2642, 7
          %v2644 = vsub.s32 1, %v2643
          %v2645 = vrot.slane %v2636, %v2644
          %v2680 = vunpack.c.l.b16 %v2604
          %v2681 = vunpack.c.h.b16 %v2604
          %v2682 = vunpack.c.l.b16 %v2605
          %v2683 = vunpack.c.h.b16 %v2605
          %v2684 = vunpack.c.l.b16 %v2606
          %v2685 = vunpack.c.h.b16 %v2606
          %v2686 = vunpack.c.l.b16 %v2607
          %v2687 = vunpack.c.h.b16 %v2607
          %v2688 = vunpack.c.l.b16 %v2608
          %v2689 = vunpack.c.h.b16 %v2608
          %v2690 = vunpack.c.l.b16 %v2609
          %v2691 = vunpack.c.h.b16 %v2609
          %v2692 = vunpack.c.l.b16 %v2610
          %v2693 = vunpack.c.h.b16 %v2610
          %v2694 = vunpack.c.l.b16 %v2611
          %v2695 = vunpack.c.h.b16 %v2611
          %v2696 = vunpack.c.l.b16 %v2612
          %v2697 = vunpack.c.h.b16 %v2612
          %v2698 = vunpack.c.l.b16 %v2613
          %v2699 = vunpack.c.h.b16 %v2613
          %v2700 = vunpack.c.l.b16 %v2614
          %v2701 = vunpack.c.h.b16 %v2614
          %v2702 = vunpack.c.l.b16 %v2615
          %v2703 = vunpack.c.h.b16 %v2615
          %v2704 = vunpack.c.l.b16 %v2616
          %v2705 = vunpack.c.h.b16 %v2616
          %v2706 = vunpack.c.l.b16 %v2617
          %v2707 = vunpack.c.h.b16 %v2617
          %v2708 = vunpack.c.l.b16 %v2618
          %v2709 = vunpack.c.h.b16 %v2618
          %v2710 = vunpack.c.l.b16 %v2619
          %v2711 = vunpack.c.h.b16 %v2619
          %v2712 = vunpack.c.l.b16 %v2620
          %v2713 = vunpack.c.h.b16 %v2620
          %v2714 = vunpack.c.l.b16 %v2621
          %v2715 = vunpack.c.h.b16 %v2621
          %v2716 = vunpack.c.l.b16 %v2622
          %v2717 = vunpack.c.h.b16 %v2622
          %v2718 = vunpack.c.l.b16 %v2623
          %v2719 = vunpack.c.h.b16 %v2623
          %v2720 = vunpack.c.l.b16 %v2624
          %v2721 = vunpack.c.h.b16 %v2624
          %v2722 = vunpack.c.l.b16 %v2625
          %v2723 = vunpack.c.h.b16 %v2625
          %v2724 = vunpack.c.l.b16 %v2626
          %v2725 = vunpack.c.h.b16 %v2626
          %v2726 = vunpack.c.l.b16 %v2627
          %v2727 = vunpack.c.h.b16 %v2627
          %v2728 = vunpack.c.l.b16 %v2628
          %v2729 = vunpack.c.h.b16 %v2628
          %v2730 = vunpack.c.l.b16 %v2629
          %v2731 = vunpack.c.h.b16 %v2629
          %v2732 = vunpack.c.l.b16 %v2630
          %v2733 = vunpack.c.h.b16 %v2630
          %v2734 = vunpack.c.l.b16 %v2631
          %v2735 = vunpack.c.h.b16 %v2631
          %v2736 = vunpack.c.l.b16 %v2632
          %v2737 = vunpack.c.h.b16 %v2632
          %v2738 = vunpack.c.l.b16 %v2633
          %v2739 = vunpack.c.h.b16 %v2633
          %v2740 = vunpack.c.l.b16 %v2634
          %v2741 = vunpack.c.h.b16 %v2634
          %v2742 = vunpack.c.l.b16 %v2635
          %v2743 = vunpack.c.h.b16 %v2635
          %v2744 = vpack.c.b16 %v2682, %v2680
          %v2745 = vpack.c.b16 %v2683, %v2681
          %v2746 = vpack.c.b16 %v2686, %v2684
          %v2747 = vpack.c.b16 %v2687, %v2685
          %v2748 = vpack.c.b16 %v2690, %v2688
          %v2749 = vpack.c.b16 %v2691, %v2689
          %v2750 = vpack.c.b16 %v2694, %v2692
          %v2751 = vpack.c.b16 %v2695, %v2693
          %v2752 = vpack.c.b16 %v2698, %v2696
          %v2753 = vpack.c.b16 %v2699, %v2697
          %v2754 = vpack.c.b16 %v2702, %v2700
          %v2755 = vpack.c.b16 %v2703, %v2701
          %v2756 = vpack.c.b16 %v2706, %v2704
          %v2757 = vpack.c.b16 %v2707, %v2705
          %v2758 = vpack.c.b16 %v2710, %v2708
          %v2759 = vpack.c.b16 %v2711, %v2709
          %v2760 = vpack.c.b16 %v2714, %v2712
          %v2761 = vpack.c.b16 %v2715, %v2713
          %v2762 = vpack.c.b16 %v2718, %v2716
          %v2763 = vpack.c.b16 %v2719, %v2717
          %v2764 = vpack.c.b16 %v2722, %v2720
          %v2765 = vpack.c.b16 %v2723, %v2721
          %v2766 = vpack.c.b16 %v2726, %v2724
          %v2767 = vpack.c.b16 %v2727, %v2725
          %v2768 = vpack.c.b16 %v2730, %v2728
          %v2769 = vpack.c.b16 %v2731, %v2729
          %v2770 = vpack.c.b16 %v2734, %v2732
          %v2771 = vpack.c.b16 %v2735, %v2733
          %v2772 = vpack.c.b16 %v2738, %v2736
          %v2773 = vpack.c.b16 %v2739, %v2737
          %v2774 = vpack.c.b16 %v2742, %v2740
          %v2775 = vpack.c.b16 %v2743, %v2741
          %2808 = vmatprep.subr.bf16.mxu0 %v2745
          %2809 = vmatpush1.bf16.msra.mxu0 %v2744
          %2810 = vmatprep.subr.bf16.mxu0 %v2747
          %2811 = vmatpush1.bf16.msra.mxu0 %v2746
          %2812 = vmatprep.subr.bf16.mxu0 %v2749
          %2813 = vmatpush1.bf16.msra.mxu0 %v2748
          %2814 = vmatprep.subr.bf16.mxu0 %v2751
          %2815 = vmatpush1.bf16.msra.mxu0 %v2750
          %2816 = vmatprep.subr.bf16.mxu0 %v2753
          %2817 = vmatpush1.bf16.msra.mxu0 %v2752
          %2818 = vmatprep.subr.bf16.mxu0 %v2755
          %2819 = vmatpush1.bf16.msra.mxu0 %v2754
          %2820 = vmatprep.subr.bf16.mxu0 %v2757
          %2821 = vmatpush1.bf16.msra.mxu0 %v2756
          %2822 = vmatprep.subr.bf16.mxu0 %v2759
          %2823 = vmatpush1.bf16.msra.mxu0 %v2758
          %2824 = vmatprep.subr.bf16.mxu0 %v2761
          %2825 = vmatpush1.bf16.msra.mxu0 %v2760
          %2826 = vmatprep.subr.bf16.mxu0 %v2763
          %2827 = vmatpush1.bf16.msra.mxu0 %v2762
          %2828 = vmatprep.subr.bf16.mxu0 %v2765
          %2829 = vmatpush1.bf16.msra.mxu0 %v2764
          %2830 = vmatprep.subr.bf16.mxu0 %v2767
          %2831 = vmatpush1.bf16.msra.mxu0 %v2766
          %2832 = vmatprep.subr.bf16.mxu0 %v2769
          %2833 = vmatpush1.bf16.msra.mxu0 %v2768
          %2834 = vmatprep.subr.bf16.mxu0 %v2771
          %2835 = vmatpush1.bf16.msra.mxu0 %v2770
          %2836 = vmatprep.subr.bf16.mxu0 %v2773
          %2837 = vmatpush1.bf16.msra.mxu0 %v2772
          %2838 = vmatprep.subr.bf16.mxu0 %v2775
          %2839 = vmatpush1.bf16.msra.mxu0 %v2774
          %2840 = vmatprep.mubr.bf16.mxu0 %v2601
          %2841 = vmatmul.mubr.bf16.gmra.mrb[0].mxu0 %v2600
          %v2842 = vpop.f32.mrb[0].mxu0
          %v2843 = vadd.f32 %v2641, %v2842
          %v2844 = vpop.f32.mrb[0].mxu0
          %v2845 = vadd.f32 %v2645, %v2844
          %v2846 = vpop.f32.mrb[0].mxu0
          %v2847 = vadd.f32 %v2641, %v2846
          %v2848 = vpop.f32.mrb[0].mxu0
          %v2849 = vadd.f32 %v2645, %v2848
          %2850 = vmatprep.mubr.bf16.mxu0 %v2603
          %2851 = vmatmul.mubr.bf16.gmra.mrb[0].mxu0 %v2602
          %v2852 = vpop.f32.mrb[0].mxu0
          %v2853 = vadd.f32 %v2641, %v2852
          %v2854 = vpop.f32.mrb[0].mxu0
          %v2855 = vadd.f32 %v2645, %v2854
          %v2856 = vpop.f32.mrb[0].mxu0
          %v2857 = vadd.f32 %v2641, %v2856
          %v2858 = vpop.f32.mrb[0].mxu0
          %v2859 = vadd.f32 %v2645, %v2858
          %2860 = vdwg.mxu0
          %v2861 = vadd.f32 %v2843, %v1328
          %v2862 = vadd.f32 %v2845, %v1329
          %v2863 = vadd.f32 %v2847, %v1330
          %v2864 = vadd.f32 %v2849, %v1331
          %v2865 = vadd.f32 %v2853, %v1332
          %v2866 = vadd.f32 %v2855, %v1333
          %v2867 = vadd.f32 %v2857, %v1334
          %v2868 = vadd.f32 %v2859, %v1335
          %v2869 = vadd.f32 %v2861, %v2862
          %2870 = vadd.xlane.f32.xlu0 %v2869
          %v2871 = vpop.xlane.xlu0 %2870
          %v2872 = vadd.f32 %v2863, %v2864
          %2873 = vadd.xlane.f32.xlu0 %v2872
          %v2874 = vpop.xlane.xlu0 %2873
          %v2875 = vadd.f32 %v2865, %v2866
          %2876 = vadd.xlane.f32.xlu0 %v2875
          %v2877 = vpop.xlane.xlu0 %2876
          %v2878 = vadd.f32 %v2867, %v2868
          %2879 = vadd.xlane.f32.xlu0 %v2878
          %v2880 = vpop.xlane.xlu0 %2879
          %v2881 = vrcp.pop 256.0
          %v2882 = vmul.f32 %v2871, %v2881
          %v2883 = vmul.f32 %v2874, %v2881
          %v2884 = vmul.f32 %v2877, %v2881
          %v2885 = vmul.f32 %v2880, %v2881
          %v2886 = vsub.f32 %v2861, %v2882
          %v2887 = vsub.f32 %v2862, %v2882
          %v2888 = vsub.f32 %v2863, %v2883
          %v2889 = vsub.f32 %v2864, %v2883
          %v2890 = vsub.f32 %v2865, %v2884
          %v2891 = vsub.f32 %v2866, %v2884
          %v2892 = vsub.f32 %v2867, %v2885
          %v2893 = vsub.f32 %v2868, %v2885
          %v2894 = vmul.f32 %v2886, %v2886
          %v2895 = vmul.f32 %v2887, %v2887
          %v2896 = vmul.f32 %v2888, %v2888
          %v2897 = vmul.f32 %v2889, %v2889
          %v2898 = vmul.f32 %v2890, %v2890
          %v2899 = vmul.f32 %v2891, %v2891
          %v2900 = vmul.f32 %v2892, %v2892
          %v2901 = vmul.f32 %v2893, %v2893
          %v2902 = vadd.f32 %v2894, %v2895
          %2903 = vadd.xlane.f32.xlu0 %v2902
          %v2904 = vpop.xlane.xlu0 %2903
          %v2905 = vadd.f32 %v2896, %v2897
          %2906 = vadd.xlane.f32.xlu0 %v2905
          %v2907 = vpop.xlane.xlu0 %2906
          %v2908 = vadd.f32 %v2898, %v2899
          %2909 = vadd.xlane.f32.xlu0 %v2908
          %v2910 = vpop.xlane.xlu0 %2909
          %v2911 = vadd.f32 %v2900, %v2901
          %2912 = vadd.xlane.f32.xlu0 %v2911
          %v2913 = vpop.xlane.xlu0 %2912
          %v2914 = vmul.f32 %v2904, %v2881
          %v2915 = vmul.f32 %v2907, %v2881
          %v2916 = vmul.f32 %v2910, %v2881
          %v2917 = vmul.f32 %v2913, %v2881
          %v2918 = vadd.f32 %v2914, 1e-12
          %v2919 = vadd.f32 %v2915, 1e-12
          %v2920 = vadd.f32 %v2916, 1e-12
          %v2921 = vadd.f32 %v2917, 1e-12
          %v2922 = vrsqrt.pop %v2918
          %v2923 = vrsqrt.pop %v2919
          %v2924 = vrsqrt.pop %v2920
          %v2925 = vrsqrt.pop %v2921
          %v2926 = vmul.f32 %v2886, %v2922
          %v2927 = vmul.f32 %v2887, %v2922
          %v2928 = vmul.f32 %v2888, %v2923
          %v2929 = vmul.f32 %v2889, %v2923
          %v2930 = vmul.f32 %v2890, %v2924
          %v2931 = vmul.f32 %v2891, %v2924
          %v2932 = vmul.f32 %v2892, %v2925
          %v2933 = vmul.f32 %v2893, %v2925
          %v2934 = vld [vmem:[%s1131] sm:$0x3]
          %v2936 = vlaneseq
          %v2937 = vshrl.u32 %v2936, 7
          %v2938 = vsub.s32 0, %v2937
          %v2939 = vrot.slane %v2934, %v2938
          %v2940 = vlaneseq
          %v2941 = vshrl.u32 %v2940, 7
          %v2942 = vsub.s32 1, %v2941
          %v2943 = vrot.slane %v2934, %v2942
          %v2946 = vmul.f32 %v2926, %v2939
          %v2947 = vmul.f32 %v2927, %v2943
          %v2948 = vmul.f32 %v2928, %v2939
          %v2949 = vmul.f32 %v2929, %v2943
          %v2950 = vmul.f32 %v2930, %v2939
          %v2951 = vmul.f32 %v2931, %v2943
          %v2952 = vmul.f32 %v2932, %v2939
          %v2953 = vmul.f32 %v2933, %v2943
          %v2954 = vld [vmem:[%s1135] sm:$0x3]
          %v2956 = vlaneseq
          %v2957 = vshrl.u32 %v2956, 7
          %v2958 = vsub.s32 0, %v2957
          %v2959 = vrot.slane %v2954, %v2958
          %v2960 = vlaneseq
          %v2961 = vshrl.u32 %v2960, 7
          %v2962 = vsub.s32 1, %v2961
          %v2963 = vrot.slane %v2954, %v2962
          %v2966 = vadd.f32 %v2946, %v2959
          %v2967 = vadd.f32 %v2947, %v2963
          %v2968 = vadd.f32 %v2948, %v2959
          %v2969 = vadd.f32 %v2949, %v2963
          %v2970 = vadd.f32 %v2950, %v2959
          %v2971 = vadd.f32 %v2951, %v2963
          %v2972 = vadd.f32 %v2952, %v2959
          %v2973 = vadd.f32 %v2953, %v2963
          %2974 = vst [vmem:[#allocation2] sm:$0xff] %v2966
          %2975 = vst [vmem:[#allocation2 + $0x8] sm:$0xff] %v2967
          %2976 = vst [vmem:[#allocation2 + $0x10] sm:$0xff] %v2968
          %2977 = vst [vmem:[#allocation2 + $0x18] sm:$0xff] %v2969
          %2978 = vst [vmem:[#allocation2 + $0x20] sm:$0xff] %v2970
          %2979 = vst [vmem:[#allocation2 + $0x28] sm:$0xff] %v2971
          %2980 = vst [vmem:[#allocation2 + $0x30] sm:$0xff] %v2972
          %2981 = vst [vmem:[#allocation2 + $0x38] sm:$0xff] %v2973
          %2982 = vst [vmem:[#allocation3] sm:$0xff] 0.0
          %2983 = vst [vmem:[#allocation3 + $0x8] sm:$0xff] 0.0
          %2984 = vst [vmem:[#allocation3 + $0x10] sm:$0xff] 0.0
          %2985 = vst [vmem:[#allocation3 + $0x18] sm:$0xff] 0.0
          %2986 = vst [vmem:[#allocation3 + $0x20] sm:$0xff] 0.0
          %2987 = vst [vmem:[#allocation3 + $0x28] sm:$0xff] 0.0
          %2988 = vst [vmem:[#allocation3 + $0x30] sm:$0xff] 0.0
          %2989 = vst [vmem:[#allocation3 + $0x38] sm:$0xff] 0.0
        $region160: #{tpu_custom_call.1} parent=107 // pred_fallthru
          _
        %v2990 = vld [vmem:[#allocation2] sm:$0xff]
        %v2991 = vld [vmem:[#allocation2 + $0x8] sm:$0xff]
        %v2992 = vld [vmem:[#allocation2 + $0x10] sm:$0xff]
        %v2993 = vld [vmem:[#allocation2 + $0x18] sm:$0xff]
        %v2994 = vld [vmem:[#allocation2 + $0x20] sm:$0xff]
        %v2995 = vld [vmem:[#allocation2 + $0x28] sm:$0xff]
        %v2996 = vld [vmem:[#allocation2 + $0x30] sm:$0xff]
        %v2997 = vld [vmem:[#allocation2 + $0x38] sm:$0xff]
        %v2998 = vpack.c.bf16 %v2992, %v2990
        %v2999 = vpack.c.bf16 %v2993, %v2991
        %v3000 = vpack.c.bf16 %v2996, %v2994
        %v3001 = vpack.c.bf16 %v2997, %v2995
        %v3002 = vld [vmem:[%s978] sm:$0xff]
        %v3003 = vld [vmem:[%s978 + $0x8] sm:$0xff]
        %v3004 = vld [vmem:[%s978 + $0x10] sm:$0xff]
        %v3005 = vld [vmem:[%s978 + $0x18] sm:$0xff]
        %v3006 = vld [vmem:[%s978 + $0x20] sm:$0xff]
        %v3007 = vld [vmem:[%s978 + $0x28] sm:$0xff]
        %v3008 = vld [vmem:[%s978 + $0x30] sm:$0xff]
        %v3009 = vld [vmem:[%s978 + $0x38] sm:$0xff]
        %v3010 = vld [vmem:[%s978 + $0x40] sm:$0xff]
        %v3011 = vld [vmem:[%s978 + $0x48] sm:$0xff]
        %v3012 = vld [vmem:[%s978 + $0x50] sm:$0xff]
        %v3013 = vld [vmem:[%s978 + $0x58] sm:$0xff]
        %v3014 = vld [vmem:[%s978 + $0x60] sm:$0xff]
        %v3015 = vld [vmem:[%s978 + $0x68] sm:$0xff]
        %v3016 = vld [vmem:[%s978 + $0x70] sm:$0xff]
        %v3017 = vld [vmem:[%s978 + $0x78] sm:$0xff]
        %v3018 = vld [vmem:[%s978 + $0x80] sm:$0xff]
        %v3019 = vld [vmem:[%s978 + $0x88] sm:$0xff]
        %v3020 = vld [vmem:[%s978 + $0x90] sm:$0xff]
        %v3021 = vld [vmem:[%s978 + $0x98] sm:$0xff]
        %v3022 = vld [vmem:[%s978 + $0xa0] sm:$0xff]
        %v3023 = vld [vmem:[%s978 + $0xa8] sm:$0xff]
        %v3024 = vld [vmem:[%s978 + $0xb0] sm:$0xff]
        %v3025 = vld [vmem:[%s978 + $0xb8] sm:$0xff]
        %v3026 = vld [vmem:[%s978 + $0xc0] sm:$0xff]
        %v3027 = vld [vmem:[%s978 + $0xc8] sm:$0xff]
        %v3028 = vld [vmem:[%s978 + $0xd0] sm:$0xff]
        %v3029 = vld [vmem:[%s978 + $0xd8] sm:$0xff]
        %v3030 = vld [vmem:[%s978 + $0xe0] sm:$0xff]
        %v3031 = vld [vmem:[%s978 + $0xe8] sm:$0xff]
        %v3032 = vld [vmem:[%s978 + $0xf0] sm:$0xff]
        %v3033 = vld [vmem:[%s978 + $0xf8] sm:$0xff]
        %v3034 = vld [vmem:[%s1144] sm:$0x3]
        %v3036 = vlaneseq
        %v3037 = vshrl.u32 %v3036, 7
        %v3038 = vsub.s32 0, %v3037
        %v3039 = vrot.slane %v3034, %v3038
        %v3040 = vlaneseq
        %v3041 = vshrl.u32 %v3040, 7
        %v3042 = vsub.s32 1, %v3041
        %v3043 = vrot.slane %v3034, %v3042
        %v3078 = vunpack.c.l.b16 %v3002
        %v3079 = vunpack.c.h.b16 %v3002
        %v3080 = vunpack.c.l.b16 %v3003
        %v3081 = vunpack.c.h.b16 %v3003
        %v3082 = vunpack.c.l.b16 %v3004
        %v3083 = vunpack.c.h.b16 %v3004
        %v3084 = vunpack.c.l.b16 %v3005
        %v3085 = vunpack.c.h.b16 %v3005
        %v3086 = vunpack.c.l.b16 %v3006
        %v3087 = vunpack.c.h.b16 %v3006
        %v3088 = vunpack.c.l.b16 %v3007
        %v3089 = vunpack.c.h.b16 %v3007
        %v3090 = vunpack.c.l.b16 %v3008
        %v3091 = vunpack.c.h.b16 %v3008
        %v3092 = vunpack.c.l.b16 %v3009
        %v3093 = vunpack.c.h.b16 %v3009
        %v3094 = vunpack.c.l.b16 %v3010
        %v3095 = vunpack.c.h.b16 %v3010
        %v3096 = vunpack.c.l.b16 %v3011
        %v3097 = vunpack.c.h.b16 %v3011
        %v3098 = vunpack.c.l.b16 %v3012
        %v3099 = vunpack.c.h.b16 %v3012
        %v3100 = vunpack.c.l.b16 %v3013
        %v3101 = vunpack.c.h.b16 %v3013
        %v3102 = vunpack.c.l.b16 %v3014
        %v3103 = vunpack.c.h.b16 %v3014
        %v3104 = vunpack.c.l.b16 %v3015
        %v3105 = vunpack.c.h.b16 %v3015
        %v3106 = vunpack.c.l.b16 %v3016
        %v3107 = vunpack.c.h.b16 %v3016
        %v3108 = vunpack.c.l.b16 %v3017
        %v3109 = vunpack.c.h.b16 %v3017
        %v3110 = vunpack.c.l.b16 %v3018
        %v3111 = vunpack.c.h.b16 %v3018
        %v3112 = vunpack.c.l.b16 %v3019
        %v3113 = vunpack.c.h.b16 %v3019
        %v3114 = vunpack.c.l.b16 %v3020
        %v3115 = vunpack.c.h.b16 %v3020
        %v3116 = vunpack.c.l.b16 %v3021
        %v3117 = vunpack.c.h.b16 %v3021
        %v3118 = vunpack.c.l.b16 %v3022
        %v3119 = vunpack.c.h.b16 %v3022
        %v3120 = vunpack.c.l.b16 %v3023
        %v3121 = vunpack.c.h.b16 %v3023
        %v3122 = vunpack.c.l.b16 %v3024
        %v3123 = vunpack.c.h.b16 %v3024
        %v3124 = vunpack.c.l.b16 %v3025
        %v3125 = vunpack.c.h.b16 %v3025
        %v3126 = vunpack.c.l.b16 %v3026
        %v3127 = vunpack.c.h.b16 %v3026
        %v3128 = vunpack.c.l.b16 %v3027
        %v3129 = vunpack.c.h.b16 %v3027
        %v3130 = vunpack.c.l.b16 %v3028
        %v3131 = vunpack.c.h.b16 %v3028
        %v3132 = vunpack.c.l.b16 %v3029
        %v3133 = vunpack.c.h.b16 %v3029
        %v3134 = vunpack.c.l.b16 %v3030
        %v3135 = vunpack.c.h.b16 %v3030
        %v3136 = vunpack.c.l.b16 %v3031
        %v3137 = vunpack.c.h.b16 %v3031
        %v3138 = vunpack.c.l.b16 %v3032
        %v3139 = vunpack.c.h.b16 %v3032
        %v3140 = vunpack.c.l.b16 %v3033
        %v3141 = vunpack.c.h.b16 %v3033
        %v3142 = vpack.c.b16 %v3080, %v3078
        %v3143 = vpack.c.b16 %v3081, %v3079
        %v3144 = vpack.c.b16 %v3084, %v3082
        %v3145 = vpack.c.b16 %v3085, %v3083
        %v3146 = vpack.c.b16 %v3088, %v3086
        %v3147 = vpack.c.b16 %v3089, %v3087
        %v3148 = vpack.c.b16 %v3092, %v3090
        %v3149 = vpack.c.b16 %v3093, %v3091
        %v3150 = vpack.c.b16 %v3096, %v3094
        %v3151 = vpack.c.b16 %v3097, %v3095
        %v3152 = vpack.c.b16 %v3100, %v3098
        %v3153 = vpack.c.b16 %v3101, %v3099
        %v3154 = vpack.c.b16 %v3104, %v3102
        %v3155 = vpack.c.b16 %v3105, %v3103
        %v3156 = vpack.c.b16 %v3108, %v3106
        %v3157 = vpack.c.b16 %v3109, %v3107
        %v3158 = vpack.c.b16 %v3112, %v3110
        %v3159 = vpack.c.b16 %v3113, %v3111
        %v3160 = vpack.c.b16 %v3116, %v3114
        %v3161 = vpack.c.b16 %v3117, %v3115
        %v3162 = vpack.c.b16 %v3120, %v3118
        %v3163 = vpack.c.b16 %v3121, %v3119
        %v3164 = vpack.c.b16 %v3124, %v3122
        %v3165 = vpack.c.b16 %v3125, %v3123
        %v3166 = vpack.c.b16 %v3128, %v3126
        %v3167 = vpack.c.b16 %v3129, %v3127
        %v3168 = vpack.c.b16 %v3132, %v3130
        %v3169 = vpack.c.b16 %v3133, %v3131
        %v3170 = vpack.c.b16 %v3136, %v3134
        %v3171 = vpack.c.b16 %v3137, %v3135
        %v3172 = vpack.c.b16 %v3140, %v3138
        %v3173 = vpack.c.b16 %v3141, %v3139
        %3206 = vmatprep.subr.bf16.mxu0 %v3143
        %3207 = vmatpush1.bf16.msra.mxu0 %v3142
        %3208 = vmatprep.subr.bf16.mxu0 %v3145
        %3209 = vmatpush1.bf16.msra.mxu0 %v3144
        %3210 = vmatprep.subr.bf16.mxu0 %v3147
        %3211 = vmatpush1.bf16.msra.mxu0 %v3146
        %3212 = vmatprep.subr.bf16.mxu0 %v3149
        %3213 = vmatpush1.bf16.msra.mxu0 %v3148
        %3214 = vmatprep.subr.bf16.mxu0 %v3151
        %3215 = vmatpush1.bf16.msra.mxu0 %v3150
        %3216 = vmatprep.subr.bf16.mxu0 %v3153
        %3217 = vmatpush1.bf16.msra.mxu0 %v3152
        %3218 = vmatprep.subr.bf16.mxu0 %v3155
        %3219 = vmatpush1.bf16.msra.mxu0 %v3154
        %3220 = vmatprep.subr.bf16.mxu0 %v3157
        %3221 = vmatpush1.bf16.msra.mxu0 %v3156
        %3222 = vmatprep.subr.bf16.mxu0 %v3159
        %3223 = vmatpush1.bf16.msra.mxu0 %v3158
        %3224 = vmatprep.subr.bf16.mxu0 %v3161
        %3225 = vmatpush1.bf16.msra.mxu0 %v3160
        %3226 = vmatprep.subr.bf16.mxu0 %v3163
        %3227 = vmatpush1.bf16.msra.mxu0 %v3162
        %3228 = vmatprep.subr.bf16.mxu0 %v3165
        %3229 = vmatpush1.bf16.msra.mxu0 %v3164
        %3230 = vmatprep.subr.bf16.mxu0 %v3167
        %3231 = vmatpush1.bf16.msra.mxu0 %v3166
        %3232 = vmatprep.subr.bf16.mxu0 %v3169
        %3233 = vmatpush1.bf16.msra.mxu0 %v3168
        %3234 = vmatprep.subr.bf16.mxu0 %v3171
        %3235 = vmatpush1.bf16.msra.mxu0 %v3170
        %3236 = vmatprep.subr.bf16.mxu0 %v3173
        %3237 = vmatpush1.bf16.msra.mxu0 %v3172
        %3238 = vmatprep.mubr.bf16.mxu0 %v2999
        %3239 = vmatmul.mubr.bf16.gmra.mrb[0].mxu0 %v2998
        %v3240 = vpop.f32.mrb[0].mxu0
        %v3241 = vadd.f32 %v3039, %v3240
        %v3242 = vpop.f32.mrb[0].mxu0
        %v3243 = vadd.f32 %v3043, %v3242
        %v3244 = vpop.f32.mrb[0].mxu0
        %v3245 = vadd.f32 %v3039, %v3244
        %v3246 = vpop.f32.mrb[0].mxu0
        %v3247 = vadd.f32 %v3043, %v3246
        %3248 = vmatprep.mubr.bf16.mxu0 %v3001
        %3249 = vmatmul.mubr.bf16.gmra.mrb[0].mxu0 %v3000
        %v3250 = vpop.f32.mrb[0].mxu0
        %v3251 = vadd.f32 %v3039, %v3250
        %v3252 = vpop.f32.mrb[0].mxu0
        %v3253 = vadd.f32 %v3043, %v3252
        %v3254 = vpop.f32.mrb[0].mxu0
        %v3255 = vadd.f32 %v3039, %v3254
        %v3256 = vpop.f32.mrb[0].mxu0
        %v3257 = vadd.f32 %v3043, %v3256
        %3258 = vdwg.mxu0
        %v3259 = vmul.f32 %v3241, 0.5
        %v3260 = vmul.f32 %v3243, 0.5
        %v3261 = vmul.f32 %v3245, 0.5
        %v3262 = vmul.f32 %v3247, 0.5
        %v3263 = vmul.f32 %v3251, 0.5
        %v3264 = vmul.f32 %v3253, 0.5
        %v3265 = vmul.f32 %v3255, 0.5
        %v3266 = vmul.f32 %v3257, 0.5
        %v3267 = vmul.f32 %v3241, 0.044715
        %v3268 = vmul.f32 %v3243, 0.044715
        %v3269 = vmul.f32 %v3245, 0.044715
        %v3270 = vmul.f32 %v3247, 0.044715
        %v3271 = vmul.f32 %v3251, 0.044715
        %v3272 = vmul.f32 %v3253, 0.044715
        %v3273 = vmul.f32 %v3255, 0.044715
        %v3274 = vmul.f32 %v3257, 0.044715
        %v3275 = vmul.f32 %v3267, %v3241
        %v3276 = vmul.f32 %v3268, %v3243
        %v3277 = vmul.f32 %v3269, %v3245
        %v3278 = vmul.f32 %v3270, %v3247
        %v3279 = vmul.f32 %v3271, %v3251
        %v3280 = vmul.f32 %v3272, %v3253
        %v3281 = vmul.f32 %v3273, %v3255
        %v3282 = vmul.f32 %v3274, %v3257
        %v3283 = vmul.f32 %v3275, %v3241
        %v3284 = vmul.f32 %v3276, %v3243
        %v3285 = vmul.f32 %v3277, %v3245
        %v3286 = vmul.f32 %v3278, %v3247
        %v3287 = vmul.f32 %v3279, %v3251
        %v3288 = vmul.f32 %v3280, %v3253
        %v3289 = vmul.f32 %v3281, %v3255
        %v3290 = vmul.f32 %v3282, %v3257
        %v3291 = vadd.f32 %v3241, %v3283
        %v3292 = vadd.f32 %v3243, %v3284
        %v3293 = vadd.f32 %v3245, %v3285
        %v3294 = vadd.f32 %v3247, %v3286
        %v3295 = vadd.f32 %v3251, %v3287
        %v3296 = vadd.f32 %v3253, %v3288
        %v3297 = vadd.f32 %v3255, %v3289
        %v3298 = vadd.f32 %v3257, %v3290
        %v3299 = vmul.f32 %v3291, 0.7978846
        %v3300 = vmul.f32 %v3292, 0.7978846
        %v3301 = vmul.f32 %v3293, 0.7978846
        %v3302 = vmul.f32 %v3294, 0.7978846
        %v3303 = vmul.f32 %v3295, 0.7978846
        %v3304 = vmul.f32 %v3296, 0.7978846
        %v3305 = vmul.f32 %v3297, 0.7978846
        %v3306 = vmul.f32 %v3298, 0.7978846
        %v3307 = vtanh.pop %v3299
        %v3308 = vtanh.pop %v3300
        %v3309 = vtanh.pop %v3301
        %v3310 = vtanh.pop %v3302
        %v3311 = vtanh.pop %v3303
        %v3312 = vtanh.pop %v3304
        %v3313 = vtanh.pop %v3305
        %v3314 = vtanh.pop %v3306
        %v3315 = vadd.f32 %v3307, 1.0
        %v3316 = vadd.f32 %v3308, 1.0
        %v3317 = vadd.f32 %v3309, 1.0
        %v3318 = vadd.f32 %v3310, 1.0
        %v3319 = vadd.f32 %v3311, 1.0
        %v3320 = vadd.f32 %v3312, 1.0
        %v3321 = vadd.f32 %v3313, 1.0
        %v3322 = vadd.f32 %v3314, 1.0
        %v3323 = vmul.f32 %v3259, %v3315
        %v3324 = vmul.f32 %v3260, %v3316
        %v3325 = vmul.f32 %v3261, %v3317
        %v3326 = vmul.f32 %v3262, %v3318
        %v3327 = vmul.f32 %v3263, %v3319
        %v3328 = vmul.f32 %v3264, %v3320
        %v3329 = vmul.f32 %v3265, %v3321
        %v3330 = vmul.f32 %v3266, %v3322
        %v3331 = vld [vmem:[#allocation3] sm:$0xff]
        %v3332 = vld [vmem:[#allocation3 + $0x8] sm:$0xff]
        %v3333 = vld [vmem:[#allocation3 + $0x10] sm:$0xff]
        %v3334 = vld [vmem:[#allocation3 + $0x18] sm:$0xff]
        %v3335 = vld [vmem:[#allocation3 + $0x20] sm:$0xff]
        %v3336 = vld [vmem:[#allocation3 + $0x28] sm:$0xff]
        %v3337 = vld [vmem:[#allocation3 + $0x30] sm:$0xff]
        %v3338 = vld [vmem:[#allocation3 + $0x38] sm:$0xff]
        %v3339 = vpack.c.bf16 %v3325, %v3323
        %v3340 = vpack.c.bf16 %v3326, %v3324
        %v3341 = vpack.c.bf16 %v3329, %v3327
        %v3342 = vpack.c.bf16 %v3330, %v3328
        %v3343 = vld [vmem:[%s987] sm:$0xff]
        %v3344 = vld [vmem:[%s987 + $0x8] sm:$0xff]
        %v3345 = vld [vmem:[%s987 + $0x10] sm:$0xff]
        %v3346 = vld [vmem:[%s987 + $0x18] sm:$0xff]
        %v3347 = vld [vmem:[%s987 + $0x20] sm:$0xff]
        %v3348 = vld [vmem:[%s987 + $0x28] sm:$0xff]
        %v3349 = vld [vmem:[%s987 + $0x30] sm:$0xff]
        %v3350 = vld [vmem:[%s987 + $0x38] sm:$0xff]
        %v3351 = vld [vmem:[%s987 + $0x40] sm:$0xff]
        %v3352 = vld [vmem:[%s987 + $0x48] sm:$0xff]
        %v3353 = vld [vmem:[%s987 + $0x50] sm:$0xff]
        %v3354 = vld [vmem:[%s987 + $0x58] sm:$0xff]
        %v3355 = vld [vmem:[%s987 + $0x60] sm:$0xff]
        %v3356 = vld [vmem:[%s987 + $0x68] sm:$0xff]
        %v3357 = vld [vmem:[%s987 + $0x70] sm:$0xff]
        %v3358 = vld [vmem:[%s987 + $0x78] sm:$0xff]
        %v3359 = vld [vmem:[%s987 + $0x80] sm:$0xff]
        %v3360 = vld [vmem:[%s987 + $0x88] sm:$0xff]
        %v3361 = vld [vmem:[%s987 + $0x90] sm:$0xff]
        %v3362 = vld [vmem:[%s987 + $0x98] sm:$0xff]
        %v3363 = vld [vmem:[%s987 + $0xa0] sm:$0xff]
        %v3364 = vld [vmem:[%s987 + $0xa8] sm:$0xff]
        %v3365 = vld [vmem:[%s987 + $0xb0] sm:$0xff]
        %v3366 = vld [vmem:[%s987 + $0xb8] sm:$0xff]
        %v3367 = vld [vmem:[%s987 + $0xc0] sm:$0xff]
        %v3368 = vld [vmem:[%s987 + $0xc8] sm:$0xff]
        %v3369 = vld [vmem:[%s987 + $0xd0] sm:$0xff]
        %v3370 = vld [vmem:[%s987 + $0xd8] sm:$0xff]
        %v3371 = vld [vmem:[%s987 + $0xe0] sm:$0xff]
        %v3372 = vld [vmem:[%s987 + $0xe8] sm:$0xff]
        %v3373 = vld [vmem:[%s987 + $0xf0] sm:$0xff]
        %v3374 = vld [vmem:[%s987 + $0xf8] sm:$0xff]
        %v3407 = vunpack.c.l.b16 %v3343
        %v3408 = vunpack.c.h.b16 %v3343
        %v3409 = vunpack.c.l.b16 %v3344
        %v3410 = vunpack.c.h.b16 %v3344
        %v3411 = vunpack.c.l.b16 %v3345
        %v3412 = vunpack.c.h.b16 %v3345
        %v3413 = vunpack.c.l.b16 %v3346
        %v3414 = vunpack.c.h.b16 %v3346
        %v3415 = vunpack.c.l.b16 %v3347
        %v3416 = vunpack.c.h.b16 %v3347
        %v3417 = vunpack.c.l.b16 %v3348
        %v3418 = vunpack.c.h.b16 %v3348
        %v3419 = vunpack.c.l.b16 %v3349
        %v3420 = vunpack.c.h.b16 %v3349
        %v3421 = vunpack.c.l.b16 %v3350
        %v3422 = vunpack.c.h.b16 %v3350
        %v3423 = vunpack.c.l.b16 %v3351
        %v3424 = vunpack.c.h.b16 %v3351
        %v3425 = vunpack.c.l.b16 %v3352
        %v3426 = vunpack.c.h.b16 %v3352
        %v3427 = vunpack.c.l.b16 %v3353
        %v3428 = vunpack.c.h.b16 %v3353
        %v3429 = vunpack.c.l.b16 %v3354
        %v3430 = vunpack.c.h.b16 %v3354
        %v3431 = vunpack.c.l.b16 %v3355
        %v3432 = vunpack.c.h.b16 %v3355
        %v3433 = vunpack.c.l.b16 %v3356
        %v3434 = vunpack.c.h.b16 %v3356
        %v3435 = vunpack.c.l.b16 %v3357
        %v3436 = vunpack.c.h.b16 %v3357
        %v3437 = vunpack.c.l.b16 %v3358
        %v3438 = vunpack.c.h.b16 %v3358
        %v3439 = vunpack.c.l.b16 %v3359
        %v3440 = vunpack.c.h.b16 %v3359
        %v3441 = vunpack.c.l.b16 %v3360
        %v3442 = vunpack.c.h.b16 %v3360
        %v3443 = vunpack.c.l.b16 %v3361
        %v3444 = vunpack.c.h.b16 %v3361
        %v3445 = vunpack.c.l.b16 %v3362
        %v3446 = vunpack.c.h.b16 %v3362
        %v3447 = vunpack.c.l.b16 %v3363
        %v3448 = vunpack.c.h.b16 %v3363
        %v3449 = vunpack.c.l.b16 %v3364
        %v3450 = vunpack.c.h.b16 %v3364
        %v3451 = vunpack.c.l.b16 %v3365
        %v3452 = vunpack.c.h.b16 %v3365
        %v3453 = vunpack.c.l.b16 %v3366
        %v3454 = vunpack.c.h.b16 %v3366
        %v3455 = vunpack.c.l.b16 %v3367
        %v3456 = vunpack.c.h.b16 %v3367
        %v3457 = vunpack.c.l.b16 %v3368
        %v3458 = vunpack.c.h.b16 %v3368
        %v3459 = vunpack.c.l.b16 %v3369
        %v3460 = vunpack.c.h.b16 %v3369
        %v3461 = vunpack.c.l.b16 %v3370
        %v3462 = vunpack.c.h.b16 %v3370
        %v3463 = vunpack.c.l.b16 %v3371
        %v3464 = vunpack.c.h.b16 %v3371
        %v3465 = vunpack.c.l.b16 %v3372
        %v3466 = vunpack.c.h.b16 %v3372
        %v3467 = vunpack.c.l.b16 %v3373
        %v3468 = vunpack.c.h.b16 %v3373
        %v3469 = vunpack.c.l.b16 %v3374
        %v3470 = vunpack.c.h.b16 %v3374
        %v3471 = vpack.c.b16 %v3409, %v3407
        %v3472 = vpack.c.b16 %v3410, %v3408
        %v3473 = vpack.c.b16 %v3413, %v3411
        %v3474 = vpack.c.b16 %v3414, %v3412
        %v3475 = vpack.c.b16 %v3417, %v3415
        %v3476 = vpack.c.b16 %v3418, %v3416
        %v3477 = vpack.c.b16 %v3421, %v3419
        %v3478 = vpack.c.b16 %v3422, %v3420
        %v3479 = vpack.c.b16 %v3425, %v3423
        %v3480 = vpack.c.b16 %v3426, %v3424
        %v3481 = vpack.c.b16 %v3429, %v3427
        %v3482 = vpack.c.b16 %v3430, %v3428
        %v3483 = vpack.c.b16 %v3433, %v3431
        %v3484 = vpack.c.b16 %v3434, %v3432
        %v3485 = vpack.c.b16 %v3437, %v3435
        %v3486 = vpack.c.b16 %v3438, %v3436
        %v3487 = vpack.c.b16 %v3441, %v3439
        %v3488 = vpack.c.b16 %v3442, %v3440
        %v3489 = vpack.c.b16 %v3445, %v3443
        %v3490 = vpack.c.b16 %v3446, %v3444
        %v3491 = vpack.c.b16 %v3449, %v3447
        %v3492 = vpack.c.b16 %v3450, %v3448
        %v3493 = vpack.c.b16 %v3453, %v3451
        %v3494 = vpack.c.b16 %v3454, %v3452
        %v3495 = vpack.c.b16 %v3457, %v3455
        %v3496 = vpack.c.b16 %v3458, %v3456
        %v3497 = vpack.c.b16 %v3461, %v3459
        %v3498 = vpack.c.b16 %v3462, %v3460
        %v3499 = vpack.c.b16 %v3465, %v3463
        %v3500 = vpack.c.b16 %v3466, %v3464
        %v3501 = vpack.c.b16 %v3469, %v3467
        %v3502 = vpack.c.b16 %v3470, %v3468
        %3535 = vmatprep.subr.bf16.mxu0 %v3472
        %3536 = vmatpush1.bf16.msra.mxu0 %v3471
        %3537 = vmatprep.subr.bf16.mxu0 %v3474
        %3538 = vmatpush1.bf16.msra.mxu0 %v3473
        %3539 = vmatprep.subr.bf16.mxu0 %v3476
        %3540 = vmatpush1.bf16.msra.mxu0 %v3475
        %3541 = vmatprep.subr.bf16.mxu0 %v3478
        %3542 = vmatpush1.bf16.msra.mxu0 %v3477
        %3543 = vmatprep.subr.bf16.mxu0 %v3480
        %3544 = vmatpush1.bf16.msra.mxu0 %v3479
        %3545 = vmatprep.subr.bf16.mxu0 %v3482
        %3546 = vmatpush1.bf16.msra.mxu0 %v3481
        %3547 = vmatprep.subr.bf16.mxu0 %v3484
        %3548 = vmatpush1.bf16.msra.mxu0 %v3483
        %3549 = vmatprep.subr.bf16.mxu0 %v3486
        %3550 = vmatpush1.bf16.msra.mxu0 %v3485
        %3551 = vmatprep.subr.bf16.mxu0 %v3488
        %3552 = vmatpush1.bf16.msra.mxu0 %v3487
        %3553 = vmatprep.subr.bf16.mxu0 %v3490
        %3554 = vmatpush1.bf16.msra.mxu0 %v3489
        %3555 = vmatprep.subr.bf16.mxu0 %v3492
        %3556 = vmatpush1.bf16.msra.mxu0 %v3491
        %3557 = vmatprep.subr.bf16.mxu0 %v3494
        %3558 = vmatpush1.bf16.msra.mxu0 %v3493
        %3559 = vmatprep.subr.bf16.mxu0 %v3496
        %3560 = vmatpush1.bf16.msra.mxu0 %v3495
        %3561 = vmatprep.subr.bf16.mxu0 %v3498
        %3562 = vmatpush1.bf16.msra.mxu0 %v3497
        %3563 = vmatprep.subr.bf16.mxu0 %v3500
        %3564 = vmatpush1.bf16.msra.mxu0 %v3499
        %3565 = vmatprep.subr.bf16.mxu0 %v3502
        %3566 = vmatpush1.bf16.msra.mxu0 %v3501
        %3567 = vmatprep.mubr.bf16.mxu0 %v3340
        %3568 = vmatmul.mubr.bf16.gmra.mrb[0].mxu0 %v3339
        %v3569 = vpop.f32.mrb[0].mxu0
        %v3570 = vadd.f32 0.0, %v3569
        %v3571 = vpop.f32.mrb[0].mxu0
        %v3572 = vadd.f32 0.0, %v3571
        %v3573 = vpop.f32.mrb[0].mxu0
        %v3574 = vadd.f32 0.0, %v3573
        %v3575 = vpop.f32.mrb[0].mxu0
        %v3576 = vadd.f32 0.0, %v3575
        %3577 = vmatprep.mubr.bf16.mxu0 %v3342
        %3578 = vmatmul.mubr.bf16.gmra.mrb[0].mxu0 %v3341
        %v3579 = vpop.f32.mrb[0].mxu0
        %v3580 = vadd.f32 0.0, %v3579
        %v3581 = vpop.f32.mrb[0].mxu0
        %v3582 = vadd.f32 0.0, %v3581
        %v3583 = vpop.f32.mrb[0].mxu0
        %v3584 = vadd.f32 0.0, %v3583
        %v3585 = vpop.f32.mrb[0].mxu0
        %v3586 = vadd.f32 0.0, %v3585
        %3587 = vdwg.mxu0
        %v3588 = vadd.f32 %v3331, %v3570
        %v3589 = vadd.f32 %v3332, %v3572
        %v3590 = vadd.f32 %v3333, %v3574
        %v3591 = vadd.f32 %v3334, %v3576
        %v3592 = vadd.f32 %v3335, %v3580
        %v3593 = vadd.f32 %v3336, %v3582
        %v3594 = vadd.f32 %v3337, %v3584
        %v3595 = vadd.f32 %v3338, %v3586
        %3596 = vst [vmem:[#allocation3] sm:$0xff] %v3588
        %3597 = vst [vmem:[#allocation3 + $0x8] sm:$0xff] %v3589
        %3598 = vst [vmem:[#allocation3 + $0x10] sm:$0xff] %v3590
        %3599 = vst [vmem:[#allocation3 + $0x18] sm:$0xff] %v3591
        %3600 = vst [vmem:[#allocation3 + $0x20] sm:$0xff] %v3592
        %3601 = vst [vmem:[#allocation3 + $0x28] sm:$0xff] %v3593
        %3602 = vst [vmem:[#allocation3 + $0x30] sm:$0xff] %v3594
        %3603 = vst [vmem:[#allocation3 + $0x38] sm:$0xff] %v3595
        %p3604 = scmp.eq.s32.totalorder %s51, 1
        // Predicated region
        $region161: #{tpu_custom_call.1} parent=107 // pred_check
          %p3605 = pneg %p3604
        $region162: #{tpu_custom_call.1} parent=107 // pred_check_branch
          %3607 = sbr.rel (%p3605) target = $region164
        $region163: #{tpu_custom_call.1} parent=107 // pred_region
          %v3608 = vld [vmem:[#allocation3] sm:$0xff]
          %v3609 = vld [vmem:[#allocation3 + $0x8] sm:$0xff]
          %v3610 = vld [vmem:[#allocation3 + $0x10] sm:$0xff]
          %v3611 = vld [vmem:[#allocation3 + $0x18] sm:$0xff]
          %v3612 = vld [vmem:[#allocation3 + $0x20] sm:$0xff]
          %v3613 = vld [vmem:[#allocation3 + $0x28] sm:$0xff]
          %v3614 = vld [vmem:[#allocation3 + $0x30] sm:$0xff]
          %v3615 = vld [vmem:[#allocation3 + $0x38] sm:$0xff]
          %v3616 = vld [vmem:[%s1150] sm:$0x3]
          %v3618 = vlaneseq
          %v3619 = vshrl.u32 %v3618, 7
          %v3620 = vsub.s32 0, %v3619
          %v3621 = vrot.slane %v3616, %v3620
          %v3622 = vlaneseq
          %v3623 = vshrl.u32 %v3622, 7
          %v3624 = vsub.s32 1, %v3623
          %v3625 = vrot.slane %v3616, %v3624
          %v3628 = vadd.f32 %v3608, %v3621
          %v3629 = vadd.f32 %v3609, %v3625
          %v3630 = vadd.f32 %v3610, %v3621
          %v3631 = vadd.f32 %v3611, %v3625
          %v3632 = vadd.f32 %v3612, %v3621
          %v3633 = vadd.f32 %v3613, %v3625
          %v3634 = vadd.f32 %v3614, %v3621
          %v3635 = vadd.f32 %v3615, %v3625
          %v3636 = vld [vmem:[#allocation2] sm:$0xff]
          %v3637 = vld [vmem:[#allocation2 + $0x8] sm:$0xff]
          %v3638 = vld [vmem:[#allocation2 + $0x10] sm:$0xff]
          %v3639 = vld [vmem:[#allocation2 + $0x18] sm:$0xff]
          %v3640 = vld [vmem:[#allocation2 + $0x20] sm:$0xff]
          %v3641 = vld [vmem:[#allocation2 + $0x28] sm:$0xff]
          %v3642 = vld [vmem:[#allocation2 + $0x30] sm:$0xff]
          %v3643 = vld [vmem:[#allocation2 + $0x38] sm:$0xff]
          %v3644 = vadd.f32 %v3628, %v3636
          %v3645 = vadd.f32 %v3629, %v3637
          %v3646 = vadd.f32 %v3630, %v3638
          %v3647 = vadd.f32 %v3631, %v3639
          %v3648 = vadd.f32 %v3632, %v3640
          %v3649 = vadd.f32 %v3633, %v3641
          %v3650 = vadd.f32 %v3634, %v3642
          %v3651 = vadd.f32 %v3635, %v3643
          %v3652 = vadd.f32 %v3644, %v3645
          %3653 = vadd.xlane.f32.xlu0 %v3652
          %v3654 = vpop.xlane.xlu0 %3653
          %v3655 = vadd.f32 %v3646, %v3647
          %3656 = vadd.xlane.f32.xlu0 %v3655
          %v3657 = vpop.xlane.xlu0 %3656
          %v3658 = vadd.f32 %v3648, %v3649
          %3659 = vadd.xlane.f32.xlu0 %v3658
          %v3660 = vpop.xlane.xlu0 %3659
          %v3661 = vadd.f32 %v3650, %v3651
          %3662 = vadd.xlane.f32.xlu0 %v3661
          %v3663 = vpop.xlane.xlu0 %3662
          %v3664 = vrcp.pop 256.0
          %v3665 = vmul.f32 %v3654, %v3664
          %v3666 = vmul.f32 %v3657, %v3664
          %v3667 = vmul.f32 %v3660, %v3664
          %v3668 = vmul.f32 %v3663, %v3664
          %v3669 = vsub.f32 %v3644, %v3665
          %v3670 = vsub.f32 %v3645, %v3665
          %v3671 = vsub.f32 %v3646, %v3666
          %v3672 = vsub.f32 %v3647, %v3666
          %v3673 = vsub.f32 %v3648, %v3667
          %v3674 = vsub.f32 %v3649, %v3667
          %v3675 = vsub.f32 %v3650, %v3668
          %v3676 = vsub.f32 %v3651, %v3668
          %v3677 = vmul.f32 %v3669, %v3669
          %v3678 = vmul.f32 %v3670, %v3670
          %v3679 = vmul.f32 %v3671, %v3671
          %v3680 = vmul.f32 %v3672, %v3672
          %v3681 = vmul.f32 %v3673, %v3673
          %v3682 = vmul.f32 %v3674, %v3674
          %v3683 = vmul.f32 %v3675, %v3675
          %v3684 = vmul.f32 %v3676, %v3676
          %v3685 = vadd.f32 %v3677, %v3678
          %3686 = vadd.xlane.f32.xlu0 %v3685
          %v3687 = vpop.xlane.xlu0 %3686
          %v3688 = vadd.f32 %v3679, %v3680
          %3689 = vadd.xlane.f32.xlu0 %v3688
          %v3690 = vpop.xlane.xlu0 %3689
          %v3691 = vadd.f32 %v3681, %v3682
          %3692 = vadd.xlane.f32.xlu0 %v3691
          %v3693 = vpop.xlane.xlu0 %3692
          %v3694 = vadd.f32 %v3683, %v3684
          %3695 = vadd.xlane.f32.xlu0 %v3694
          %v3696 = vpop.xlane.xlu0 %3695
          %v3697 = vmul.f32 %v3687, %v3664
          %v3698 = vmul.f32 %v3690, %v3664
          %v3699 = vmul.f32 %v3693, %v3664
          %v3700 = vmul.f32 %v3696, %v3664
          %v3701 = vadd.f32 %v3697, 1e-12
          %v3702 = vadd.f32 %v3698, 1e-12
          %v3703 = vadd.f32 %v3699, 1e-12
          %v3704 = vadd.f32 %v3700, 1e-12
          %v3705 = vrsqrt.pop %v3701
          %v3706 = vrsqrt.pop %v3702
          %v3707 = vrsqrt.pop %v3703
          %v3708 = vrsqrt.pop %v3704
          %v3709 = vmul.f32 %v3669, %v3705
          %v3710 = vmul.f32 %v3670, %v3705
          %v3711 = vmul.f32 %v3671, %v3706
          %v3712 = vmul.f32 %v3672, %v3706
          %v3713 = vmul.f32 %v3673, %v3707
          %v3714 = vmul.f32 %v3674, %v3707
          %v3715 = vmul.f32 %v3675, %v3708
          %v3716 = vmul.f32 %v3676, %v3708
          %v3717 = vld [vmem:[%s1154] sm:$0x3]
          %v3719 = vlaneseq
          %v3720 = vshrl.u32 %v3719, 7
          %v3721 = vsub.s32 0, %v3720
          %v3722 = vrot.slane %v3717, %v3721
          %v3723 = vlaneseq
          %v3724 = vshrl.u32 %v3723, 7
          %v3725 = vsub.s32 1, %v3724
          %v3726 = vrot.slane %v3717, %v3725
          %v3729 = vmul.f32 %v3709, %v3722
          %v3730 = vmul.f32 %v3710, %v3726
          %v3731 = vmul.f32 %v3711, %v3722
          %v3732 = vmul.f32 %v3712, %v3726
          %v3733 = vmul.f32 %v3713, %v3722
          %v3734 = vmul.f32 %v3714, %v3726
          %v3735 = vmul.f32 %v3715, %v3722
          %v3736 = vmul.f32 %v3716, %v3726
          %v3737 = vld [vmem:[%s1158] sm:$0x3]
          %v3739 = vlaneseq
          %v3740 = vshrl.u32 %v3739, 7
          %v3741 = vsub.s32 0, %v3740
          %v3742 = vrot.slane %v3737, %v3741
          %v3743 = vlaneseq
          %v3744 = vshrl.u32 %v3743, 7
          %v3745 = vsub.s32 1, %v3744
          %v3746 = vrot.slane %v3737, %v3745
          %v3749 = vadd.f32 %v3729, %v3742
          %v3750 = vadd.f32 %v3730, %v3746
          %v3751 = vadd.f32 %v3731, %v3742
          %v3752 = vadd.f32 %v3732, %v3746
          %v3753 = vadd.f32 %v3733, %v3742
          %v3754 = vadd.f32 %v3734, %v3746
          %v3755 = vadd.f32 %v3735, %v3742
          %v3756 = vadd.f32 %v3736, %v3746
          %3757 = vst [vmem:[#allocation22] sm:$0xff] %v3749
          %3758 = vst [vmem:[#allocation22 + $0x8] sm:$0xff] %v3750
          %3759 = vst [vmem:[#allocation22 + $0x10] sm:$0xff] %v3751
          %3760 = vst [vmem:[#allocation22 + $0x18] sm:$0xff] %v3752
          %3761 = vst [vmem:[#allocation22 + $0x20] sm:$0xff] %v3753
          %3762 = vst [vmem:[#allocation22 + $0x28] sm:$0xff] %v3754
          %3763 = vst [vmem:[#allocation22 + $0x30] sm:$0xff] %v3755
          %3764 = vst [vmem:[#allocation22 + $0x38] sm:$0xff] %v3756
        $region164: #{tpu_custom_call.1} parent=107 // pred_fallthru
          _
        // Predicated region
        $region165: #{tpu_custom_call.1} parent=107 // pred_check
          %p3765 = pneg %p619
        $region166: #{tpu_custom_call.1} parent=107 // pred_check_branch
          %3767 = sbr.rel (%p3765) target = $region168
        $region167: #{tpu_custom_call.1} parent=107 // pred_region
          %s3769 = ssub.s32 1024, 1024
          %3770 = vsyncadd [#allocation6], %s3769
          %s3771 = sshll.u32 [#allocation22], 4
          %s3772 = int_to_ptr.vmem [resolvable:$true] %s3771
          %3777 = dma.vmem_to_hbm [thread:$0]  %s3772, 1024, %s22, [#allocation6], 256, 256, 16
        $region168: #{tpu_custom_call.1} parent=107 // pred_fallthru
          _
        // Predicated region
        $region169: #{tpu_custom_call.1} parent=107 // pred_check
          %p3778 = pneg %p619
        $region170: #{tpu_custom_call.1} parent=107 // pred_check_branch
          %3780 = sbr.rel (%p3778) target = $region172
        $region171: #{tpu_custom_call.1} parent=107 // pred_region
          %3781 = dma.done [#allocation6], 1024
        $region172: #{tpu_custom_call.1} parent=107 // pred_fallthru
          _
      $region108: #{tpu_custom_call.1} parent=5 // pred_fallthru
        _
      %p3782 = scmp.le.s32.totalorder 2, %s41
      // Predicated region
      $region173: #{tpu_custom_call.1} parent=5 // pred_check
        %p3783 = pneg %p3782
      $region174: #{tpu_custom_call.1} parent=5 // pred_check_branch
        %3785 = sbr.rel (%p3783) target = $region176
      $region175: #{tpu_custom_call.1} parent=5 // pred_region
        %s3786 = ssub.s32 %s41, 2
      $region176: #{tpu_custom_call.1} parent=5 // pred_fallthru
        _
    $region6: #{tpu_custom_call.1} parent=1 // loop_footer
      %s45 = sadd.s32 1, %s41
    $region7: #{tpu_custom_call.1} parent=1 // loop_footer_branch
      %40 = sbr.rel target = $region3
    $region8: #{tpu_custom_call.1} parent=1 // loop_exit
      _
    %3787 = vsyncpa [#allocation5], 1
    %s3788 = scalar_lea.sflag [#allocation5], 1
    %3789 = vsyncpa %s3788, 1
    %3790 = vsyncpa [#allocation8], 1
    %3791 = vsyncpa [#allocation11], 1
    %3792 = vsyncpa [#allocation14], 1
    %s3793 = scalar_lea.sflag [#allocation14], 1
    %3794 = vsyncpa %s3793, 1
    %3795 = vsyncpa [#allocation17], 1
    %s3796 = scalar_lea.sflag [#allocation17], 1
    %3797 = vsyncpa %s3796, 1
    %3798 = vsyncpa [#allocation20], 1
    %s3799 = scalar_lea.sflag [#allocation20], 1
    %3800 = vsyncpa %s3799, 1
    %3801 = vsyncpa [#allocation6], 1
    %s3802 = scalar_lea.sflag [#allocation6], 1
    %3803 = vsyncpa %s3802, 1

</llo_original>
